<compile_context>
chip_gen: v5e
topology: v5e:2x2
jax: 0.10.0
libtpu: 0.0.40
codegen_flags: <defaults>
</compile_context>

<pallas_src>
import jax
import jax.numpy as jnp
from jax.experimental import pallas as pl
from jax.experimental.pallas import tpu as pltpu


# ---------------------------------------------------------------------------
# Small helpers
# ---------------------------------------------------------------------------
def _pick_tile_m(M, tile_m):
    if M <= tile_m:
        return M, 1
    assert tile_m % 128 == 0, "tile_m must be a multiple of 128"
    return tile_m, pl.cdiv(M, tile_m)


def _vmem_limit_bytes(per_step_bytes):
    # per_step_bytes already includes double-buffered blocks + scratch; add
    # headroom for compiler temporaries (f32 intermediates, matmul staging).
    limit = 2 * per_step_bytes + (16 << 20)
    return int(min(max(limit, 20 << 20), 48 << 20))


# ---------------------------------------------------------------------------
# Pallas kernel 1: single-group BN -> ReLU -> 1x1 Conv (channels-first)
#   out[Cout, tm] = W @ relu(x * scale + shift)
# ---------------------------------------------------------------------------
def _bn_relu_conv_kernel(x_ref, scale_ref, shift_ref, w_ref, o_ref):
    x = x_ref[...].astype(jnp.float32)            # BN affine + ReLU in f32 (v5e safe)
    y = jnp.maximum(x * scale_ref[...] + shift_ref[...], 0.0)
    o_ref[...] = jnp.dot(
        w_ref[...], y.astype(w_ref.dtype), preferred_element_type=jnp.float32
    ).astype(o_ref.dtype)


def bn_relu_conv1x1(x_ncm, layer, *, tile_m=2048, out_dtype=jnp.float32,
                    compute_dtype=jnp.bfloat16):
    """x_ncm: [N, Cin, M] -> [N, Cout, M]."""
    N, Cin, M = x_ncm.shape
    Cout = layer["w_t"].shape[0]
    tm, n_m = _pick_tile_m(M, tile_m)

    scale = layer["scale"].reshape(Cin, 1).astype(jnp.float32)
    shift = layer["shift"].reshape(Cin, 1).astype(jnp.float32)
    w = layer["w_t"].astype(compute_dtype)

    in_bytes = (Cin * tm * x_ncm.dtype.itemsize
                + 2 * Cin * 4
                + Cout * Cin * jnp.dtype(compute_dtype).itemsize
                + Cout * tm * jnp.dtype(out_dtype).itemsize)

    out = pl.pallas_call(
        _bn_relu_conv_kernel,
        out_shape=jax.ShapeDtypeStruct((N, Cout, M), out_dtype),
        grid=(N, n_m),
        in_specs=[
            pl.BlockSpec((None, Cin, tm), lambda n, m: (n, 0, m)),
            pl.BlockSpec((Cin, 1), lambda n, m: (0, 0)),
            pl.BlockSpec((Cin, 1), lambda n, m: (0, 0)),
            pl.BlockSpec((Cout, Cin), lambda n, m: (0, 0)),
        ],
        out_specs=pl.BlockSpec((None, Cout, tm), lambda n, m: (n, 0, m)),
        compiler_params=pltpu.CompilerParams(
            dimension_semantics=("parallel", "parallel"),
            vmem_limit_bytes=_vmem_limit_bytes(2 * in_bytes),
        ),
    )(x_ncm, scale, shift, w)
    return out


# ---------------------------------------------------------------------------
# Pallas kernel 2: fused concat + bilinear-upsample + spp_fuse
#   For each spatial tile:
#     y[0:C0]          = relu(x_tile * s0 + b0)
#     y[off_g:off_g+Cg] = relu((level_g @ B_g_tile) * s_g + b_g)   (upsample on MXU)
#     out_tile         = W_fuse @ y          (single long-K matmul, VMEM scratch)
# ---------------------------------------------------------------------------
def _make_fuse_kernel(group_sizes, compute_dtype):
    num_levels = len(group_sizes) - 1
    G = len(group_sizes)

    def kernel(*refs):
        idx = 0
        x_ref = refs[idx]; idx += 1
        level_refs = refs[idx:idx + num_levels]; idx += num_levels
        b_refs = refs[idx:idx + num_levels]; idx += num_levels
        scale_refs = refs[idx:idx + G]; idx += G
        shift_refs = refs[idx:idx + G]; idx += G
        w_ref = refs[idx]; idx += 1
        o_ref = refs[idx]; idx += 1
        y_ref = refs[idx]                      # VMEM scratch [final_size, tm]

        # Group 0: full-resolution bottleneck tensor.
        x = x_ref[...].astype(jnp.float32)
        y0 = jnp.maximum(x * scale_refs[0][...] + shift_refs[0][...], 0.0)
        y_ref[0:group_sizes[0], :] = y0.astype(compute_dtype)

        # Groups 1..L: upsample the tiny conv'd pyramid level in-kernel.
        off = group_sizes[0]
        for g in range(num_levels):
            cg = group_sizes[g + 1]
            up = jnp.dot(level_refs[g][...].astype(jnp.float32), b_refs[g][...],
                         preferred_element_type=jnp.float32)        # [cg, tm]
            yg = jnp.maximum(up * scale_refs[g + 1][...] + shift_refs[g + 1][...], 0.0)
            y_ref[off:off + cg, :] = yg.astype(compute_dtype)
            off += cg

        # Single long-K matmul against the unsplit fuse weight.
        o_ref[...] = jnp.dot(w_ref[...], y_ref[...],
                             preferred_element_type=jnp.float32).astype(o_ref.dtype)

    return kernel


def spp_fuse_fused(x_ncm, levels, b_mats, fuse_groups, fuse_w, *, tile_m=2048,
                   out_dtype=jnp.float32, compute_dtype=jnp.bfloat16):
    """x_ncm: [N, C0, M]; levels[g]: [N, C_g, P_g]; b_mats[g]: [P_g, M]."""
    N, C0, M = x_ncm.shape
    Cout, final_size = fuse_w.shape
    group_sizes = [C0] + [lv.shape[1] for lv in levels]
    assert sum(group_sizes) == final_size
    tm, n_m = _pick_tile_m(M, tile_m)

    scales = [g["scale"].reshape(-1, 1).astype(jnp.float32) for g in fuse_groups]
    shifts = [g["shift"].reshape(-1, 1).astype(jnp.float32) for g in fuse_groups]
    w = fuse_w.astype(compute_dtype)
    b_mats = [b.astype(jnp.float32) for b in b_mats]

    in_specs = [pl.BlockSpec((None, C0, tm), lambda n, m: (n, 0, m))]
    for lv in levels:
        in_specs.append(pl.BlockSpec((None, lv.shape[1], lv.shape[2]),
                                     lambda n, m: (n, 0, 0)))
    for b in b_mats:
        in_specs.append(pl.BlockSpec((b.shape[0], tm), lambda n, m: (0, m)))
    for s in scales:
        in_specs.append(pl.BlockSpec(s.shape, lambda n, m: (0, 0)))
    for s in shifts:
        in_specs.append(pl.BlockSpec(s.shape, lambda n, m: (0, 0)))
    in_specs.append(pl.BlockSpec(w.shape, lambda n, m: (0, 0)))

    cbytes = jnp.dtype(compute_dtype).itemsize
    block_bytes = (C0 * tm * x_ncm.dtype.itemsize
                   + sum(lv.shape[1] * lv.shape[2] * cbytes for lv in levels)
                   + sum(b.shape[0] * tm * 4 for b in b_mats)
                   + final_size * 8
                   + Cout * final_size * cbytes
                   + Cout * tm * jnp.dtype(out_dtype).itemsize)
    scratch_bytes = final_size * tm * cbytes

    # TODO(synk): if N == 1 and M <= tile_m, split Cout into a 2nd parallel grid
    # axis so both v7x TensorCores get work (latency-only; not needed here).
    out = pl.pallas_call(
        _make_fuse_kernel(group_sizes, compute_dtype),
        out_shape=jax.ShapeDtypeStruct((N, Cout, M), out_dtype),
        grid=(N, n_m),
        in_specs=in_specs,
        out_specs=pl.BlockSpec((None, Cout, tm), lambda n, m: (n, 0, m)),
        scratch_shapes=[pltpu.VMEM((final_size, tm), compute_dtype)],
        compiler_params=pltpu.CompilerParams(
            dimension_semantics=("parallel", "parallel"),
            vmem_limit_bytes=_vmem_limit_bytes(2 * block_bytes + scratch_bytes),
        ),
    )(x_ncm, *levels, *b_mats, *scales, *shifts, w)
    return out


# ---------------------------------------------------------------------------
# Pooling / interpolation matrices (PyTorch semantics), built once per call
# ---------------------------------------------------------------------------
def _adaptive_pool_matrix(out_size, in_size):
    """A[out, in]: exact F.adaptive_avg_pool2d bin averaging along one axis."""
    idx = jnp.arange(in_size)
    rows = []
    for i in range(out_size):
        lo = (i * in_size) // out_size
        hi = -(-((i + 1) * in_size) // out_size)      # ceil
        mask = ((idx >= lo) & (idx < hi)).astype(jnp.float32)
        rows.append(mask / float(hi - lo))
    return jnp.stack(rows, axis=0)


def _bilinear_coords(out_size, in_size):
    scale = in_size / out_size
    c = (jnp.arange(out_size, dtype=jnp.float32) + 0.5) * scale - 0.5
    c = jnp.maximum(c, 0.0)
    lo = jnp.minimum(jnp.floor(c).astype(jnp.int32), in_size - 1)
    hi = jnp.minimum(lo + 1, in_size - 1)
    frac = c - lo.astype(jnp.float32)
    return lo, hi, frac


def _bilinear_matrix(out_size, in_size):
    """B[out, in]: bilinear interp weights, align_corners=False."""
    lo, hi, frac = _bilinear_coords(out_size, in_size)
    return (jax.nn.one_hot(lo, in_size, dtype=jnp.float32) * (1.0 - frac)[:, None]
            + jax.nn.one_hot(hi, in_size, dtype=jnp.float32) * frac[:, None])


# ---------------------------------------------------------------------------
# Parameter init (deterministic, synthetic) + module wrapper
# ---------------------------------------------------------------------------
def init_bn_relu_conv(key, cin, cout, eps=1e-5):
    k1, k2, k3, k4, k5 = jax.random.split(key, 5)
    gamma = jax.random.uniform(k1, (cin,), jnp.float32, 0.5, 1.5)
    beta = 0.1 * jax.random.normal(k2, (cin,), jnp.float32)
    running_mean = 0.1 * jax.random.normal(k3, (cin,), jnp.float32)
    running_var = jax.random.uniform(k4, (cin,), jnp.float32, 0.5, 1.5)
    # Conv2d(cin, cout, k=1, bias=False) weight stored as [cout, cin].
    w_t = jax.random.normal(k5, (cout, cin), jnp.float32) / jnp.sqrt(cin)
    scale = gamma / jnp.sqrt(running_var + eps)
    shift = beta - running_mean * scale
    return {"scale": scale, "shift": shift, "w_t": w_t}


class SpatialPyramidPoolingPallas:
    def __init__(self, key, num_maps_in, num_levels, bt_size=512,
                 level_size=128, out_size=128, grids=(6, 3, 2, 1),
                 square_grid=False, compute_dtype=jnp.bfloat16, tile_m=2048):
        self.grids = grids
        self.square_grid = square_grid
        self.compute_dtype = compute_dtype
        self.tile_m = tile_m

        keys = jax.random.split(key, num_levels + 2)
        self.layers = [init_bn_relu_conv(keys[0], num_maps_in, bt_size)]   # spp_bn
        self.group_sizes = [bt_size]
        final_size = bt_size
        for i in range(num_levels):
            final_size += level_size
            self.group_sizes.append(level_size)
            self.layers.append(init_bn_relu_conv(keys[1 + i], bt_size, level_size))

        # spp_fuse: split only the BN params per input-channel group; the conv
        # weight stays unsplit so the kernel does one long-K matmul.
        fuse = init_bn_relu_conv(keys[-1], final_size, out_size)
        self.fuse_w = fuse["w_t"]
        offs = [0]
        for s in self.group_sizes:
            offs.append(offs[-1] + s)
        self.fuse_groups = [
            {"scale": fuse["scale"][offs[g]:offs[g + 1]],
             "shift": fuse["shift"][offs[g]:offs[g + 1]]}
            for g in range(len(self.group_sizes))
        ]

    def __call__(self, x_nchw):
        N, C, H, W = x_nchw.shape
        M = H * W
        ar = W / H
        cd = self.compute_dtype
        num_levels = len(self.layers) - 1

        # spp_bn (hot path): bf16 streaming intermediate.
        x = bn_relu_conv1x1(x_nchw.reshape(N, C, M), self.layers[0],
                            tile_m=self.tile_m, out_dtype=cd, compute_dtype=cd)

        grid_sizes = []
        for i in range(num_levels):
            g = self.grids[i]
            grid_sizes.append((g, g) if self.square_grid
                              else (g, max(1, round(ar * g))))

        # One pass over x for ALL adaptive-average-pool levels: a single matmul
        # with the stacked pooling matrix [total_P, M].
        pool_mats = []
        for (ph, pw) in grid_sizes:
            a_h = _adaptive_pool_matrix(ph, H)
            a_w = _adaptive_pool_matrix(pw, W)
            pool_mats.append(jnp.einsum('ih,jw->ijhw', a_h, a_w).reshape(ph * pw, M))
        pool_all = jnp.concatenate(pool_mats, axis=0)
        pooled_all = jnp.einsum('ncm,pm->ncp', x.astype(jnp.float32), pool_all)

        # Tiny per-level BN->ReLU->1x1Conv on the pooled bins (Pallas), and the
        # per-level interpolation matrix consumed by the fused fuse kernel.
        levels, b_mats, off = [], [], 0
        for i, (ph, pw) in enumerate(grid_sizes):
            pg = ph * pw
            pooled_g = pooled_all[:, :, off:off + pg]
            off += pg
            levels.append(bn_relu_conv1x1(pooled_g, self.layers[1 + i],
                                          tile_m=self.tile_m, out_dtype=cd,
                                          compute_dtype=cd))        # [N, lvl, pg]
            b_h = _bilinear_matrix(H, ph)
            b_w = _bilinear_matrix(W, pw)
            b_mats.append(jnp.einsum('hi,wj->ijhw', b_h, b_w).reshape(pg, M))

        # Fused concat + bilinear upsample + spp_fuse.
        out = spp_fuse_fused(x, levels, b_mats, self.fuse_groups, self.fuse_w,
                             tile_m=self.tile_m, out_dtype=jnp.float32,
                             compute_dtype=cd)
        return out.reshape(N, -1, H, W)


# ---------------------------------------------------------------------------
# Pure-JAX f32 reference (independent pooling/upsample implementations)
# ---------------------------------------------------------------------------
def _adaptive_avg_pool_ref(x, out_h, out_w):
    N, C, H, W = x.shape
    rows = []
    for i in range(out_h):
        h0, h1 = (i * H) // out_h, -(-((i + 1) * H) // out_h)
        cols = []
        for j in range(out_w):
            w0, w1 = (j * W) // out_w, -(-((j + 1) * W) // out_w)
            cols.append(jnp.mean(x[:, :, h0:h1, w0:w1], axis=(2, 3)))
        rows.append(jnp.stack(cols, axis=-1))
    return jnp.stack(rows, axis=-2)


def _upsample_bilinear_ref(x, out_h, out_w):
    N, C, H, W = x.shape
    h_lo, h_hi, h_fr = _bilinear_coords(out_h, H)
    w_lo, w_hi, w_fr = _bilinear_coords(out_w, W)
    xh = x[:, :, h_lo, :] * (1 - h_fr)[None, None, :, None] \
        + x[:, :, h_hi, :] * h_fr[None, None, :, None]
    return xh[:, :, :, w_lo] * (1 - w_fr)[None, None, None, :] \
        + xh[:, :, :, w_hi] * w_fr[None, None, None, :]


def spp_reference(spp, x_nchw):
    N, C, H, W = x_nchw.shape
    ar = W / H

    def bnrc(x, scale, shift, w_t):
        y = jnp.maximum(x * scale[None, :, None, None] + shift[None, :, None, None], 0.0)
        return jnp.einsum('oc,nchw->nohw', w_t, y)

    x = bnrc(x_nchw.astype(jnp.float32), spp.layers[0]["scale"],
             spp.layers[0]["shift"], spp.layers[0]["w_t"])
    levels = [x]
    for i in range(len(spp.layers) - 1):
        g = spp.grids[i]
        gh, gw = (g, g) if spp.square_grid else (g, max(1, round(ar * g)))
        pooled = _adaptive_avg_pool_ref(x, gh, gw)
        lyr = spp.layers[1 + i]
        level = bnrc(pooled, lyr["scale"], lyr["shift"], lyr["w_t"])
        levels.append(_upsample_bilinear_ref(level, H, W))
    cat = jnp.concatenate(levels, axis=1)
    scale = jnp.concatenate([g["scale"] for g in spp.fuse_groups])
    shift = jnp.concatenate([g["shift"] for g in spp.fuse_groups])
    return bnrc(cat, scale, shift, spp.fuse_w)


if __name__ == "__main__":
    key = jax.random.PRNGKey(0)
    kparam, kx = jax.random.split(key)

    # Small config consistent with the module: num_maps_in=4, num_levels=3,
    # bt_size=64, level_size=32, out_size=32, grids=(6, 3, 2, 1).
    spp = SpatialPyramidPoolingPallas(
        kparam, num_maps_in=4, num_levels=3,
        bt_size=64, level_size=32, out_size=32, grids=(6, 3, 2, 1),
    )

    x = jax.random.normal(kx, (2, 4, 16, 16), jnp.float32)   # NCHW
    fwd = jax.jit(spp.__call__)
    out = jax.block_until_ready(fwd(x))
    assert out.shape == (2, 32, 16, 16), out.shape
    assert bool(jnp.all(jnp.isfinite(out)))

    # Loose-tolerance check vs an f32 pure-JAX reference (kernel streams bf16).
    ref = spp_reference(spp, x)
    rel = float(jnp.linalg.norm(out - ref) / (jnp.linalg.norm(ref) + 1e-12))
    assert rel < 5e-2, rel
    print("KERNEL_OK")
</pallas_src>

<mosaic_0001>
module attributes {stable_mosaic.version = 11 : i64} {
  func.func @_bn_relu_conv_kernel(%arg0: i32, %arg1: i32, %arg2: memref<1x4x256xf32, #tpu.memory_space<vmem>>, %arg3: memref<4x1xf32, #tpu.memory_space<vmem>>, %arg4: memref<4x1xf32, #tpu.memory_space<vmem>>, %arg5: memref<64x4xbf16, #tpu.memory_space<vmem>>, %arg6: memref<1x64x256xbf16, #tpu.memory_space<vmem>>) attributes {dimension_semantics = [#tpu.dimension_semantics<parallel>, #tpu.dimension_semantics<parallel>], iteration_bounds = array<i64: 2, 1>, scalar_prefetch = 0 : i64, scratch_operands = 0 : i64, tpu.core_type = #tpu.core_type<tc>, window_params = [{transform_indices = @transform_0, window_bounds = array<i64: 1, 4, 256>}, {pipeline_mode = #tpu.pipeline_mode<synchronous>, transform_indices = @transform_1, window_bounds = array<i64: 4, 1>}, {pipeline_mode = #tpu.pipeline_mode<synchronous>, transform_indices = @transform_2, window_bounds = array<i64: 4, 1>}, {pipeline_mode = #tpu.pipeline_mode<synchronous>, transform_indices = @transform_3, window_bounds = array<i64: 64, 4>}, {transform_indices = @transform_4, window_bounds = array<i64: 1, 64, 256>}]} {
    %c0 = arith.constant 0 : index
    %c0_0 = arith.constant 0 : index
    %c0_1 = arith.constant 0 : index
    %0 = vector.load %arg2[%c0, %c0_0, %c0_1] : memref<1x4x256xf32, #tpu.memory_space<vmem>>, vector<1x4x256xf32>
    %1 = vector.shape_cast %0 : vector<1x4x256xf32> to vector<4x256xf32>
    %c0_2 = arith.constant 0 : index
    %c0_3 = arith.constant 0 : index
    %2 = vector.load %arg3[%c0_2, %c0_3] : memref<4x1xf32, #tpu.memory_space<vmem>>, vector<4x1xf32>
    %3 = vector.broadcast %2 : vector<4x1xf32> to vector<4x256xf32>
    %4 = arith.mulf %1, %3 : vector<4x256xf32>
    %c0_4 = arith.constant 0 : index
    %c0_5 = arith.constant 0 : index
    %5 = vector.load %arg4[%c0_4, %c0_5] : memref<4x1xf32, #tpu.memory_space<vmem>>, vector<4x1xf32>
    %6 = vector.broadcast %5 : vector<4x1xf32> to vector<4x256xf32>
    %7 = arith.addf %4, %6 : vector<4x256xf32>
    %cst = arith.constant 0.000000e+00 : f32
    %8 = vector.broadcast %cst : f32 to vector<4x256xf32>
    %9 = arith.maximumf %7, %8 : vector<4x256xf32>
    %c0_6 = arith.constant 0 : index
    %c0_7 = arith.constant 0 : index
    %10 = vector.load %arg5[%c0_6, %c0_7] : memref<64x4xbf16, #tpu.memory_space<vmem>>, vector<64x4xbf16>
    %11 = arith.truncf %9 : vector<4x256xf32> to vector<4x256xbf16>
    %cst_8 = arith.constant dense<0.000000e+00> : vector<64x256xf32>
    %12 = tpu.matmul %10, %11, %cst_8 {dimension_numbers = #tpu.dot_dimension_numbers<[1], [0], [0], [1], [0, 0, 1, 1], [], []>} : vector<64x4xbf16>, vector<4x256xbf16>, vector<64x256xf32> -> vector<64x256xf32>
    %13 = arith.truncf %12 : vector<64x256xf32> to vector<64x256xbf16>
    %c0_9 = arith.constant 0 : index
    %c0_10 = arith.constant 0 : index
    %c0_11 = arith.constant 0 : index
    %14 = vector.load %arg6[%c0_9, %c0_10, %c0_11] : memref<1x64x256xbf16, #tpu.memory_space<vmem>>, vector<1x64x256xbf16>
    %15 = vector.shape_cast %14 : vector<1x64x256xbf16> to vector<64x256xbf16>
    %16 = vector.shape_cast %13 : vector<64x256xbf16> to vector<1x64x256xbf16>
    tpu.vector_store %arg6[%c0_9, %c0_10, %c0_11], %16 {strides = array<i32>} : memref<1x64x256xbf16, #tpu.memory_space<vmem>>, vector<1x64x256xbf16>,
    return
  }
  func.func @transform_0(%arg0: i32, %arg1: i32) -> (i32, i32, i32) {
    %c0_i32 = arith.constant 0 : i32
    %c0_i32_0 = arith.constant 0 : i32
    return %arg0, %c0_i32, %arg1 : i32, i32, i32
  }
  func.func @transform_1(%arg0: i32, %arg1: i32) -> (i32, i32) {
    %c0_i32 = arith.constant 0 : i32
    %c0_i32_0 = arith.constant 0 : i32
    %c0_i32_1 = arith.constant 0 : i32
    return %c0_i32, %c0_i32_0 : i32, i32
  }
  func.func @transform_2(%arg0: i32, %arg1: i32) -> (i32, i32) {
    %c0_i32 = arith.constant 0 : i32
    %c0_i32_0 = arith.constant 0 : i32
    %c0_i32_1 = arith.constant 0 : i32
    return %c0_i32, %c0_i32_0 : i32, i32
  }
  func.func @transform_3(%arg0: i32, %arg1: i32) -> (i32, i32) {
    %c0_i32 = arith.constant 0 : i32
    %c0_i32_0 = arith.constant 0 : i32
    %c0_i32_1 = arith.constant 0 : i32
    return %c0_i32, %c0_i32_0 : i32, i32
  }
  func.func @transform_4(%arg0: i32, %arg1: i32) -> (i32, i32, i32) {
    %c0_i32 = arith.constant 0 : i32
    %c0_i32_0 = arith.constant 0 : i32
    return %arg0, %c0_i32, %arg1 : i32, i32, i32
  }
}

module attributes {stable_mosaic.version = 11 : i64} {
  func.func @_bn_relu_conv_kernel(%arg0: i32, %arg1: i32, %arg2: memref<1x64x9xf32, #tpu.memory_space<vmem>>, %arg3: memref<64x1xf32, #tpu.memory_space<vmem>>, %arg4: memref<64x1xf32, #tpu.memory_space<vmem>>, %arg5: memref<32x64xbf16, #tpu.memory_space<vmem>>, %arg6: memref<1x32x9xbf16, #tpu.memory_space<vmem>>) attributes {dimension_semantics = [#tpu.dimension_semantics<parallel>, #tpu.dimension_semantics<parallel>], iteration_bounds = array<i64: 2, 1>, scalar_prefetch = 0 : i64, scratch_operands = 0 : i64, tpu.core_type = #tpu.core_type<tc>, window_params = [{transform_indices = @transform_0, window_bounds = array<i64: 1, 64, 9>}, {pipeline_mode = #tpu.pipeline_mode<synchronous>, transform_indices = @transform_1, window_bounds = array<i64: 64, 1>}, {pipeline_mode = #tpu.pipeline_mode<synchronous>, transform_indices = @transform_2, window_bounds = array<i64: 64, 1>}, {pipeline_mode = #tpu.pipeline_mode<synchronous>, transform_indices = @transform_3, window_bounds = array<i64: 32, 64>}, {transform_indices = @transform_4, window_bounds = array<i64: 1, 32, 9>}]} {
    %c0 = arith.constant 0 : index
    %c0_0 = arith.constant 0 : index
    %c0_1 = arith.constant 0 : index
    %0 = vector.load %arg2[%c0, %c0_0, %c0_1] : memref<1x64x9xf32, #tpu.memory_space<vmem>>, vector<1x64x9xf32>
    %1 = vector.shape_cast %0 : vector<1x64x9xf32> to vector<64x9xf32>
    %c0_2 = arith.constant 0 : index
    %c0_3 = arith.constant 0 : index
    %2 = vector.load %arg3[%c0_2, %c0_3] : memref<64x1xf32, #tpu.memory_space<vmem>>, vector<64x1xf32>
    %3 = vector.broadcast %2 : vector<64x1xf32> to vector<64x9xf32>
    %4 = arith.mulf %1, %3 : vector<64x9xf32>
    %c0_4 = arith.constant 0 : index
    %c0_5 = arith.constant 0 : index
    %5 = vector.load %arg4[%c0_4, %c0_5] : memref<64x1xf32, #tpu.memory_space<vmem>>, vector<64x1xf32>
    %6 = vector.broadcast %5 : vector<64x1xf32> to vector<64x9xf32>
    %7 = arith.addf %4, %6 : vector<64x9xf32>
    %cst = arith.constant 0.000000e+00 : f32
    %8 = vector.broadcast %cst : f32 to vector<64x9xf32>
    %9 = arith.maximumf %7, %8 : vector<64x9xf32>
    %c0_6 = arith.constant 0 : index
    %c0_7 = arith.constant 0 : index
    %10 = vector.load %arg5[%c0_6, %c0_7] : memref<32x64xbf16, #tpu.memory_space<vmem>>, vector<32x64xbf16>
    %11 = arith.truncf %9 : vector<64x9xf32> to vector<64x9xbf16>
    %cst_8 = arith.constant dense<0.000000e+00> : vector<32x9xf32>
    %12 = tpu.matmul %10, %11, %cst_8 {dimension_numbers = #tpu.dot_dimension_numbers<[1], [0], [0], [1], [0, 0, 1, 1], [], []>} : vector<32x64xbf16>, vector<64x9xbf16>, vector<32x9xf32> -> vector<32x9xf32>
    %13 = arith.truncf %12 : vector<32x9xf32> to vector<32x9xbf16>
    %c0_9 = arith.constant 0 : index
    %c0_10 = arith.constant 0 : index
    %c0_11 = arith.constant 0 : index
    %14 = vector.load %arg6[%c0_9, %c0_10, %c0_11] : memref<1x32x9xbf16, #tpu.memory_space<vmem>>, vector<1x32x9xbf16>
    %15 = vector.shape_cast %14 : vector<1x32x9xbf16> to vector<32x9xbf16>
    %16 = vector.shape_cast %13 : vector<32x9xbf16> to vector<1x32x9xbf16>
    tpu.vector_store %arg6[%c0_9, %c0_10, %c0_11], %16 {strides = array<i32>} : memref<1x32x9xbf16, #tpu.memory_space<vmem>>, vector<1x32x9xbf16>,
    return
  }
  func.func @transform_0(%arg0: i32, %arg1: i32) -> (i32, i32, i32) {
    %c0_i32 = arith.constant 0 : i32
    %c0_i32_0 = arith.constant 0 : i32
    return %arg0, %c0_i32, %arg1 : i32, i32, i32
  }
  func.func @transform_1(%arg0: i32, %arg1: i32) -> (i32, i32) {
    %c0_i32 = arith.constant 0 : i32
    %c0_i32_0 = arith.constant 0 : i32
    %c0_i32_1 = arith.constant 0 : i32
    return %c0_i32, %c0_i32_0 : i32, i32
  }
  func.func @transform_2(%arg0: i32, %arg1: i32) -> (i32, i32) {
    %c0_i32 = arith.constant 0 : i32
    %c0_i32_0 = arith.constant 0 : i32
    %c0_i32_1 = arith.constant 0 : i32
    return %c0_i32, %c0_i32_0 : i32, i32
  }
  func.func @transform_3(%arg0: i32, %arg1: i32) -> (i32, i32) {
    %c0_i32 = arith.constant 0 : i32
    %c0_i32_0 = arith.constant 0 : i32
    %c0_i32_1 = arith.constant 0 : i32
    return %c0_i32, %c0_i32_0 : i32, i32
  }
  func.func @transform_4(%arg0: i32, %arg1: i32) -> (i32, i32, i32) {
    %c0_i32 = arith.constant 0 : i32
    %c0_i32_0 = arith.constant 0 : i32
    return %arg0, %c0_i32, %arg1 : i32, i32, i32
  }
}

module attributes {stable_mosaic.version = 11 : i64} {
  func.func @_bn_relu_conv_kernel(%arg0: i32, %arg1: i32, %arg2: memref<1x64x4xf32, #tpu.memory_space<vmem>>, %arg3: memref<64x1xf32, #tpu.memory_space<vmem>>, %arg4: memref<64x1xf32, #tpu.memory_space<vmem>>, %arg5: memref<32x64xbf16, #tpu.memory_space<vmem>>, %arg6: memref<1x32x4xbf16, #tpu.memory_space<vmem>>) attributes {dimension_semantics = [#tpu.dimension_semantics<parallel>, #tpu.dimension_semantics<parallel>], iteration_bounds = array<i64: 2, 1>, scalar_prefetch = 0 : i64, scratch_operands = 0 : i64, tpu.core_type = #tpu.core_type<tc>, window_params = [{transform_indices = @transform_0, window_bounds = array<i64: 1, 64, 4>}, {pipeline_mode = #tpu.pipeline_mode<synchronous>, transform_indices = @transform_1, window_bounds = array<i64: 64, 1>}, {pipeline_mode = #tpu.pipeline_mode<synchronous>, transform_indices = @transform_2, window_bounds = array<i64: 64, 1>}, {pipeline_mode = #tpu.pipeline_mode<synchronous>, transform_indices = @transform_3, window_bounds = array<i64: 32, 64>}, {transform_indices = @transform_4, window_bounds = array<i64: 1, 32, 4>}]} {
    %c0 = arith.constant 0 : index
    %c0_0 = arith.constant 0 : index
    %c0_1 = arith.constant 0 : index
    %0 = vector.load %arg2[%c0, %c0_0, %c0_1] : memref<1x64x4xf32, #tpu.memory_space<vmem>>, vector<1x64x4xf32>
    %1 = vector.shape_cast %0 : vector<1x64x4xf32> to vector<64x4xf32>
    %c0_2 = arith.constant 0 : index
    %c0_3 = arith.constant 0 : index
    %2 = vector.load %arg3[%c0_2, %c0_3] : memref<64x1xf32, #tpu.memory_space<vmem>>, vector<64x1xf32>
    %3 = vector.broadcast %2 : vector<64x1xf32> to vector<64x4xf32>
    %4 = arith.mulf %1, %3 : vector<64x4xf32>
    %c0_4 = arith.constant 0 : index
    %c0_5 = arith.constant 0 : index
    %5 = vector.load %arg4[%c0_4, %c0_5] : memref<64x1xf32, #tpu.memory_space<vmem>>, vector<64x1xf32>
    %6 = vector.broadcast %5 : vector<64x1xf32> to vector<64x4xf32>
    %7 = arith.addf %4, %6 : vector<64x4xf32>
    %cst = arith.constant 0.000000e+00 : f32
    %8 = vector.broadcast %cst : f32 to vector<64x4xf32>
    %9 = arith.maximumf %7, %8 : vector<64x4xf32>
    %c0_6 = arith.constant 0 : index
    %c0_7 = arith.constant 0 : index
    %10 = vector.load %arg5[%c0_6, %c0_7] : memref<32x64xbf16, #tpu.memory_space<vmem>>, vector<32x64xbf16>
    %11 = arith.truncf %9 : vector<64x4xf32> to vector<64x4xbf16>
    %cst_8 = arith.constant dense<0.000000e+00> : vector<32x4xf32>
    %12 = tpu.matmul %10, %11, %cst_8 {dimension_numbers = #tpu.dot_dimension_numbers<[1], [0], [0], [1], [0, 0, 1, 1], [], []>} : vector<32x64xbf16>, vector<64x4xbf16>, vector<32x4xf32> -> vector<32x4xf32>
    %13 = arith.truncf %12 : vector<32x4xf32> to vector<32x4xbf16>
    %c0_9 = arith.constant 0 : index
    %c0_10 = arith.constant 0 : index
    %c0_11 = arith.constant 0 : index
    %14 = vector.load %arg6[%c0_9, %c0_10, %c0_11] : memref<1x32x4xbf16, #tpu.memory_space<vmem>>, vector<1x32x4xbf16>
    %15 = vector.shape_cast %14 : vector<1x32x4xbf16> to vector<32x4xbf16>
    %16 = vector.shape_cast %13 : vector<32x4xbf16> to vector<1x32x4xbf16>
    tpu.vector_store %arg6[%c0_9, %c0_10, %c0_11], %16 {strides = array<i32>} : memref<1x32x4xbf16, #tpu.memory_space<vmem>>, vector<1x32x4xbf16>,
    return
  }
  func.func @transform_0(%arg0: i32, %arg1: i32) -> (i32, i32, i32) {
    %c0_i32 = arith.constant 0 : i32
    %c0_i32_0 = arith.constant 0 : i32
    return %arg0, %c0_i32, %arg1 : i32, i32, i32
  }
  func.func @transform_1(%arg0: i32, %arg1: i32) -> (i32, i32) {
    %c0_i32 = arith.constant 0 : i32
    %c0_i32_0 = arith.constant 0 : i32
    %c0_i32_1 = arith.constant 0 : i32
    return %c0_i32, %c0_i32_0 : i32, i32
  }
  func.func @transform_2(%arg0: i32, %arg1: i32) -> (i32, i32) {
    %c0_i32 = arith.constant 0 : i32
    %c0_i32_0 = arith.constant 0 : i32
    %c0_i32_1 = arith.constant 0 : i32
    return %c0_i32, %c0_i32_0 : i32, i32
  }
  func.func @transform_3(%arg0: i32, %arg1: i32) -> (i32, i32) {
    %c0_i32 = arith.constant 0 : i32
    %c0_i32_0 = arith.constant 0 : i32
    %c0_i32_1 = arith.constant 0 : i32
    return %c0_i32, %c0_i32_0 : i32, i32
  }
  func.func @transform_4(%arg0: i32, %arg1: i32) -> (i32, i32, i32) {
    %c0_i32 = arith.constant 0 : i32
    %c0_i32_0 = arith.constant 0 : i32
    return %arg0, %c0_i32, %arg1 : i32, i32, i32
  }
}

module attributes {stable_mosaic.version = 11 : i64} {
  func.func @_bn_relu_conv_kernel(%arg0: i32, %arg1: i32, %arg2: memref<1x64x36xf32, #tpu.memory_space<vmem>>, %arg3: memref<64x1xf32, #tpu.memory_space<vmem>>, %arg4: memref<64x1xf32, #tpu.memory_space<vmem>>, %arg5: memref<32x64xbf16, #tpu.memory_space<vmem>>, %arg6: memref<1x32x36xbf16, #tpu.memory_space<vmem>>) attributes {dimension_semantics = [#tpu.dimension_semantics<parallel>, #tpu.dimension_semantics<parallel>], iteration_bounds = array<i64: 2, 1>, scalar_prefetch = 0 : i64, scratch_operands = 0 : i64, tpu.core_type = #tpu.core_type<tc>, window_params = [{transform_indices = @transform_0, window_bounds = array<i64: 1, 64, 36>}, {pipeline_mode = #tpu.pipeline_mode<synchronous>, transform_indices = @transform_1, window_bounds = array<i64: 64, 1>}, {pipeline_mode = #tpu.pipeline_mode<synchronous>, transform_indices = @transform_2, window_bounds = array<i64: 64, 1>}, {pipeline_mode = #tpu.pipeline_mode<synchronous>, transform_indices = @transform_3, window_bounds = array<i64: 32, 64>}, {transform_indices = @transform_4, window_bounds = array<i64: 1, 32, 36>}]} {
    %c0 = arith.constant 0 : index
    %c0_0 = arith.constant 0 : index
    %c0_1 = arith.constant 0 : index
    %0 = vector.load %arg2[%c0, %c0_0, %c0_1] : memref<1x64x36xf32, #tpu.memory_space<vmem>>, vector<1x64x36xf32>
    %1 = vector.shape_cast %0 : vector<1x64x36xf32> to vector<64x36xf32>
    %c0_2 = arith.constant 0 : index
    %c0_3 = arith.constant 0 : index
    %2 = vector.load %arg3[%c0_2, %c0_3] : memref<64x1xf32, #tpu.memory_space<vmem>>, vector<64x1xf32>
    %3 = vector.broadcast %2 : vector<64x1xf32> to vector<64x36xf32>
    %4 = arith.mulf %1, %3 : vector<64x36xf32>
    %c0_4 = arith.constant 0 : index
    %c0_5 = arith.constant 0 : index
    %5 = vector.load %arg4[%c0_4, %c0_5] : memref<64x1xf32, #tpu.memory_space<vmem>>, vector<64x1xf32>
    %6 = vector.broadcast %5 : vector<64x1xf32> to vector<64x36xf32>
    %7 = arith.addf %4, %6 : vector<64x36xf32>
    %cst = arith.constant 0.000000e+00 : f32
    %8 = vector.broadcast %cst : f32 to vector<64x36xf32>
    %9 = arith.maximumf %7, %8 : vector<64x36xf32>
    %c0_6 = arith.constant 0 : index
    %c0_7 = arith.constant 0 : index
    %10 = vector.load %arg5[%c0_6, %c0_7] : memref<32x64xbf16, #tpu.memory_space<vmem>>, vector<32x64xbf16>
    %11 = arith.truncf %9 : vector<64x36xf32> to vector<64x36xbf16>
    %cst_8 = arith.constant dense<0.000000e+00> : vector<32x36xf32>
    %12 = tpu.matmul %10, %11, %cst_8 {dimension_numbers = #tpu.dot_dimension_numbers<[1], [0], [0], [1], [0, 0, 1, 1], [], []>} : vector<32x64xbf16>, vector<64x36xbf16>, vector<32x36xf32> -> vector<32x36xf32>
    %13 = arith.truncf %12 : vector<32x36xf32> to vector<32x36xbf16>
    %c0_9 = arith.constant 0 : index
    %c0_10 = arith.constant 0 : index
    %c0_11 = arith.constant 0 : index
    %14 = vector.load %arg6[%c0_9, %c0_10, %c0_11] : memref<1x32x36xbf16, #tpu.memory_space<vmem>>, vector<1x32x36xbf16>
    %15 = vector.shape_cast %14 : vector<1x32x36xbf16> to vector<32x36xbf16>
    %16 = vector.shape_cast %13 : vector<32x36xbf16> to vector<1x32x36xbf16>
    tpu.vector_store %arg6[%c0_9, %c0_10, %c0_11], %16 {strides = array<i32>} : memref<1x32x36xbf16, #tpu.memory_space<vmem>>, vector<1x32x36xbf16>,
    return
  }
  func.func @transform_0(%arg0: i32, %arg1: i32) -> (i32, i32, i32) {
    %c0_i32 = arith.constant 0 : i32
    %c0_i32_0 = arith.constant 0 : i32
    return %arg0, %c0_i32, %arg1 : i32, i32, i32
  }
  func.func @transform_1(%arg0: i32, %arg1: i32) -> (i32, i32) {
    %c0_i32 = arith.constant 0 : i32
    %c0_i32_0 = arith.constant 0 : i32
    %c0_i32_1 = arith.constant 0 : i32
    return %c0_i32, %c0_i32_0 : i32, i32
  }
  func.func @transform_2(%arg0: i32, %arg1: i32) -> (i32, i32) {
    %c0_i32 = arith.constant 0 : i32
    %c0_i32_0 = arith.constant 0 : i32
    %c0_i32_1 = arith.constant 0 : i32
    return %c0_i32, %c0_i32_0 : i32, i32
  }
  func.func @transform_3(%arg0: i32, %arg1: i32) -> (i32, i32) {
    %c0_i32 = arith.constant 0 : i32
    %c0_i32_0 = arith.constant 0 : i32
    %c0_i32_1 = arith.constant 0 : i32
    return %c0_i32, %c0_i32_0 : i32, i32
  }
  func.func @transform_4(%arg0: i32, %arg1: i32) -> (i32, i32, i32) {
    %c0_i32 = arith.constant 0 : i32
    %c0_i32_0 = arith.constant 0 : i32
    return %arg0, %c0_i32, %arg1 : i32, i32, i32
  }
}

module attributes {stable_mosaic.version = 11 : i64} {
  func.func @kernel(%arg0: i32, %arg1: i32, %arg2: memref<1x64x256xbf16, #tpu.memory_space<vmem>>, %arg3: memref<1x32x36xbf16, #tpu.memory_space<vmem>>, %arg4: memref<1x32x9xbf16, #tpu.memory_space<vmem>>, %arg5: memref<1x32x4xbf16, #tpu.memory_space<vmem>>, %arg6: memref<36x256xf32, #tpu.memory_space<vmem>>, %arg7: memref<9x256xf32, #tpu.memory_space<vmem>>, %arg8: memref<4x256xf32, #tpu.memory_space<vmem>>, %arg9: memref<64x1xf32, #tpu.memory_space<vmem>>, %arg10: memref<32x1xf32, #tpu.memory_space<vmem>>, %arg11: memref<32x1xf32, #tpu.memory_space<vmem>>, %arg12: memref<32x1xf32, #tpu.memory_space<vmem>>, %arg13: memref<64x1xf32, #tpu.memory_space<vmem>>, %arg14: memref<32x1xf32, #tpu.memory_space<vmem>>, %arg15: memref<32x1xf32, #tpu.memory_space<vmem>>, %arg16: memref<32x1xf32, #tpu.memory_space<vmem>>, %arg17: memref<32x160xbf16, #tpu.memory_space<vmem>>, %arg18: memref<1x32x256xf32, #tpu.memory_space<vmem>>, %arg19: memref<160x256xbf16, #tpu.memory_space<vmem>>) attributes {dimension_semantics = [#tpu.dimension_semantics<parallel>, #tpu.dimension_semantics<parallel>], iteration_bounds = array<i64: 2, 1>, scalar_prefetch = 0 : i64, scratch_operands = 1 : i64, tpu.core_type = #tpu.core_type<tc>, window_params = [{transform_indices = @transform_0, window_bounds = array<i64: 1, 64, 256>}, {transform_indices = @transform_1, window_bounds = array<i64: 1, 32, 36>}, {transform_indices = @transform_2, window_bounds = array<i64: 1, 32, 9>}, {transform_indices = @transform_3, window_bounds = array<i64: 1, 32, 4>}, {transform_indices = @transform_4, window_bounds = array<i64: 36, 256>}, {transform_indices = @transform_5, window_bounds = array<i64: 9, 256>}, {transform_indices = @transform_6, window_bounds = array<i64: 4, 256>}, {pipeline_mode = #tpu.pipeline_mode<synchronous>, transform_indices = @transform_7, window_bounds = array<i64: 64, 1>}, {pipeline_mode = #tpu.pipeline_mode<synchronous>, transform_indices = @transform_8, window_bounds = array<i64: 32, 1>}, {pipeline_mode = #tpu.pipeline_mode<synchronous>, transform_indices = @transform_9, window_bounds = array<i64: 32, 1>}, {pipeline_mode = #tpu.pipeline_mode<synchronous>, transform_indices = @transform_10, window_bounds = array<i64: 32, 1>}, {pipeline_mode = #tpu.pipeline_mode<synchronous>, transform_indices = @transform_11, window_bounds = array<i64: 64, 1>}, {pipeline_mode = #tpu.pipeline_mode<synchronous>, transform_indices = @transform_12, window_bounds = array<i64: 32, 1>}, {pipeline_mode = #tpu.pipeline_mode<synchronous>, transform_indices = @transform_13, window_bounds = array<i64: 32, 1>}, {pipeline_mode = #tpu.pipeline_mode<synchronous>, transform_indices = @transform_14, window_bounds = array<i64: 32, 1>}, {pipeline_mode = #tpu.pipeline_mode<synchronous>, transform_indices = @transform_15, window_bounds = array<i64: 32, 160>}, {transform_indices = @transform_16, window_bounds = array<i64: 1, 32, 256>}]} {
    %c0 = arith.constant 0 : index
    %c0_0 = arith.constant 0 : index
    %c0_1 = arith.constant 0 : index
    %0 = vector.load %arg2[%c0, %c0_0, %c0_1] : memref<1x64x256xbf16, #tpu.memory_space<vmem>>, vector<1x64x256xbf16>
    %1 = vector.shape_cast %0 : vector<1x64x256xbf16> to vector<64x256xbf16>
    %2 = arith.extf %1 : vector<64x256xbf16> to vector<64x256xf32>
    %c0_2 = arith.constant 0 : index
    %c0_3 = arith.constant 0 : index
    %3 = vector.load %arg9[%c0_2, %c0_3] : memref<64x1xf32, #tpu.memory_space<vmem>>, vector<64x1xf32>
    %4 = vector.broadcast %3 : vector<64x1xf32> to vector<64x256xf32>
    %5 = arith.mulf %2, %4 : vector<64x256xf32>
    %c0_4 = arith.constant 0 : index
    %c0_5 = arith.constant 0 : index
    %6 = vector.load %arg13[%c0_4, %c0_5] : memref<64x1xf32, #tpu.memory_space<vmem>>, vector<64x1xf32>
    %7 = vector.broadcast %6 : vector<64x1xf32> to vector<64x256xf32>
    %8 = arith.addf %5, %7 : vector<64x256xf32>
    %cst = arith.constant 0.000000e+00 : f32
    %9 = vector.broadcast %cst : f32 to vector<64x256xf32>
    %10 = arith.maximumf %8, %9 : vector<64x256xf32>
    %11 = arith.truncf %10 : vector<64x256xf32> to vector<64x256xbf16>
    %c0_6 = arith.constant 0 : index
    %c0_7 = arith.constant 0 : index
    %12 = vector.load %arg19[%c0_6, %c0_7] : memref<160x256xbf16, #tpu.memory_space<vmem>>, vector<64x256xbf16>
    tpu.vector_store %arg19[%c0_6, %c0_7], %11 {strides = array<i32>} : memref<160x256xbf16, #tpu.memory_space<vmem>>, vector<64x256xbf16>,
    %c0_8 = arith.constant 0 : index
    %c0_9 = arith.constant 0 : index
    %c0_10 = arith.constant 0 : index
    %13 = vector.load %arg3[%c0_8, %c0_9, %c0_10] : memref<1x32x36xbf16, #tpu.memory_space<vmem>>, vector<1x32x36xbf16>
    %14 = vector.shape_cast %13 : vector<1x32x36xbf16> to vector<32x36xbf16>
    %15 = arith.extf %14 : vector<32x36xbf16> to vector<32x36xf32>
    %c0_11 = arith.constant 0 : index
    %c0_12 = arith.constant 0 : index
    %16 = vector.load %arg6[%c0_11, %c0_12] : memref<36x256xf32, #tpu.memory_space<vmem>>, vector<36x256xf32>
    %cst_13 = arith.constant dense<0.000000e+00> : vector<32x256xf32>
    %17 = tpu.matmul %15, %16, %cst_13 {dimension_numbers = #tpu.dot_dimension_numbers<[1], [0], [0], [1], [0, 0, 1, 1], [], []>} : vector<32x36xf32>, vector<36x256xf32>, vector<32x256xf32> -> vector<32x256xf32>
    %c0_14 = arith.constant 0 : index
    %c0_15 = arith.constant 0 : index
    %18 = vector.load %arg10[%c0_14, %c0_15] : memref<32x1xf32, #tpu.memory_space<vmem>>, vector<32x1xf32>
    %19 = vector.broadcast %18 : vector<32x1xf32> to vector<32x256xf32>
    %20 = arith.mulf %17, %19 : vector<32x256xf32>
    %c0_16 = arith.constant 0 : index
    %c0_17 = arith.constant 0 : index
    %21 = vector.load %arg14[%c0_16, %c0_17] : memref<32x1xf32, #tpu.memory_space<vmem>>, vector<32x1xf32>
    %22 = vector.broadcast %21 : vector<32x1xf32> to vector<32x256xf32>
    %23 = arith.addf %20, %22 : vector<32x256xf32>
    %cst_18 = arith.constant 0.000000e+00 : f32
    %24 = vector.broadcast %cst_18 : f32 to vector<32x256xf32>
    %25 = arith.maximumf %23, %24 : vector<32x256xf32>
    %26 = arith.truncf %25 : vector<32x256xf32> to vector<32x256xbf16>
    %c64 = arith.constant 64 : index
    %c0_19 = arith.constant 0 : index
    %27 = vector.load %arg19[%c64, %c0_19] : memref<160x256xbf16, #tpu.memory_space<vmem>>, vector<32x256xbf16>
    tpu.vector_store %arg19[%c64, %c0_19], %26 {strides = array<i32>} : memref<160x256xbf16, #tpu.memory_space<vmem>>, vector<32x256xbf16>,
    %c0_20 = arith.constant 0 : index
    %c0_21 = arith.constant 0 : index
    %c0_22 = arith.constant 0 : index
    %28 = vector.load %arg4[%c0_20, %c0_21, %c0_22] : memref<1x32x9xbf16, #tpu.memory_space<vmem>>, vector<1x32x9xbf16>
    %29 = vector.shape_cast %28 : vector<1x32x9xbf16> to vector<32x9xbf16>
    %30 = arith.extf %29 : vector<32x9xbf16> to vector<32x9xf32>
    %c0_23 = arith.constant 0 : index
    %c0_24 = arith.constant 0 : index
    %31 = vector.load %arg7[%c0_23, %c0_24] : memref<9x256xf32, #tpu.memory_space<vmem>>, vector<9x256xf32>
    %cst_25 = arith.constant dense<0.000000e+00> : vector<32x256xf32>
    %32 = tpu.matmul %30, %31, %cst_25 {dimension_numbers = #tpu.dot_dimension_numbers<[1], [0], [0], [1], [0, 0, 1, 1], [], []>} : vector<32x9xf32>, vector<9x256xf32>, vector<32x256xf32> -> vector<32x256xf32>
    %c0_26 = arith.constant 0 : index
    %c0_27 = arith.constant 0 : index
    %33 = vector.load %arg11[%c0_26, %c0_27] : memref<32x1xf32, #tpu.memory_space<vmem>>, vector<32x1xf32>
    %34 = vector.broadcast %33 : vector<32x1xf32> to vector<32x256xf32>
    %35 = arith.mulf %32, %34 : vector<32x256xf32>
    %c0_28 = arith.constant 0 : index
    %c0_29 = arith.constant 0 : index
    %36 = vector.load %arg15[%c0_28, %c0_29] : memref<32x1xf32, #tpu.memory_space<vmem>>, vector<32x1xf32>
    %37 = vector.broadcast %36 : vector<32x1xf32> to vector<32x256xf32>
    %38 = arith.addf %35, %37 : vector<32x256xf32>
    %cst_30 = arith.constant 0.000000e+00 : f32
    %39 = vector.broadcast %cst_30 : f32 to vector<32x256xf32>
    %40 = arith.maximumf %38, %39 : vector<32x256xf32>
    %41 = arith.truncf %40 : vector<32x256xf32> to vector<32x256xbf16>
    %c96 = arith.constant 96 : index
    %c0_31 = arith.constant 0 : index
    %42 = vector.load %arg19[%c96, %c0_31] : memref<160x256xbf16, #tpu.memory_space<vmem>>, vector<32x256xbf16>
    tpu.vector_store %arg19[%c96, %c0_31], %41 {strides = array<i32>} : memref<160x256xbf16, #tpu.memory_space<vmem>>, vector<32x256xbf16>,
    %c0_32 = arith.constant 0 : index
    %c0_33 = arith.constant 0 : index
    %c0_34 = arith.constant 0 : index
    %43 = vector.load %arg5[%c0_32, %c0_33, %c0_34] : memref<1x32x4xbf16, #tpu.memory_space<vmem>>, vector<1x32x4xbf16>
    %44 = vector.shape_cast %43 : vector<1x32x4xbf16> to vector<32x4xbf16>
    %45 = arith.extf %44 : vector<32x4xbf16> to vector<32x4xf32>
    %c0_35 = arith.constant 0 : index
    %c0_36 = arith.constant 0 : index
    %46 = vector.load %arg8[%c0_35, %c0_36] : memref<4x256xf32, #tpu.memory_space<vmem>>, vector<4x256xf32>
    %cst_37 = arith.constant dense<0.000000e+00> : vector<32x256xf32>
    %47 = tpu.matmul %45, %46, %cst_37 {dimension_numbers = #tpu.dot_dimension_numbers<[1], [0], [0], [1], [0, 0, 1, 1], [], []>} : vector<32x4xf32>, vector<4x256xf32>, vector<32x256xf32> -> vector<32x256xf32>
    %c0_38 = arith.constant 0 : index
    %c0_39 = arith.constant 0 : index
    %48 = vector.load %arg12[%c0_38, %c0_39] : memref<32x1xf32, #tpu.memory_space<vmem>>, vector<32x1xf32>
    %49 = vector.broadcast %48 : vector<32x1xf32> to vector<32x256xf32>
    %50 = arith.mulf %47, %49 : vector<32x256xf32>
    %c0_40 = arith.constant 0 : index
    %c0_41 = arith.constant 0 : index
    %51 = vector.load %arg16[%c0_40, %c0_41] : memref<32x1xf32, #tpu.memory_space<vmem>>, vector<32x1xf32>
    %52 = vector.broadcast %51 : vector<32x1xf32> to vector<32x256xf32>
    %53 = arith.addf %50, %52 : vector<32x256xf32>
    %cst_42 = arith.constant 0.000000e+00 : f32
    %54 = vector.broadcast %cst_42 : f32 to vector<32x256xf32>
    %55 = arith.maximumf %53, %54 : vector<32x256xf32>
    %56 = arith.truncf %55 : vector<32x256xf32> to vector<32x256xbf16>
    %c128 = arith.constant 128 : index
    %c0_43 = arith.constant 0 : index
    %57 = vector.load %arg19[%c128, %c0_43] : memref<160x256xbf16, #tpu.memory_space<vmem>>, vector<32x256xbf16>
    tpu.vector_store %arg19[%c128, %c0_43], %56 {strides = array<i32>} : memref<160x256xbf16, #tpu.memory_space<vmem>>, vector<32x256xbf16>,
    %c0_44 = arith.constant 0 : index
    %c0_45 = arith.constant 0 : index
    %58 = vector.load %arg17[%c0_44, %c0_45] : memref<32x160xbf16, #tpu.memory_space<vmem>>, vector<32x160xbf16>
    %c0_46 = arith.constant 0 : index
    %c0_47 = arith.constant 0 : index
    %59 = vector.load %arg19[%c0_46, %c0_47] : memref<160x256xbf16, #tpu.memory_space<vmem>>, vector<160x256xbf16>
    %cst_48 = arith.constant dense<0.000000e+00> : vector<32x256xf32>
    %60 = tpu.matmul %58, %59, %cst_48 {dimension_numbers = #tpu.dot_dimension_numbers<[1], [0], [0], [1], [0, 0, 1, 1], [], []>} : vector<32x160xbf16>, vector<160x256xbf16>, vector<32x256xf32> -> vector<32x256xf32>
    %c0_49 = arith.constant 0 : index
    %c0_50 = arith.constant 0 : index
    %c0_51 = arith.constant 0 : index
    %61 = vector.load %arg18[%c0_49, %c0_50, %c0_51] : memref<1x32x256xf32, #tpu.memory_space<vmem>>, vector<1x32x256xf32>
    %62 = vector.shape_cast %61 : vector<1x32x256xf32> to vector<32x256xf32>
    %63 = vector.shape_cast %60 : vector<32x256xf32> to vector<1x32x256xf32>
    tpu.vector_store %arg18[%c0_49, %c0_50, %c0_51], %63 {strides = array<i32>} : memref<1x32x256xf32, #tpu.memory_space<vmem>>, vector<1x32x256xf32>,
    return
  }
  func.func @transform_0(%arg0: i32, %arg1: i32) -> (i32, i32, i32) {
    %c0_i32 = arith.constant 0 : i32
    %c0_i32_0 = arith.constant 0 : i32
    return %arg0, %c0_i32, %arg1 : i32, i32, i32
  }
  func.func @transform_1(%arg0: i32, %arg1: i32) -> (i32, i32, i32) {
    %c0_i32 = arith.constant 0 : i32
    %c0_i32_0 = arith.constant 0 : i32
    %c0_i32_1 = arith.constant 0 : i32
    return %arg0, %c0_i32, %c0_i32_0 : i32, i32, i32
  }
  func.func @transform_2(%arg0: i32, %arg1: i32) -> (i32, i32, i32) {
    %c0_i32 = arith.constant 0 : i32
    %c0_i32_0 = arith.constant 0 : i32
    %c0_i32_1 = arith.constant 0 : i32
    return %arg0, %c0_i32, %c0_i32_0 : i32, i32, i32
  }
  func.func @transform_3(%arg0: i32, %arg1: i32) -> (i32, i32, i32) {
    %c0_i32 = arith.constant 0 : i32
    %c0_i32_0 = arith.constant 0 : i32
    %c0_i32_1 = arith.constant 0 : i32
    return %arg0, %c0_i32, %c0_i32_0 : i32, i32, i32
  }
  func.func @transform_4(%arg0: i32, %arg1: i32) -> (i32, i32) {
    %c0_i32 = arith.constant 0 : i32
    %c0_i32_0 = arith.constant 0 : i32
    return %c0_i32, %arg1 : i32, i32
  }
  func.func @transform_5(%arg0: i32, %arg1: i32) -> (i32, i32) {
    %c0_i32 = arith.constant 0 : i32
    %c0_i32_0 = arith.constant 0 : i32
    return %c0_i32, %arg1 : i32, i32
  }
  func.func @transform_6(%arg0: i32, %arg1: i32) -> (i32, i32) {
    %c0_i32 = arith.constant 0 : i32
    %c0_i32_0 = arith.constant 0 : i32
    return %c0_i32, %arg1 : i32, i32
  }
  func.func @transform_7(%arg0: i32, %arg1: i32) -> (i32, i32) {
    %c0_i32 = arith.constant 0 : i32
    %c0_i32_0 = arith.constant 0 : i32
    %c0_i32_1 = arith.constant 0 : i32
    return %c0_i32, %c0_i32_0 : i32, i32
  }
  func.func @transform_8(%arg0: i32, %arg1: i32) -> (i32, i32) {
    %c0_i32 = arith.constant 0 : i32
    %c0_i32_0 = arith.constant 0 : i32
    %c0_i32_1 = arith.constant 0 : i32
    return %c0_i32, %c0_i32_0 : i32, i32
  }
  func.func @transform_9(%arg0: i32, %arg1: i32) -> (i32, i32) {
    %c0_i32 = arith.constant 0 : i32
    %c0_i32_0 = arith.constant 0 : i32
    %c0_i32_1 = arith.constant 0 : i32
    return %c0_i32, %c0_i32_0 : i32, i32
  }
  func.func @transform_10(%arg0: i32, %arg1: i32) -> (i32, i32) {
    %c0_i32 = arith.constant 0 : i32
    %c0_i32_0 = arith.constant 0 : i32
    %c0_i32_1 = arith.constant 0 : i32
    return %c0_i32, %c0_i32_0 : i32, i32
  }
  func.func @transform_11(%arg0: i32, %arg1: i32) -> (i32, i32) {
    %c0_i32 = arith.constant 0 : i32
    %c0_i32_0 = arith.constant 0 : i32
    %c0_i32_1 = arith.constant 0 : i32
    return %c0_i32, %c0_i32_0 : i32, i32
  }
  func.func @transform_12(%arg0: i32, %arg1: i32) -> (i32, i32) {
    %c0_i32 = arith.constant 0 : i32
    %c0_i32_0 = arith.constant 0 : i32
    %c0_i32_1 = arith.constant 0 : i32
    return %c0_i32, %c0_i32_0 : i32, i32
  }
  func.func @transform_13(%arg0: i32, %arg1: i32) -> (i32, i32) {
    %c0_i32 = arith.constant 0 : i32
    %c0_i32_0 = arith.constant 0 : i32
    %c0_i32_1 = arith.constant 0 : i32
    return %c0_i32, %c0_i32_0 : i32, i32
  }
  func.func @transform_14(%arg0: i32, %arg1: i32) -> (i32, i32) {
    %c0_i32 = arith.constant 0 : i32
    %c0_i32_0 = arith.constant 0 : i32
    %c0_i32_1 = arith.constant 0 : i32
    return %c0_i32, %c0_i32_0 : i32, i32
  }
  func.func @transform_15(%arg0: i32, %arg1: i32) -> (i32, i32) {
    %c0_i32 = arith.constant 0 : i32
    %c0_i32_0 = arith.constant 0 : i32
    %c0_i32_1 = arith.constant 0 : i32
    return %c0_i32, %c0_i32_0 : i32, i32
  }
  func.func @transform_16(%arg0: i32, %arg1: i32) -> (i32, i32, i32) {
    %c0_i32 = arith.constant 0 : i32
    %c0_i32_0 = arith.constant 0 : i32
    return %arg0, %c0_i32, %arg1 : i32, i32, i32
  }
}

</mosaic_0001>

<llo_original>
// kernel: a_call__.5
$region0: #{a_call__.5}
  #allocation0 [shape = 'u32[]', space=smem, size = 0x4, offset = 0x4, fixed_abs, tag = 'smem constant byte address 0x4 - core index']
  #allocation1 [shape = 'u32[72,128]{1,0:T(1,128)}', space=vmem, size = 0x9000, scoped, tag = 'internal scratch']
  %s0 = inlined_call_operand.vmem [shape: f32[2,4,256], index: 0, kind: input, shape index: {}]
  %s1 = inlined_call_operand.vmem [shape: f32[4,1], index: 1, kind: input, shape index: {}]
  %s2 = inlined_call_operand.vmem [shape: f32[4,1], index: 2, kind: input, shape index: {}]
  %s3 = inlined_call_operand.vmem [shape: bf16[64,4], index: 3, kind: input, shape index: {}]
  %s4 = inlined_call_operand.vmem [shape: bf16[2,64,256], index: 4, kind: output, shape index: {}]
  %s5 = sld [smem:[#allocation0]]
  $region49: #{a_call__.5} parent=0
    _
  %s7 = ssub.s32 1, %s5
  %s8 = scalar_select 0, %s7, %s5
  loop: start=0, step=1, limit=4
  $region2: #{a_call__.5} parent=0 // loop_pre_header
    _
  $region3: #{a_call__.5} parent=0 // loop_header
    %s10 = sphi 0, %s14
    %p11 = scmp.ge.s32.totalorder %s10, 4
    %s17 = sphi 0, %s29
    %s18 = sphi 0, %s25
    %s19 = sphi 0, %s17
    %s20 = sphi 0, %s18
    %s21 = sphi 0, %s19
    %s22 = sphi 0, %s20
    %s34 = sphi 0, %s36
    %s37 = sphi 0, %s34
    %s38 = sphi 0, %s37
    %s54 = sphi 0, %s38
    %s58 = sphi 0, %s58
    %s60 = sphi 0, %s58
    %s61 = sphi 0, %s60
    %s75 = sphi 0, %s61
    %s79 = sphi 0, %s79
    %s81 = sphi 0, %s79
    %s82 = sphi 0, %s81
    %s96 = sphi 0, %s82
    %s100 = sphi 0, %s100
    %s102 = sphi 0, %s100
    %s103 = sphi 0, %s102
    %s117 = sphi 0, %s103
    %s125 = sphi 0, %s127
    %s128 = sphi 0, %s125
    %s129 = sphi 0, %s128
    %s145 = sphi 0, %s129
  $region4: #{a_call__.5} parent=0 // loop_header_branch
    %13 = sbr.rel (%p11) target = $region8
  $region5: #{a_call__.5} parent=0 // loop_body
    %s15 = ssub.s32 %s10, 1
    %s16 = ssub.s32 %s10, 2
    %s23 = sadd.s32 1, %s18
    %p24 = scmp.ge.s32.totalorder %s23, 1
    %s25 = scalar_select %p24, 0, %s23
    %s26 = sadd.s32 1, %s17
    %s27 = scalar_select %p24, %s26, %s17
    %p28 = scmp.ge.s32.totalorder %s27, 2
    %s29 = scalar_select %p28, 0, %s27
    %s30 = ssub.s32 %s17, %s29
    %s31 = ssub.s32 %s18, %s25
    %s32 = sor.u32 %s30, %s31
    %p33 = scmp.eq.s32.totalorder %s32, 0
    %s35 = sadd.s32 %s34, 1
    %s36 = scalar_select %p33, %s34, %s35
    %p39 = pneg %p33
    %p40 = scmp.eq.s32.totalorder %s10, 1
    %p41 = por %p39, %p40
    %p42 = scmp.ne.s32.totalorder %s34, %s37
    %p43 = scmp.eq.s32.totalorder %s10, 0
    %p44 = por %p42, %p43
    %p45 = scmp.ne.s32.totalorder %s34, %s37
    %p46 = scmp.eq.s32.totalorder %s15, 1
    %p47 = por %p45, %p46
    %p48 = scmp.ne.s32.totalorder %s37, %s38
    %p49 = scmp.eq.s32.totalorder %s15, 0
    %p50 = por %p48, %p49
    %p51 = scmp.ne.s32.totalorder %s37, %s38
    %p52 = scmp.eq.s32.totalorder %s16, 1
    %p53 = por %p51, %p52
    %p55 = scmp.ne.s32.totalorder %s38, %s54
    %p56 = scmp.eq.s32.totalorder %s16, 0
    %p57 = por %p55, %p56
    %s59 = sadd.s32 %s58, 1
    %p62 = scmp.eq.s32.totalorder %s10, 1
    %p63 = scmp.ne.s32.totalorder %s58, %s60
    %p64 = scmp.eq.s32.totalorder %s10, 0
    %p65 = por %p63, %p64
    %p66 = scmp.ne.s32.totalorder %s58, %s60
    %p67 = scmp.eq.s32.totalorder %s15, 1
    %p68 = por %p66, %p67
    %p69 = scmp.ne.s32.totalorder %s60, %s61
    %p70 = scmp.eq.s32.totalorder %s15, 0
    %p71 = por %p69, %p70
    %p72 = scmp.ne.s32.totalorder %s60, %s61
    %p73 = scmp.eq.s32.totalorder %s16, 1
    %p74 = por %p72, %p73
    %p76 = scmp.ne.s32.totalorder %s61, %s75
    %p77 = scmp.eq.s32.totalorder %s16, 0
    %p78 = por %p76, %p77
    %s80 = sadd.s32 %s79, 1
    %p83 = scmp.eq.s32.totalorder %s10, 1
    %p84 = scmp.ne.s32.totalorder %s79, %s81
    %p85 = scmp.eq.s32.totalorder %s10, 0
    %p86 = por %p84, %p85
    %p87 = scmp.ne.s32.totalorder %s79, %s81
    %p88 = scmp.eq.s32.totalorder %s15, 1
    %p89 = por %p87, %p88
    %p90 = scmp.ne.s32.totalorder %s81, %s82
    %p91 = scmp.eq.s32.totalorder %s15, 0
    %p92 = por %p90, %p91
    %p93 = scmp.ne.s32.totalorder %s81, %s82
    %p94 = scmp.eq.s32.totalorder %s16, 1
    %p95 = por %p93, %p94
    %p97 = scmp.ne.s32.totalorder %s82, %s96
    %p98 = scmp.eq.s32.totalorder %s16, 0
    %p99 = por %p97, %p98
    %s101 = sadd.s32 %s100, 1
    %p104 = scmp.eq.s32.totalorder %s10, 1
    %p105 = scmp.ne.s32.totalorder %s100, %s102
    %p106 = scmp.eq.s32.totalorder %s10, 0
    %p107 = por %p105, %p106
    %p108 = scmp.ne.s32.totalorder %s100, %s102
    %p109 = scmp.eq.s32.totalorder %s15, 1
    %p110 = por %p108, %p109
    %p111 = scmp.ne.s32.totalorder %s102, %s103
    %p112 = scmp.eq.s32.totalorder %s15, 0
    %p113 = por %p111, %p112
    %p114 = scmp.ne.s32.totalorder %s102, %s103
    %p115 = scmp.eq.s32.totalorder %s16, 1
    %p116 = por %p114, %p115
    %p118 = scmp.ne.s32.totalorder %s103, %s117
    %p119 = scmp.eq.s32.totalorder %s16, 0
    %p120 = por %p118, %p119
    %s121 = ssub.s32 %s17, %s29
    %s122 = ssub.s32 %s18, %s25
    %s123 = sor.u32 %s121, %s122
    %p124 = scmp.eq.s32.totalorder %s123, 0
    %s126 = sadd.s32 %s125, 1
    %s127 = scalar_select %p124, %s125, %s126
    %p130 = pneg %p124
    %p131 = scmp.eq.s32.totalorder %s10, 1
    %p132 = por %p130, %p131
    %p133 = scmp.ne.s32.totalorder %s125, %s128
    %p134 = scmp.eq.s32.totalorder %s10, 0
    %p135 = por %p133, %p134
    %p136 = scmp.ne.s32.totalorder %s125, %s128
    %p137 = scmp.eq.s32.totalorder %s15, 1
    %p138 = por %p136, %p137
    %p139 = scmp.ne.s32.totalorder %s128, %s129
    %p140 = scmp.eq.s32.totalorder %s15, 0
    %p141 = por %p139, %p140
    %p142 = scmp.ne.s32.totalorder %s128, %s129
    %p143 = scmp.eq.s32.totalorder %s16, 1
    %p144 = por %p142, %p143
    %p146 = scmp.ne.s32.totalorder %s129, %s145
    %p147 = scmp.eq.s32.totalorder %s16, 0
    %p148 = por %p146, %p147
    %p149 = scmp.le.s32.totalorder 1, %s10
    %p150 = scmp.lt.s32.totalorder %s10, 3
    %p151 = pnand %p149, %p150
    %p152 = pneg %p151
    // Predicated region
    $region9: #{a_call__.5} parent=5 // pred_check
      _
    $region10: #{a_call__.5} parent=5 // pred_check_branch
      %154 = sbr.rel (%p151) target = $region12
    $region11: #{a_call__.5} parent=5 // pred_region
      %s155 = ssub.s32 %s10, 1
      // Predicated region
      $region13: #{a_call__.5} parent=11 // pred_check
        %p156 = pneg %p71
      $region14: #{a_call__.5} parent=11 // pred_check_branch
        %158 = sbr.rel (%p156) target = $region16
      $region15: #{a_call__.5} parent=11 // pred_region
        _
      $region16: #{a_call__.5} parent=11 // pred_fallthru
        _
      // Predicated region
      $region17: #{a_call__.5} parent=11 // pred_check
        %p159 = pneg %p92
      $region18: #{a_call__.5} parent=11 // pred_check_branch
        %161 = sbr.rel (%p159) target = $region20
      $region19: #{a_call__.5} parent=11 // pred_region
        _
      $region20: #{a_call__.5} parent=11 // pred_fallthru
        _
      // Predicated region
      $region21: #{a_call__.5} parent=11 // pred_check
        %p162 = pneg %p113
      $region22: #{a_call__.5} parent=11 // pred_check_branch
        %164 = sbr.rel (%p162) target = $region24
      $region23: #{a_call__.5} parent=11 // pred_region
        _
      $region24: #{a_call__.5} parent=11 // pred_fallthru
        _
    $region12: #{a_call__.5} parent=5 // pred_fallthru
      _
    %p165 = scmp.lt.s32.totalorder %s10, 2
    // Predicated region
    $region25: #{a_call__.5} parent=5 // pred_check
      %p166 = pneg %p165
    $region26: #{a_call__.5} parent=5 // pred_check_branch
      %168 = sbr.rel (%p166) target = $region28
    $region27: #{a_call__.5} parent=5 // pred_region
      // Predicated region
      $region29: #{a_call__.5} parent=27 // pred_check
        %p169 = pneg %p44
      $region30: #{a_call__.5} parent=27 // pred_check_branch
        %171 = sbr.rel (%p169) target = $region32
      $region31: #{a_call__.5} parent=27 // pred_region
        %s172 = smul.u32 2, %s18
        %p173 = scmp.lt.s32.totalorder %s17, 1
        %s174 = scalar_select %p173, %s17, 1
        %p175 = scmp.lt.s32.totalorder %s172, 1
        %s176 = scalar_select %p175, %s172, 1
        %s177 = smul.addr %s174, 2
        %s178 = sadd.s32 %s176, %s177
        %s179 = smul.addr %s178, 4
        %s180 = scalar_lea.vmem %s0, %s179
        %s181 = smul.u32 2, %s18
      $region32: #{a_call__.5} parent=27 // pred_fallthru
        _
    $region28: #{a_call__.5} parent=5 // pred_fallthru
      _
    %p182 = scmp.le.s32.totalorder 1, %s10
    %p183 = scmp.lt.s32.totalorder %s10, 3
    %p184 = pnand %p182, %p183
    %p185 = pneg %p184
    // Predicated region
    $region33: #{a_call__.5} parent=5 // pred_check
      _
    $region34: #{a_call__.5} parent=5 // pred_check_branch
      %187 = sbr.rel (%p184) target = $region36
    $region35: #{a_call__.5} parent=5 // pred_region
      %s188 = ssub.s32 %s10, 1
      %s189 = smul.u32 2, %s20
      %p190 = scmp.lt.s32.totalorder %s19, 1
      %s191 = scalar_select %p190, %s19, 1
      %p192 = scmp.lt.s32.totalorder %s189, 1
      %s193 = scalar_select %p192, %s189, 1
      %s194 = smul.addr %s191, 2
      %s195 = sadd.s32 %s193, %s194
      %s196 = smul.addr %s195, 4
      %s197 = scalar_lea.vmem %s0, %s196
      %p198 = pneg %p50
      %p199 = pneg %p47
      %p200 = pneg %p71
      %p201 = pneg %p68
      %p202 = pneg %p92
      %p203 = pneg %p89
      %p204 = pneg %p113
      %p205 = pneg %p110
      %p206 = pneg %p141
      %p207 = pneg %p138
      %s208 = smul.u32 2, %s20
      %p209 = scmp.lt.s32.totalorder %s19, 1
      %s210 = scalar_select %p209, %s19, 1
      %p211 = scmp.lt.s32.totalorder %s208, 1
      %s212 = scalar_select %p211, %s208, 1
      %s213 = smul.addr %s210, 16
      %s214 = sadd.s32 %s212, %s213
      %s215 = smul.addr %s214, 4
      %s216 = scalar_lea.vmem %s4, %s215
      %s217 = smul.u32 2, %s20
      %p218 = scmp.lt.s32.totalorder %s19, 1
      %s219 = scalar_select %p218, %s19, 1
      %p220 = scmp.lt.s32.totalorder %s217, 1
      %s221 = scalar_select %p220, %s217, 1
      %s222 = smul.addr %s219, 2
      %s223 = sadd.s32 %s221, %s222
      %s224 = smul.addr %s223, 4
      %s225 = scalar_lea.vmem %s0, %s224
      %s226 = smul.u32 2, %s20
      %s227 = smul.u32 2, %s20
      %p228 = scmp.lt.s32.totalorder %s19, 1
      %s229 = scalar_select %p228, %s19, 1
      %p230 = scmp.lt.s32.totalorder %s227, 1
      %s231 = scalar_select %p230, %s227, 1
      %s232 = smul.addr %s229, 16
      %s233 = sadd.s32 %s231, %s232
      %s234 = smul.addr %s233, 4
      %s235 = scalar_lea.vmem %s4, %s234
      %s236 = smul.u32 2, %s20
      %v238 = vld [vmem:[%s225] sm:$0xff]
      %v239 = vld [vmem:[%s1] sm:$0xf]
      %241 = vset.pattern.permute.xlu0 0
      %242 = vperm.xlu0 %241, %v239
      %v243 = vpop.permute.xlu0 %242
      %v245 = vunpack.c.l.s4 839922192
      %v246 = vunpack.c.0.s8 %v245
      %v247 = vperm.slane %v243, %v246
      %v249 = vmul.f32 %v238, %v247
      %v250 = vld [vmem:[%s2] sm:$0xf]
      %252 = vset.pattern.permute.xlu0 0
      %253 = vperm.xlu0 %252, %v250
      %v254 = vpop.permute.xlu0 %253
      %v256 = vunpack.c.l.s4 839922192
      %v257 = vunpack.c.0.s8 %v256
      %v258 = vperm.slane %v254, %v257
      %v260 = vadd.f32 %v249, %v258
      %v261 = vmax.f32 %v260, 0.0
      %v262 = vld [vmem:[%s3] sm:$0xf]
      %v263 = vld [vmem:[%s3 + $0x4] sm:$0xf]
      %v264 = vld [vmem:[%s3 + $0x8] sm:$0xf]
      %v265 = vld [vmem:[%s3 + $0xc] sm:$0xf]
      %v266 = vld [vmem:[%s3 + $0x10] sm:$0xf]
      %v267 = vld [vmem:[%s3 + $0x14] sm:$0xf]
      %v268 = vld [vmem:[%s3 + $0x18] sm:$0xf]
      %v269 = vld [vmem:[%s3 + $0x1c] sm:$0xf]
      %271 = vst [vmem:[#allocation1] ss:$2 sm:$0xff] %v261
      %v272 = vld.sshfl [vmem:[#allocation1] sm:$0xff pattern:$0x75316420]
      %v273 = vld.sshfl [vmem:[#allocation1 + $0x8] sm:$0xff pattern:$0x75316420]
      %v276 = vpack.c.bf16 %v272, %v272
      %v277 = vpack.c.bf16 %v273, %v273
      %v286 = vunpack.c.l.b16 %v262
      %v287 = vunpack.c.l.b16 %v263
      %v288 = vunpack.c.l.b16 %v264
      %v289 = vunpack.c.l.b16 %v265
      %v290 = vunpack.c.l.b16 %v266
      %v291 = vunpack.c.l.b16 %v267
      %v292 = vunpack.c.l.b16 %v268
      %v293 = vunpack.c.l.b16 %v269
      %v294 = vpack.c.b16 %v287, %v286
      %v295 = vpack.c.b16 %v289, %v288
      %v296 = vpack.c.b16 %v291, %v290
      %v297 = vpack.c.b16 %v293, %v292
      %vm298 = vcmask 31744
      %v300 = vsel %vm298, %v294, 0
      %v303 = vsel %vm298, %v295, 0
      %v306 = vsel %vm298, %v296, 0
      %v309 = vsel %vm298, %v297, 0
      %vm311 = vcmask 1041408
      %v313 = vsel %vm311, %v276, 0
      %v316 = vsel %vm311, %v277, 0
      %318 = vmatpush.bf16.msra.mxu0 0
      %319 = vmatpush.bf16.msra.mxu0 0
      %320 = vmatpush.bf16.msra.mxu0 0
      %321 = vmatpush.bf16.msra.mxu0 0
      %322 = vmatpush.bf16.msra.mxu0 0
      %323 = vmatpush.bf16.msra.mxu0 0
      %324 = vmatpush.bf16.msra.mxu0 0
      %325 = vmatpush.bf16.msra.mxu0 %v313
      %326 = vmatmul.bf16.gmra.mxu0 %v300
      %v327 = vpop.f32.mrf.mxu0
      %v328 = vadd.f32 0.0, %v327
      %v329 = vpop.f32.mrf.mxu0
      %v330 = vadd.f32 0.0, %v329
      %331 = vmatmul.bf16.gmra.mxu0 %v303
      %v332 = vpop.f32.mrf.mxu0
      %v333 = vadd.f32 0.0, %v332
      %v334 = vpop.f32.mrf.mxu0
      %v335 = vadd.f32 0.0, %v334
      %336 = vmatmul.bf16.gmra.mxu0 %v306
      %v337 = vpop.f32.mrf.mxu0
      %v338 = vadd.f32 0.0, %v337
      %v339 = vpop.f32.mrf.mxu0
      %v340 = vadd.f32 0.0, %v339
      %341 = vmatmul.bf16.gmra.mxu0 %v309
      %v342 = vpop.f32.mrf.mxu0
      %v343 = vadd.f32 0.0, %v342
      %v344 = vpop.f32.mrf.mxu0
      %v345 = vadd.f32 0.0, %v344
      %346 = vdwg.mxu0
      %347 = vmatpush.bf16.msra.mxu0 0
      %348 = vmatpush.bf16.msra.mxu0 0
      %349 = vmatpush.bf16.msra.mxu0 0
      %350 = vmatpush.bf16.msra.mxu0 0
      %351 = vmatpush.bf16.msra.mxu0 0
      %352 = vmatpush.bf16.msra.mxu0 0
      %353 = vmatpush.bf16.msra.mxu0 0
      %354 = vmatpush.bf16.msra.mxu0 %v316
      %355 = vmatmul.bf16.gmra.mxu0 %v300
      %v356 = vpop.f32.mrf.mxu0
      %v357 = vadd.f32 0.0, %v356
      %v358 = vpop.f32.mrf.mxu0
      %v359 = vadd.f32 0.0, %v358
      %360 = vmatmul.bf16.gmra.mxu0 %v303
      %v361 = vpop.f32.mrf.mxu0
      %v362 = vadd.f32 0.0, %v361
      %v363 = vpop.f32.mrf.mxu0
      %v364 = vadd.f32 0.0, %v363
      %365 = vmatmul.bf16.gmra.mxu0 %v306
      %v366 = vpop.f32.mrf.mxu0
      %v367 = vadd.f32 0.0, %v366
      %v368 = vpop.f32.mrf.mxu0
      %v369 = vadd.f32 0.0, %v368
      %370 = vmatmul.bf16.gmra.mxu0 %v309
      %v371 = vpop.f32.mrf.mxu0
      %v372 = vadd.f32 0.0, %v371
      %v373 = vpop.f32.mrf.mxu0
      %v374 = vadd.f32 0.0, %v373
      %375 = vdwg.mxu0
      %v376 = vpack.c.bf16 %v357, %v328
      %v377 = vpack.c.bf16 %v359, %v330
      %v378 = vpack.c.bf16 %v362, %v333
      %v379 = vpack.c.bf16 %v364, %v335
      %v380 = vpack.c.bf16 %v367, %v338
      %v381 = vpack.c.bf16 %v369, %v340
      %v382 = vpack.c.bf16 %v372, %v343
      %v383 = vpack.c.bf16 %v374, %v345
      %384 = vst [vmem:[%s235] sm:$0xff] %v376
      %385 = vst [vmem:[%s235 + $0x8] sm:$0xff] %v377
      %386 = vst [vmem:[%s235 + $0x10] sm:$0xff] %v378
      %387 = vst [vmem:[%s235 + $0x18] sm:$0xff] %v379
      %388 = vst [vmem:[%s235 + $0x20] sm:$0xff] %v380
      %389 = vst [vmem:[%s235 + $0x28] sm:$0xff] %v381
      %390 = vst [vmem:[%s235 + $0x30] sm:$0xff] %v382
      %391 = vst [vmem:[%s235 + $0x38] sm:$0xff] %v383
      %s392 = smul.u32 2, %s20
      %p393 = scmp.lt.s32.totalorder %s19, 1
      %s394 = scalar_select %p393, %s19, 1
      %p395 = scmp.lt.s32.totalorder %s392, 1
      %s396 = scalar_select %p395, %s392, 1
      %s397 = smul.addr %s394, 16
      %s398 = sadd.s32 %s396, %s397
      %s399 = smul.addr %s398, 4
      %s400 = scalar_lea.vmem %s4, %s399
      // Predicated region
      $region37: #{a_call__.5} parent=35 // pred_check
        %p401 = pneg %p138
      $region38: #{a_call__.5} parent=35 // pred_check_branch
        %403 = sbr.rel (%p401) target = $region40
      $region39: #{a_call__.5} parent=35 // pred_region
        %s404 = smul.u32 2, %s20
      $region40: #{a_call__.5} parent=35 // pred_fallthru
        _
    $region36: #{a_call__.5} parent=5 // pred_fallthru
      _
    %p405 = scmp.le.s32.totalorder 2, %s10
    // Predicated region
    $region41: #{a_call__.5} parent=5 // pred_check
      %p406 = pneg %p405
    $region42: #{a_call__.5} parent=5 // pred_check_branch
      %408 = sbr.rel (%p406) target = $region44
    $region43: #{a_call__.5} parent=5 // pred_region
      %s409 = ssub.s32 %s10, 2
      // Predicated region
      $region45: #{a_call__.5} parent=43 // pred_check
        %p410 = pneg %p144
      $region46: #{a_call__.5} parent=43 // pred_check_branch
        %412 = sbr.rel (%p410) target = $region48
      $region47: #{a_call__.5} parent=43 // pred_region
        %s413 = smul.u32 2, %s22
        %p414 = scmp.lt.s32.totalorder %s21, 1
        %s415 = scalar_select %p414, %s21, 1
        %p416 = scmp.lt.s32.totalorder %s413, 1
        %s417 = scalar_select %p416, %s413, 1
        %s418 = smul.addr %s415, 16
        %s419 = sadd.s32 %s417, %s418
        %s420 = smul.addr %s419, 4
        %s421 = scalar_lea.vmem %s4, %s420
      $region48: #{a_call__.5} parent=43 // pred_fallthru
        _
    $region44: #{a_call__.5} parent=5 // pred_fallthru
      _
  $region6: #{a_call__.5} parent=0 // loop_footer
    %s14 = sadd.s32 1, %s10
  $region7: #{a_call__.5} parent=0 // loop_footer_branch
    %9 = sbr.rel target = $region3
  $region8: #{a_call__.5} parent=0 // loop_exit
    _

// kernel: a_call__.7
$region0: #{a_call__.7}
  #allocation0 [shape = 'u32[]', space=smem, size = 0x4, offset = 0x4, fixed_abs, tag = 'smem constant byte address 0x4 - core index']
  #allocation1 [shape = 'u32[72,128]{1,0:T(1,128)}', space=vmem, size = 0x9000, scoped, tag = 'internal scratch']
  %s0 = inlined_call_operand.vmem [shape: f32[2,64,9], index: 0, kind: input, shape index: {}]
  %s1 = inlined_call_operand.vmem [shape: f32[64,1], index: 1, kind: input, shape index: {}]
  %s2 = inlined_call_operand.vmem [shape: f32[64,1], index: 2, kind: input, shape index: {}]
  %s3 = inlined_call_operand.vmem [shape: bf16[32,64], index: 3, kind: input, shape index: {}]
  %s4 = inlined_call_operand.vmem [shape: bf16[2,32,9], index: 4, kind: output, shape index: {}]
  %s5 = sld [smem:[#allocation0]]
  $region49: #{a_call__.7} parent=0
    _
  %s7 = ssub.s32 1, %s5
  %s8 = scalar_select 0, %s7, %s5
  loop: start=0, step=1, limit=4
  $region2: #{a_call__.7} parent=0 // loop_pre_header
    _
  $region3: #{a_call__.7} parent=0 // loop_header
    %s10 = sphi 0, %s14
    %p11 = scmp.ge.s32.totalorder %s10, 4
    %s17 = sphi 0, %s29
    %s18 = sphi 0, %s25
    %s19 = sphi 0, %s17
    %s20 = sphi 0, %s18
    %s21 = sphi 0, %s19
    %s22 = sphi 0, %s20
    %s34 = sphi 0, %s36
    %s37 = sphi 0, %s34
    %s38 = sphi 0, %s37
    %s54 = sphi 0, %s38
    %s58 = sphi 0, %s58
    %s60 = sphi 0, %s58
    %s61 = sphi 0, %s60
    %s75 = sphi 0, %s61
    %s79 = sphi 0, %s79
    %s81 = sphi 0, %s79
    %s82 = sphi 0, %s81
    %s96 = sphi 0, %s82
    %s100 = sphi 0, %s100
    %s102 = sphi 0, %s100
    %s103 = sphi 0, %s102
    %s117 = sphi 0, %s103
    %s125 = sphi 0, %s127
    %s128 = sphi 0, %s125
    %s129 = sphi 0, %s128
    %s145 = sphi 0, %s129
  $region4: #{a_call__.7} parent=0 // loop_header_branch
    %13 = sbr.rel (%p11) target = $region8
  $region5: #{a_call__.7} parent=0 // loop_body
    %s15 = ssub.s32 %s10, 1
    %s16 = ssub.s32 %s10, 2
    %s23 = sadd.s32 1, %s18
    %p24 = scmp.ge.s32.totalorder %s23, 1
    %s25 = scalar_select %p24, 0, %s23
    %s26 = sadd.s32 1, %s17
    %s27 = scalar_select %p24, %s26, %s17
    %p28 = scmp.ge.s32.totalorder %s27, 2
    %s29 = scalar_select %p28, 0, %s27
    %s30 = ssub.s32 %s17, %s29
    %s31 = ssub.s32 %s18, %s25
    %s32 = sor.u32 %s30, %s31
    %p33 = scmp.eq.s32.totalorder %s32, 0
    %s35 = sadd.s32 %s34, 1
    %s36 = scalar_select %p33, %s34, %s35
    %p39 = pneg %p33
    %p40 = scmp.eq.s32.totalorder %s10, 1
    %p41 = por %p39, %p40
    %p42 = scmp.ne.s32.totalorder %s34, %s37
    %p43 = scmp.eq.s32.totalorder %s10, 0
    %p44 = por %p42, %p43
    %p45 = scmp.ne.s32.totalorder %s34, %s37
    %p46 = scmp.eq.s32.totalorder %s15, 1
    %p47 = por %p45, %p46
    %p48 = scmp.ne.s32.totalorder %s37, %s38
    %p49 = scmp.eq.s32.totalorder %s15, 0
    %p50 = por %p48, %p49
    %p51 = scmp.ne.s32.totalorder %s37, %s38
    %p52 = scmp.eq.s32.totalorder %s16, 1
    %p53 = por %p51, %p52
    %p55 = scmp.ne.s32.totalorder %s38, %s54
    %p56 = scmp.eq.s32.totalorder %s16, 0
    %p57 = por %p55, %p56
    %s59 = sadd.s32 %s58, 1
    %p62 = scmp.eq.s32.totalorder %s10, 1
    %p63 = scmp.ne.s32.totalorder %s58, %s60
    %p64 = scmp.eq.s32.totalorder %s10, 0
    %p65 = por %p63, %p64
    %p66 = scmp.ne.s32.totalorder %s58, %s60
    %p67 = scmp.eq.s32.totalorder %s15, 1
    %p68 = por %p66, %p67
    %p69 = scmp.ne.s32.totalorder %s60, %s61
    %p70 = scmp.eq.s32.totalorder %s15, 0
    %p71 = por %p69, %p70
    %p72 = scmp.ne.s32.totalorder %s60, %s61
    %p73 = scmp.eq.s32.totalorder %s16, 1
    %p74 = por %p72, %p73
    %p76 = scmp.ne.s32.totalorder %s61, %s75
    %p77 = scmp.eq.s32.totalorder %s16, 0
    %p78 = por %p76, %p77
    %s80 = sadd.s32 %s79, 1
    %p83 = scmp.eq.s32.totalorder %s10, 1
    %p84 = scmp.ne.s32.totalorder %s79, %s81
    %p85 = scmp.eq.s32.totalorder %s10, 0
    %p86 = por %p84, %p85
    %p87 = scmp.ne.s32.totalorder %s79, %s81
    %p88 = scmp.eq.s32.totalorder %s15, 1
    %p89 = por %p87, %p88
    %p90 = scmp.ne.s32.totalorder %s81, %s82
    %p91 = scmp.eq.s32.totalorder %s15, 0
    %p92 = por %p90, %p91
    %p93 = scmp.ne.s32.totalorder %s81, %s82
    %p94 = scmp.eq.s32.totalorder %s16, 1
    %p95 = por %p93, %p94
    %p97 = scmp.ne.s32.totalorder %s82, %s96
    %p98 = scmp.eq.s32.totalorder %s16, 0
    %p99 = por %p97, %p98
    %s101 = sadd.s32 %s100, 1
    %p104 = scmp.eq.s32.totalorder %s10, 1
    %p105 = scmp.ne.s32.totalorder %s100, %s102
    %p106 = scmp.eq.s32.totalorder %s10, 0
    %p107 = por %p105, %p106
    %p108 = scmp.ne.s32.totalorder %s100, %s102
    %p109 = scmp.eq.s32.totalorder %s15, 1
    %p110 = por %p108, %p109
    %p111 = scmp.ne.s32.totalorder %s102, %s103
    %p112 = scmp.eq.s32.totalorder %s15, 0
    %p113 = por %p111, %p112
    %p114 = scmp.ne.s32.totalorder %s102, %s103
    %p115 = scmp.eq.s32.totalorder %s16, 1
    %p116 = por %p114, %p115
    %p118 = scmp.ne.s32.totalorder %s103, %s117
    %p119 = scmp.eq.s32.totalorder %s16, 0
    %p120 = por %p118, %p119
    %s121 = ssub.s32 %s17, %s29
    %s122 = ssub.s32 %s18, %s25
    %s123 = sor.u32 %s121, %s122
    %p124 = scmp.eq.s32.totalorder %s123, 0
    %s126 = sadd.s32 %s125, 1
    %s127 = scalar_select %p124, %s125, %s126
    %p130 = pneg %p124
    %p131 = scmp.eq.s32.totalorder %s10, 1
    %p132 = por %p130, %p131
    %p133 = scmp.ne.s32.totalorder %s125, %s128
    %p134 = scmp.eq.s32.totalorder %s10, 0
    %p135 = por %p133, %p134
    %p136 = scmp.ne.s32.totalorder %s125, %s128
    %p137 = scmp.eq.s32.totalorder %s15, 1
    %p138 = por %p136, %p137
    %p139 = scmp.ne.s32.totalorder %s128, %s129
    %p140 = scmp.eq.s32.totalorder %s15, 0
    %p141 = por %p139, %p140
    %p142 = scmp.ne.s32.totalorder %s128, %s129
    %p143 = scmp.eq.s32.totalorder %s16, 1
    %p144 = por %p142, %p143
    %p146 = scmp.ne.s32.totalorder %s129, %s145
    %p147 = scmp.eq.s32.totalorder %s16, 0
    %p148 = por %p146, %p147
    %p149 = scmp.le.s32.totalorder 1, %s10
    %p150 = scmp.lt.s32.totalorder %s10, 3
    %p151 = pnand %p149, %p150
    %p152 = pneg %p151
    // Predicated region
    $region9: #{a_call__.7} parent=5 // pred_check
      _
    $region10: #{a_call__.7} parent=5 // pred_check_branch
      %154 = sbr.rel (%p151) target = $region12
    $region11: #{a_call__.7} parent=5 // pred_region
      %s155 = ssub.s32 %s10, 1
      // Predicated region
      $region13: #{a_call__.7} parent=11 // pred_check
        %p156 = pneg %p71
      $region14: #{a_call__.7} parent=11 // pred_check_branch
        %158 = sbr.rel (%p156) target = $region16
      $region15: #{a_call__.7} parent=11 // pred_region
        _
      $region16: #{a_call__.7} parent=11 // pred_fallthru
        _
      // Predicated region
      $region17: #{a_call__.7} parent=11 // pred_check
        %p159 = pneg %p92
      $region18: #{a_call__.7} parent=11 // pred_check_branch
        %161 = sbr.rel (%p159) target = $region20
      $region19: #{a_call__.7} parent=11 // pred_region
        _
      $region20: #{a_call__.7} parent=11 // pred_fallthru
        _
      // Predicated region
      $region21: #{a_call__.7} parent=11 // pred_check
        %p162 = pneg %p113
      $region22: #{a_call__.7} parent=11 // pred_check_branch
        %164 = sbr.rel (%p162) target = $region24
      $region23: #{a_call__.7} parent=11 // pred_region
        _
      $region24: #{a_call__.7} parent=11 // pred_fallthru
        _
    $region12: #{a_call__.7} parent=5 // pred_fallthru
      _
    %p165 = scmp.lt.s32.totalorder %s10, 2
    // Predicated region
    $region25: #{a_call__.7} parent=5 // pred_check
      %p166 = pneg %p165
    $region26: #{a_call__.7} parent=5 // pred_check_branch
      %168 = sbr.rel (%p166) target = $region28
    $region27: #{a_call__.7} parent=5 // pred_region
      // Predicated region
      $region29: #{a_call__.7} parent=27 // pred_check
        %p169 = pneg %p44
      $region30: #{a_call__.7} parent=27 // pred_check_branch
        %171 = sbr.rel (%p169) target = $region32
      $region31: #{a_call__.7} parent=27 // pred_region
        %p172 = scmp.lt.s32.totalorder %s17, 1
        %s173 = scalar_select %p172, %s17, 1
        %p174 = scmp.lt.s32.totalorder %s18, 0
        %s175 = scalar_select %p174, %s18, 0
        %s176 = smul.addr %s173, 8
        %s177 = sadd.s32 %s175, %s176
        %s178 = smul.addr %s177, 8
        %s179 = scalar_lea.vmem %s0, %s178
      $region32: #{a_call__.7} parent=27 // pred_fallthru
        _
    $region28: #{a_call__.7} parent=5 // pred_fallthru
      _
    %p180 = scmp.le.s32.totalorder 1, %s10
    %p181 = scmp.lt.s32.totalorder %s10, 3
    %p182 = pnand %p180, %p181
    %p183 = pneg %p182
    // Predicated region
    $region33: #{a_call__.7} parent=5 // pred_check
      _
    $region34: #{a_call__.7} parent=5 // pred_check_branch
      %185 = sbr.rel (%p182) target = $region36
    $region35: #{a_call__.7} parent=5 // pred_region
      %s186 = ssub.s32 %s10, 1
      %p187 = scmp.lt.s32.totalorder %s19, 1
      %s188 = scalar_select %p187, %s19, 1
      %p189 = scmp.lt.s32.totalorder %s20, 0
      %s190 = scalar_select %p189, %s20, 0
      %s191 = smul.addr %s188, 8
      %s192 = sadd.s32 %s190, %s191
      %s193 = smul.addr %s192, 8
      %s194 = scalar_lea.vmem %s0, %s193
      %p195 = pneg %p50
      %p196 = pneg %p47
      %p197 = pneg %p71
      %p198 = pneg %p68
      %p199 = pneg %p92
      %p200 = pneg %p89
      %p201 = pneg %p113
      %p202 = pneg %p110
      %p203 = pneg %p141
      %p204 = pneg %p138
      %p205 = scmp.lt.s32.totalorder %s19, 1
      %s206 = scalar_select %p205, %s19, 1
      %p207 = scmp.lt.s32.totalorder %s20, 0
      %s208 = scalar_select %p207, %s20, 0
      %s209 = smul.addr %s206, 4
      %s210 = sadd.s32 %s208, %s209
      %s211 = smul.addr %s210, 4
      %s212 = scalar_lea.vmem %s4, %s211
      %p213 = scmp.lt.s32.totalorder %s19, 1
      %s214 = scalar_select %p213, %s19, 1
      %p215 = scmp.lt.s32.totalorder %s20, 0
      %s216 = scalar_select %p215, %s20, 0
      %s217 = smul.addr %s214, 8
      %s218 = sadd.s32 %s216, %s217
      %s219 = smul.addr %s218, 8
      %s220 = scalar_lea.vmem %s0, %s219
      %p221 = scmp.lt.s32.totalorder %s19, 1
      %s222 = scalar_select %p221, %s19, 1
      %p223 = scmp.lt.s32.totalorder %s20, 0
      %s224 = scalar_select %p223, %s20, 0
      %s225 = smul.addr %s222, 4
      %s226 = sadd.s32 %s224, %s225
      %s227 = smul.addr %s226, 4
      %s228 = scalar_lea.vmem %s4, %s227
      %v230 = vld [vmem:[%s220] sm:$0xff]
      %v231 = vld [vmem:[%s220 + $0x8] sm:$0xff]
      %v232 = vld [vmem:[%s220 + $0x10] sm:$0xff]
      %v233 = vld [vmem:[%s220 + $0x18] sm:$0xff]
      %v234 = vld [vmem:[%s220 + $0x20] sm:$0xff]
      %v235 = vld [vmem:[%s220 + $0x28] sm:$0xff]
      %v236 = vld [vmem:[%s220 + $0x30] sm:$0xff]
      %v237 = vld [vmem:[%s220 + $0x38] sm:$0xff]
      %v238 = vld [vmem:[%s1] sm:$0xff]
      %v239 = vld [vmem:[%s1 + $0x8] sm:$0xff]
      %v240 = vld [vmem:[%s1 + $0x10] sm:$0xff]
      %v241 = vld [vmem:[%s1 + $0x18] sm:$0xff]
      %v242 = vld [vmem:[%s1 + $0x20] sm:$0xff]
      %v243 = vld [vmem:[%s1 + $0x28] sm:$0xff]
      %v244 = vld [vmem:[%s1 + $0x30] sm:$0xff]
      %v245 = vld [vmem:[%s1 + $0x38] sm:$0xff]
      %247 = vset.pattern.permute.xlu0 0
      %248 = vperm.xlu0 %247, %v238
      %v249 = vpop.permute.xlu0 %248
      %252 = vset.pattern.permute.xlu0 0
      %253 = vperm.xlu0 %252, %v239
      %v254 = vpop.permute.xlu0 %253
      %257 = vset.pattern.permute.xlu0 0
      %258 = vperm.xlu0 %257, %v240
      %v259 = vpop.permute.xlu0 %258
      %262 = vset.pattern.permute.xlu0 0
      %263 = vperm.xlu0 %262, %v241
      %v264 = vpop.permute.xlu0 %263
      %267 = vset.pattern.permute.xlu0 0
      %268 = vperm.xlu0 %267, %v242
      %v269 = vpop.permute.xlu0 %268
      %272 = vset.pattern.permute.xlu0 0
      %273 = vperm.xlu0 %272, %v243
      %v274 = vpop.permute.xlu0 %273
      %277 = vset.pattern.permute.xlu0 0
      %278 = vperm.xlu0 %277, %v244
      %v279 = vpop.permute.xlu0 %278
      %282 = vset.pattern.permute.xlu0 0
      %283 = vperm.xlu0 %282, %v245
      %v284 = vpop.permute.xlu0 %283
      %v286 = vmul.f32 %v230, %v249
      %v287 = vmul.f32 %v231, %v254
      %v288 = vmul.f32 %v232, %v259
      %v289 = vmul.f32 %v233, %v264
      %v290 = vmul.f32 %v234, %v269
      %v291 = vmul.f32 %v235, %v274
      %v292 = vmul.f32 %v236, %v279
      %v293 = vmul.f32 %v237, %v284
      %v294 = vld [vmem:[%s2] sm:$0xff]
      %v295 = vld [vmem:[%s2 + $0x8] sm:$0xff]
      %v296 = vld [vmem:[%s2 + $0x10] sm:$0xff]
      %v297 = vld [vmem:[%s2 + $0x18] sm:$0xff]
      %v298 = vld [vmem:[%s2 + $0x20] sm:$0xff]
      %v299 = vld [vmem:[%s2 + $0x28] sm:$0xff]
      %v300 = vld [vmem:[%s2 + $0x30] sm:$0xff]
      %v301 = vld [vmem:[%s2 + $0x38] sm:$0xff]
      %303 = vset.pattern.permute.xlu0 0
      %304 = vperm.xlu0 %303, %v294
      %v305 = vpop.permute.xlu0 %304
      %308 = vset.pattern.permute.xlu0 0
      %309 = vperm.xlu0 %308, %v295
      %v310 = vpop.permute.xlu0 %309
      %313 = vset.pattern.permute.xlu0 0
      %314 = vperm.xlu0 %313, %v296
      %v315 = vpop.permute.xlu0 %314
      %318 = vset.pattern.permute.xlu0 0
      %319 = vperm.xlu0 %318, %v297
      %v320 = vpop.permute.xlu0 %319
      %323 = vset.pattern.permute.xlu0 0
      %324 = vperm.xlu0 %323, %v298
      %v325 = vpop.permute.xlu0 %324
      %328 = vset.pattern.permute.xlu0 0
      %329 = vperm.xlu0 %328, %v299
      %v330 = vpop.permute.xlu0 %329
      %333 = vset.pattern.permute.xlu0 0
      %334 = vperm.xlu0 %333, %v300
      %v335 = vpop.permute.xlu0 %334
      %338 = vset.pattern.permute.xlu0 0
      %339 = vperm.xlu0 %338, %v301
      %v340 = vpop.permute.xlu0 %339
      %v342 = vadd.f32 %v286, %v305
      %v343 = vadd.f32 %v287, %v310
      %v344 = vadd.f32 %v288, %v315
      %v345 = vadd.f32 %v289, %v320
      %v346 = vadd.f32 %v290, %v325
      %v347 = vadd.f32 %v291, %v330
      %v348 = vadd.f32 %v292, %v335
      %v349 = vadd.f32 %v293, %v340
      %v350 = vmax.f32 %v342, 0.0
      %v351 = vmax.f32 %v343, 0.0
      %v352 = vmax.f32 %v344, 0.0
      %v353 = vmax.f32 %v345, 0.0
      %v354 = vmax.f32 %v346, 0.0
      %v355 = vmax.f32 %v347, 0.0
      %v356 = vmax.f32 %v348, 0.0
      %v357 = vmax.f32 %v349, 0.0
      %v358 = vld [vmem:[%s3] sm:$0xf]
      %v359 = vld [vmem:[%s3 + $0x4] sm:$0xf]
      %v360 = vld [vmem:[%s3 + $0x8] sm:$0xf]
      %v361 = vld [vmem:[%s3 + $0xc] sm:$0xf]
      %v362 = vpack.c.bf16 %v351, %v350
      %v363 = vpack.c.bf16 %v353, %v352
      %v364 = vpack.c.bf16 %v355, %v354
      %v365 = vpack.c.bf16 %v357, %v356
      %v370 = vunpack.c.l.b16 %v358
      %v371 = vunpack.c.l.b16 %v359
      %v372 = vunpack.c.l.b16 %v360
      %v373 = vunpack.c.l.b16 %v361
      %v374 = vpack.c.b16 %v371, %v370
      %v375 = vpack.c.b16 %v373, %v372
      %vm376 = vcmask 523264
      %v378 = vsel %vm376, %v374, 0
      %v381 = vsel %vm376, %v375, 0
      %383 = vmatpush.bf16.msra.mxu0 0
      %384 = vmatpush.bf16.msra.mxu0 0
      %385 = vmatpush.bf16.msra.mxu0 0
      %386 = vmatpush.bf16.msra.mxu0 0
      %387 = vmatpush.bf16.msra.mxu0 %v365
      %388 = vmatpush.bf16.msra.mxu0 %v364
      %389 = vmatpush.bf16.msra.mxu0 %v363
      %390 = vmatpush.bf16.msra.mxu0 %v362
      %391 = vmatmul.bf16.gmra.mxu0 %v378
      %v392 = vpop.f32.mrf.mxu0
      %v393 = vadd.f32 0.0, %v392
      %v394 = vpop.f32.mrf.mxu0
      %v395 = vadd.f32 0.0, %v394
      %396 = vmatmul.bf16.gmra.mxu0 %v381
      %v397 = vpop.f32.mrf.mxu0
      %v398 = vadd.f32 0.0, %v397
      %v399 = vpop.f32.mrf.mxu0
      %v400 = vadd.f32 0.0, %v399
      %401 = vdwg.mxu0
      %v402 = vpack.c.bf16 %v393, %v393
      %v403 = vpack.c.bf16 %v395, %v395
      %v404 = vpack.c.bf16 %v398, %v398
      %v405 = vpack.c.bf16 %v400, %v400
      %vm406 = vcmask 68608
      %407 = vst.msk [vmem:[%s228] sm:$0xf] %vm406, %v402
      %408 = vst.msk [vmem:[%s228 + $0x4] sm:$0xf] %vm406, %v403
      %409 = vst.msk [vmem:[%s228 + $0x8] sm:$0xf] %vm406, %v404
      %410 = vst.msk [vmem:[%s228 + $0xc] sm:$0xf] %vm406, %v405
      %p411 = scmp.lt.s32.totalorder %s19, 1
      %s412 = scalar_select %p411, %s19, 1
      %p413 = scmp.lt.s32.totalorder %s20, 0
      %s414 = scalar_select %p413, %s20, 0
      %s415 = smul.addr %s412, 4
      %s416 = sadd.s32 %s414, %s415
      %s417 = smul.addr %s416, 4
      %s418 = scalar_lea.vmem %s4, %s417
      // Predicated region
      $region37: #{a_call__.7} parent=35 // pred_check
        %p419 = pneg %p138
      $region38: #{a_call__.7} parent=35 // pred_check_branch
        %421 = sbr.rel (%p419) target = $region40
      $region39: #{a_call__.7} parent=35 // pred_region
        _
      $region40: #{a_call__.7} parent=35 // pred_fallthru
        _
    $region36: #{a_call__.7} parent=5 // pred_fallthru
      _
    %p422 = scmp.le.s32.totalorder 2, %s10
    // Predicated region
    $region41: #{a_call__.7} parent=5 // pred_check
      %p423 = pneg %p422
    $region42: #{a_call__.7} parent=5 // pred_check_branch
      %425 = sbr.rel (%p423) target = $region44
    $region43: #{a_call__.7} parent=5 // pred_region
      %s426 = ssub.s32 %s10, 2
      // Predicated region
      $region45: #{a_call__.7} parent=43 // pred_check
        %p427 = pneg %p144
      $region46: #{a_call__.7} parent=43 // pred_check_branch
        %429 = sbr.rel (%p427) target = $region48
      $region47: #{a_call__.7} parent=43 // pred_region
        %p430 = scmp.lt.s32.totalorder %s21, 1
        %s431 = scalar_select %p430, %s21, 1
        %p432 = scmp.lt.s32.totalorder %s22, 0
        %s433 = scalar_select %p432, %s22, 0
        %s434 = smul.addr %s431, 4
        %s435 = sadd.s32 %s433, %s434
        %s436 = smul.addr %s435, 4
        %s437 = scalar_lea.vmem %s4, %s436
      $region48: #{a_call__.7} parent=43 // pred_fallthru
        _
    $region44: #{a_call__.7} parent=5 // pred_fallthru
      _
  $region6: #{a_call__.7} parent=0 // loop_footer
    %s14 = sadd.s32 1, %s10
  $region7: #{a_call__.7} parent=0 // loop_footer_branch
    %9 = sbr.rel target = $region3
  $region8: #{a_call__.7} parent=0 // loop_exit
    _

// kernel: a_call__.8
$region0: #{a_call__.8}
  #allocation0 [shape = 'u32[]', space=smem, size = 0x4, offset = 0x4, fixed_abs, tag = 'smem constant byte address 0x4 - core index']
  #allocation1 [shape = 'u32[72,128]{1,0:T(1,128)}', space=vmem, size = 0x9000, scoped, tag = 'internal scratch']
  %s0 = inlined_call_operand.vmem [shape: f32[2,64,4], index: 0, kind: input, shape index: {}]
  %s1 = inlined_call_operand.vmem [shape: f32[64,1], index: 1, kind: input, shape index: {}]
  %s2 = inlined_call_operand.vmem [shape: f32[64,1], index: 2, kind: input, shape index: {}]
  %s3 = inlined_call_operand.vmem [shape: bf16[32,64], index: 3, kind: input, shape index: {}]
  %s4 = inlined_call_operand.vmem [shape: bf16[2,32,4], index: 4, kind: output, shape index: {}]
  %s5 = sld [smem:[#allocation0]]
  $region49: #{a_call__.8} parent=0
    _
  %s7 = ssub.s32 1, %s5
  %s8 = scalar_select 0, %s7, %s5
  loop: start=0, step=1, limit=4
  $region2: #{a_call__.8} parent=0 // loop_pre_header
    _
  $region3: #{a_call__.8} parent=0 // loop_header
    %s10 = sphi 0, %s14
    %p11 = scmp.ge.s32.totalorder %s10, 4
    %s17 = sphi 0, %s29
    %s18 = sphi 0, %s25
    %s19 = sphi 0, %s17
    %s20 = sphi 0, %s18
    %s21 = sphi 0, %s19
    %s22 = sphi 0, %s20
    %s34 = sphi 0, %s36
    %s37 = sphi 0, %s34
    %s38 = sphi 0, %s37
    %s54 = sphi 0, %s38
    %s58 = sphi 0, %s58
    %s60 = sphi 0, %s58
    %s61 = sphi 0, %s60
    %s75 = sphi 0, %s61
    %s79 = sphi 0, %s79
    %s81 = sphi 0, %s79
    %s82 = sphi 0, %s81
    %s96 = sphi 0, %s82
    %s100 = sphi 0, %s100
    %s102 = sphi 0, %s100
    %s103 = sphi 0, %s102
    %s117 = sphi 0, %s103
    %s125 = sphi 0, %s127
    %s128 = sphi 0, %s125
    %s129 = sphi 0, %s128
    %s145 = sphi 0, %s129
  $region4: #{a_call__.8} parent=0 // loop_header_branch
    %13 = sbr.rel (%p11) target = $region8
  $region5: #{a_call__.8} parent=0 // loop_body
    %s15 = ssub.s32 %s10, 1
    %s16 = ssub.s32 %s10, 2
    %s23 = sadd.s32 1, %s18
    %p24 = scmp.ge.s32.totalorder %s23, 1
    %s25 = scalar_select %p24, 0, %s23
    %s26 = sadd.s32 1, %s17
    %s27 = scalar_select %p24, %s26, %s17
    %p28 = scmp.ge.s32.totalorder %s27, 2
    %s29 = scalar_select %p28, 0, %s27
    %s30 = ssub.s32 %s17, %s29
    %s31 = ssub.s32 %s18, %s25
    %s32 = sor.u32 %s30, %s31
    %p33 = scmp.eq.s32.totalorder %s32, 0
    %s35 = sadd.s32 %s34, 1
    %s36 = scalar_select %p33, %s34, %s35
    %p39 = pneg %p33
    %p40 = scmp.eq.s32.totalorder %s10, 1
    %p41 = por %p39, %p40
    %p42 = scmp.ne.s32.totalorder %s34, %s37
    %p43 = scmp.eq.s32.totalorder %s10, 0
    %p44 = por %p42, %p43
    %p45 = scmp.ne.s32.totalorder %s34, %s37
    %p46 = scmp.eq.s32.totalorder %s15, 1
    %p47 = por %p45, %p46
    %p48 = scmp.ne.s32.totalorder %s37, %s38
    %p49 = scmp.eq.s32.totalorder %s15, 0
    %p50 = por %p48, %p49
    %p51 = scmp.ne.s32.totalorder %s37, %s38
    %p52 = scmp.eq.s32.totalorder %s16, 1
    %p53 = por %p51, %p52
    %p55 = scmp.ne.s32.totalorder %s38, %s54
    %p56 = scmp.eq.s32.totalorder %s16, 0
    %p57 = por %p55, %p56
    %s59 = sadd.s32 %s58, 1
    %p62 = scmp.eq.s32.totalorder %s10, 1
    %p63 = scmp.ne.s32.totalorder %s58, %s60
    %p64 = scmp.eq.s32.totalorder %s10, 0
    %p65 = por %p63, %p64
    %p66 = scmp.ne.s32.totalorder %s58, %s60
    %p67 = scmp.eq.s32.totalorder %s15, 1
    %p68 = por %p66, %p67
    %p69 = scmp.ne.s32.totalorder %s60, %s61
    %p70 = scmp.eq.s32.totalorder %s15, 0
    %p71 = por %p69, %p70
    %p72 = scmp.ne.s32.totalorder %s60, %s61
    %p73 = scmp.eq.s32.totalorder %s16, 1
    %p74 = por %p72, %p73
    %p76 = scmp.ne.s32.totalorder %s61, %s75
    %p77 = scmp.eq.s32.totalorder %s16, 0
    %p78 = por %p76, %p77
    %s80 = sadd.s32 %s79, 1
    %p83 = scmp.eq.s32.totalorder %s10, 1
    %p84 = scmp.ne.s32.totalorder %s79, %s81
    %p85 = scmp.eq.s32.totalorder %s10, 0
    %p86 = por %p84, %p85
    %p87 = scmp.ne.s32.totalorder %s79, %s81
    %p88 = scmp.eq.s32.totalorder %s15, 1
    %p89 = por %p87, %p88
    %p90 = scmp.ne.s32.totalorder %s81, %s82
    %p91 = scmp.eq.s32.totalorder %s15, 0
    %p92 = por %p90, %p91
    %p93 = scmp.ne.s32.totalorder %s81, %s82
    %p94 = scmp.eq.s32.totalorder %s16, 1
    %p95 = por %p93, %p94
    %p97 = scmp.ne.s32.totalorder %s82, %s96
    %p98 = scmp.eq.s32.totalorder %s16, 0
    %p99 = por %p97, %p98
    %s101 = sadd.s32 %s100, 1
    %p104 = scmp.eq.s32.totalorder %s10, 1
    %p105 = scmp.ne.s32.totalorder %s100, %s102
    %p106 = scmp.eq.s32.totalorder %s10, 0
    %p107 = por %p105, %p106
    %p108 = scmp.ne.s32.totalorder %s100, %s102
    %p109 = scmp.eq.s32.totalorder %s15, 1
    %p110 = por %p108, %p109
    %p111 = scmp.ne.s32.totalorder %s102, %s103
    %p112 = scmp.eq.s32.totalorder %s15, 0
    %p113 = por %p111, %p112
    %p114 = scmp.ne.s32.totalorder %s102, %s103
    %p115 = scmp.eq.s32.totalorder %s16, 1
    %p116 = por %p114, %p115
    %p118 = scmp.ne.s32.totalorder %s103, %s117
    %p119 = scmp.eq.s32.totalorder %s16, 0
    %p120 = por %p118, %p119
    %s121 = ssub.s32 %s17, %s29
    %s122 = ssub.s32 %s18, %s25
    %s123 = sor.u32 %s121, %s122
    %p124 = scmp.eq.s32.totalorder %s123, 0
    %s126 = sadd.s32 %s125, 1
    %s127 = scalar_select %p124, %s125, %s126
    %p130 = pneg %p124
    %p131 = scmp.eq.s32.totalorder %s10, 1
    %p132 = por %p130, %p131
    %p133 = scmp.ne.s32.totalorder %s125, %s128
    %p134 = scmp.eq.s32.totalorder %s10, 0
    %p135 = por %p133, %p134
    %p136 = scmp.ne.s32.totalorder %s125, %s128
    %p137 = scmp.eq.s32.totalorder %s15, 1
    %p138 = por %p136, %p137
    %p139 = scmp.ne.s32.totalorder %s128, %s129
    %p140 = scmp.eq.s32.totalorder %s15, 0
    %p141 = por %p139, %p140
    %p142 = scmp.ne.s32.totalorder %s128, %s129
    %p143 = scmp.eq.s32.totalorder %s16, 1
    %p144 = por %p142, %p143
    %p146 = scmp.ne.s32.totalorder %s129, %s145
    %p147 = scmp.eq.s32.totalorder %s16, 0
    %p148 = por %p146, %p147
    %p149 = scmp.le.s32.totalorder 1, %s10
    %p150 = scmp.lt.s32.totalorder %s10, 3
    %p151 = pnand %p149, %p150
    %p152 = pneg %p151
    // Predicated region
    $region9: #{a_call__.8} parent=5 // pred_check
      _
    $region10: #{a_call__.8} parent=5 // pred_check_branch
      %154 = sbr.rel (%p151) target = $region12
    $region11: #{a_call__.8} parent=5 // pred_region
      %s155 = ssub.s32 %s10, 1
      // Predicated region
      $region13: #{a_call__.8} parent=11 // pred_check
        %p156 = pneg %p71
      $region14: #{a_call__.8} parent=11 // pred_check_branch
        %158 = sbr.rel (%p156) target = $region16
      $region15: #{a_call__.8} parent=11 // pred_region
        _
      $region16: #{a_call__.8} parent=11 // pred_fallthru
        _
      // Predicated region
      $region17: #{a_call__.8} parent=11 // pred_check
        %p159 = pneg %p92
      $region18: #{a_call__.8} parent=11 // pred_check_branch
        %161 = sbr.rel (%p159) target = $region20
      $region19: #{a_call__.8} parent=11 // pred_region
        _
      $region20: #{a_call__.8} parent=11 // pred_fallthru
        _
      // Predicated region
      $region21: #{a_call__.8} parent=11 // pred_check
        %p162 = pneg %p113
      $region22: #{a_call__.8} parent=11 // pred_check_branch
        %164 = sbr.rel (%p162) target = $region24
      $region23: #{a_call__.8} parent=11 // pred_region
        _
      $region24: #{a_call__.8} parent=11 // pred_fallthru
        _
    $region12: #{a_call__.8} parent=5 // pred_fallthru
      _
    %p165 = scmp.lt.s32.totalorder %s10, 2
    // Predicated region
    $region25: #{a_call__.8} parent=5 // pred_check
      %p166 = pneg %p165
    $region26: #{a_call__.8} parent=5 // pred_check_branch
      %168 = sbr.rel (%p166) target = $region28
    $region27: #{a_call__.8} parent=5 // pred_region
      // Predicated region
      $region29: #{a_call__.8} parent=27 // pred_check
        %p169 = pneg %p44
      $region30: #{a_call__.8} parent=27 // pred_check_branch
        %171 = sbr.rel (%p169) target = $region32
      $region31: #{a_call__.8} parent=27 // pred_region
        %p172 = scmp.lt.s32.totalorder %s17, 1
        %s173 = scalar_select %p172, %s17, 1
        %p174 = scmp.lt.s32.totalorder %s18, 0
        %s175 = scalar_select %p174, %s18, 0
        %s176 = smul.addr %s173, 8
        %s177 = sadd.s32 %s175, %s176
        %s178 = smul.addr %s177, 8
        %s179 = scalar_lea.vmem %s0, %s178
      $region32: #{a_call__.8} parent=27 // pred_fallthru
        _
    $region28: #{a_call__.8} parent=5 // pred_fallthru
      _
    %p180 = scmp.le.s32.totalorder 1, %s10
    %p181 = scmp.lt.s32.totalorder %s10, 3
    %p182 = pnand %p180, %p181
    %p183 = pneg %p182
    // Predicated region
    $region33: #{a_call__.8} parent=5 // pred_check
      _
    $region34: #{a_call__.8} parent=5 // pred_check_branch
      %185 = sbr.rel (%p182) target = $region36
    $region35: #{a_call__.8} parent=5 // pred_region
      %s186 = ssub.s32 %s10, 1
      %p187 = scmp.lt.s32.totalorder %s19, 1
      %s188 = scalar_select %p187, %s19, 1
      %p189 = scmp.lt.s32.totalorder %s20, 0
      %s190 = scalar_select %p189, %s20, 0
      %s191 = smul.addr %s188, 8
      %s192 = sadd.s32 %s190, %s191
      %s193 = smul.addr %s192, 8
      %s194 = scalar_lea.vmem %s0, %s193
      %p195 = pneg %p50
      %p196 = pneg %p47
      %p197 = pneg %p71
      %p198 = pneg %p68
      %p199 = pneg %p92
      %p200 = pneg %p89
      %p201 = pneg %p113
      %p202 = pneg %p110
      %p203 = pneg %p141
      %p204 = pneg %p138
      %p205 = scmp.lt.s32.totalorder %s19, 1
      %s206 = scalar_select %p205, %s19, 1
      %p207 = scmp.lt.s32.totalorder %s20, 0
      %s208 = scalar_select %p207, %s20, 0
      %s209 = smul.addr %s206, 4
      %s210 = sadd.s32 %s208, %s209
      %s211 = smul.addr %s210, 4
      %s212 = scalar_lea.vmem %s4, %s211
      %p213 = scmp.lt.s32.totalorder %s19, 1
      %s214 = scalar_select %p213, %s19, 1
      %p215 = scmp.lt.s32.totalorder %s20, 0
      %s216 = scalar_select %p215, %s20, 0
      %s217 = smul.addr %s214, 8
      %s218 = sadd.s32 %s216, %s217
      %s219 = smul.addr %s218, 8
      %s220 = scalar_lea.vmem %s0, %s219
      %p221 = scmp.lt.s32.totalorder %s19, 1
      %s222 = scalar_select %p221, %s19, 1
      %p223 = scmp.lt.s32.totalorder %s20, 0
      %s224 = scalar_select %p223, %s20, 0
      %s225 = smul.addr %s222, 4
      %s226 = sadd.s32 %s224, %s225
      %s227 = smul.addr %s226, 4
      %s228 = scalar_lea.vmem %s4, %s227
      %v230 = vld [vmem:[%s220] sm:$0xff]
      %v231 = vld [vmem:[%s220 + $0x8] sm:$0xff]
      %v232 = vld [vmem:[%s220 + $0x10] sm:$0xff]
      %v233 = vld [vmem:[%s220 + $0x18] sm:$0xff]
      %v234 = vld [vmem:[%s220 + $0x20] sm:$0xff]
      %v235 = vld [vmem:[%s220 + $0x28] sm:$0xff]
      %v236 = vld [vmem:[%s220 + $0x30] sm:$0xff]
      %v237 = vld [vmem:[%s220 + $0x38] sm:$0xff]
      %v238 = vld [vmem:[%s1] sm:$0xff]
      %v239 = vld [vmem:[%s1 + $0x8] sm:$0xff]
      %v240 = vld [vmem:[%s1 + $0x10] sm:$0xff]
      %v241 = vld [vmem:[%s1 + $0x18] sm:$0xff]
      %v242 = vld [vmem:[%s1 + $0x20] sm:$0xff]
      %v243 = vld [vmem:[%s1 + $0x28] sm:$0xff]
      %v244 = vld [vmem:[%s1 + $0x30] sm:$0xff]
      %v245 = vld [vmem:[%s1 + $0x38] sm:$0xff]
      %247 = vset.pattern.permute.xlu0 0
      %248 = vperm.xlu0 %247, %v238
      %v249 = vpop.permute.xlu0 %248
      %252 = vset.pattern.permute.xlu0 0
      %253 = vperm.xlu0 %252, %v239
      %v254 = vpop.permute.xlu0 %253
      %257 = vset.pattern.permute.xlu0 0
      %258 = vperm.xlu0 %257, %v240
      %v259 = vpop.permute.xlu0 %258
      %262 = vset.pattern.permute.xlu0 0
      %263 = vperm.xlu0 %262, %v241
      %v264 = vpop.permute.xlu0 %263
      %267 = vset.pattern.permute.xlu0 0
      %268 = vperm.xlu0 %267, %v242
      %v269 = vpop.permute.xlu0 %268
      %272 = vset.pattern.permute.xlu0 0
      %273 = vperm.xlu0 %272, %v243
      %v274 = vpop.permute.xlu0 %273
      %277 = vset.pattern.permute.xlu0 0
      %278 = vperm.xlu0 %277, %v244
      %v279 = vpop.permute.xlu0 %278
      %282 = vset.pattern.permute.xlu0 0
      %283 = vperm.xlu0 %282, %v245
      %v284 = vpop.permute.xlu0 %283
      %v286 = vmul.f32 %v230, %v249
      %v287 = vmul.f32 %v231, %v254
      %v288 = vmul.f32 %v232, %v259
      %v289 = vmul.f32 %v233, %v264
      %v290 = vmul.f32 %v234, %v269
      %v291 = vmul.f32 %v235, %v274
      %v292 = vmul.f32 %v236, %v279
      %v293 = vmul.f32 %v237, %v284
      %v294 = vld [vmem:[%s2] sm:$0xff]
      %v295 = vld [vmem:[%s2 + $0x8] sm:$0xff]
      %v296 = vld [vmem:[%s2 + $0x10] sm:$0xff]
      %v297 = vld [vmem:[%s2 + $0x18] sm:$0xff]
      %v298 = vld [vmem:[%s2 + $0x20] sm:$0xff]
      %v299 = vld [vmem:[%s2 + $0x28] sm:$0xff]
      %v300 = vld [vmem:[%s2 + $0x30] sm:$0xff]
      %v301 = vld [vmem:[%s2 + $0x38] sm:$0xff]
      %303 = vset.pattern.permute.xlu0 0
      %304 = vperm.xlu0 %303, %v294
      %v305 = vpop.permute.xlu0 %304
      %308 = vset.pattern.permute.xlu0 0
      %309 = vperm.xlu0 %308, %v295
      %v310 = vpop.permute.xlu0 %309
      %313 = vset.pattern.permute.xlu0 0
      %314 = vperm.xlu0 %313, %v296
      %v315 = vpop.permute.xlu0 %314
      %318 = vset.pattern.permute.xlu0 0
      %319 = vperm.xlu0 %318, %v297
      %v320 = vpop.permute.xlu0 %319
      %323 = vset.pattern.permute.xlu0 0
      %324 = vperm.xlu0 %323, %v298
      %v325 = vpop.permute.xlu0 %324
      %328 = vset.pattern.permute.xlu0 0
      %329 = vperm.xlu0 %328, %v299
      %v330 = vpop.permute.xlu0 %329
      %333 = vset.pattern.permute.xlu0 0
      %334 = vperm.xlu0 %333, %v300
      %v335 = vpop.permute.xlu0 %334
      %338 = vset.pattern.permute.xlu0 0
      %339 = vperm.xlu0 %338, %v301
      %v340 = vpop.permute.xlu0 %339
      %v342 = vadd.f32 %v286, %v305
      %v343 = vadd.f32 %v287, %v310
      %v344 = vadd.f32 %v288, %v315
      %v345 = vadd.f32 %v289, %v320
      %v346 = vadd.f32 %v290, %v325
      %v347 = vadd.f32 %v291, %v330
      %v348 = vadd.f32 %v292, %v335
      %v349 = vadd.f32 %v293, %v340
      %v350 = vmax.f32 %v342, 0.0
      %v351 = vmax.f32 %v343, 0.0
      %v352 = vmax.f32 %v344, 0.0
      %v353 = vmax.f32 %v345, 0.0
      %v354 = vmax.f32 %v346, 0.0
      %v355 = vmax.f32 %v347, 0.0
      %v356 = vmax.f32 %v348, 0.0
      %v357 = vmax.f32 %v349, 0.0
      %v358 = vld [vmem:[%s3] sm:$0xf]
      %v359 = vld [vmem:[%s3 + $0x4] sm:$0xf]
      %v360 = vld [vmem:[%s3 + $0x8] sm:$0xf]
      %v361 = vld [vmem:[%s3 + $0xc] sm:$0xf]
      %v362 = vpack.c.bf16 %v351, %v350
      %v363 = vpack.c.bf16 %v353, %v352
      %v364 = vpack.c.bf16 %v355, %v354
      %v365 = vpack.c.bf16 %v357, %v356
      %v370 = vunpack.c.l.b16 %v358
      %v371 = vunpack.c.l.b16 %v359
      %v372 = vunpack.c.l.b16 %v360
      %v373 = vunpack.c.l.b16 %v361
      %v374 = vpack.c.b16 %v371, %v370
      %v375 = vpack.c.b16 %v373, %v372
      %vm376 = vcmask 523264
      %v378 = vsel %vm376, %v374, 0
      %v381 = vsel %vm376, %v375, 0
      %383 = vmatpush.bf16.msra.mxu0 0
      %384 = vmatpush.bf16.msra.mxu0 0
      %385 = vmatpush.bf16.msra.mxu0 0
      %386 = vmatpush.bf16.msra.mxu0 0
      %387 = vmatpush.bf16.msra.mxu0 %v365
      %388 = vmatpush.bf16.msra.mxu0 %v364
      %389 = vmatpush.bf16.msra.mxu0 %v363
      %390 = vmatpush.bf16.msra.mxu0 %v362
      %391 = vmatmul.bf16.gmra.mxu0 %v378
      %v392 = vpop.f32.mrf.mxu0
      %v393 = vadd.f32 0.0, %v392
      %v394 = vpop.f32.mrf.mxu0
      %v395 = vadd.f32 0.0, %v394
      %396 = vmatmul.bf16.gmra.mxu0 %v381
      %v397 = vpop.f32.mrf.mxu0
      %v398 = vadd.f32 0.0, %v397
      %v399 = vpop.f32.mrf.mxu0
      %v400 = vadd.f32 0.0, %v399
      %401 = vdwg.mxu0
      %v402 = vpack.c.bf16 %v393, %v393
      %v403 = vpack.c.bf16 %v395, %v395
      %v404 = vpack.c.bf16 %v398, %v398
      %v405 = vpack.c.bf16 %v400, %v400
      %vm406 = vcmask 27648
      %407 = vst.msk [vmem:[%s228] sm:$0xf] %vm406, %v402
      %408 = vst.msk [vmem:[%s228 + $0x4] sm:$0xf] %vm406, %v403
      %409 = vst.msk [vmem:[%s228 + $0x8] sm:$0xf] %vm406, %v404
      %410 = vst.msk [vmem:[%s228 + $0xc] sm:$0xf] %vm406, %v405
      %p411 = scmp.lt.s32.totalorder %s19, 1
      %s412 = scalar_select %p411, %s19, 1
      %p413 = scmp.lt.s32.totalorder %s20, 0
      %s414 = scalar_select %p413, %s20, 0
      %s415 = smul.addr %s412, 4
      %s416 = sadd.s32 %s414, %s415
      %s417 = smul.addr %s416, 4
      %s418 = scalar_lea.vmem %s4, %s417
      // Predicated region
      $region37: #{a_call__.8} parent=35 // pred_check
        %p419 = pneg %p138
      $region38: #{a_call__.8} parent=35 // pred_check_branch
        %421 = sbr.rel (%p419) target = $region40
      $region39: #{a_call__.8} parent=35 // pred_region
        _
      $region40: #{a_call__.8} parent=35 // pred_fallthru
        _
    $region36: #{a_call__.8} parent=5 // pred_fallthru
      _
    %p422 = scmp.le.s32.totalorder 2, %s10
    // Predicated region
    $region41: #{a_call__.8} parent=5 // pred_check
      %p423 = pneg %p422
    $region42: #{a_call__.8} parent=5 // pred_check_branch
      %425 = sbr.rel (%p423) target = $region44
    $region43: #{a_call__.8} parent=5 // pred_region
      %s426 = ssub.s32 %s10, 2
      // Predicated region
      $region45: #{a_call__.8} parent=43 // pred_check
        %p427 = pneg %p144
      $region46: #{a_call__.8} parent=43 // pred_check_branch
        %429 = sbr.rel (%p427) target = $region48
      $region47: #{a_call__.8} parent=43 // pred_region
        %p430 = scmp.lt.s32.totalorder %s21, 1
        %s431 = scalar_select %p430, %s21, 1
        %p432 = scmp.lt.s32.totalorder %s22, 0
        %s433 = scalar_select %p432, %s22, 0
        %s434 = smul.addr %s431, 4
        %s435 = sadd.s32 %s433, %s434
        %s436 = smul.addr %s435, 4
        %s437 = scalar_lea.vmem %s4, %s436
      $region48: #{a_call__.8} parent=43 // pred_fallthru
        _
    $region44: #{a_call__.8} parent=5 // pred_fallthru
      _
  $region6: #{a_call__.8} parent=0 // loop_footer
    %s14 = sadd.s32 1, %s10
  $region7: #{a_call__.8} parent=0 // loop_footer_branch
    %9 = sbr.rel target = $region3
  $region8: #{a_call__.8} parent=0 // loop_exit
    _

// kernel: a_call__.6
$region0: #{a_call__.6}
  #allocation0 [shape = 'u32[]', space=smem, size = 0x4, offset = 0x4, fixed_abs, tag = 'smem constant byte address 0x4 - core index']
  #allocation1 [shape = 'u32[72,128]{1,0:T(1,128)}', space=vmem, size = 0x9000, scoped, tag = 'internal scratch']
  %s0 = inlined_call_operand.vmem [shape: f32[2,64,36], index: 0, kind: input, shape index: {}]
  %s1 = inlined_call_operand.vmem [shape: f32[64,1], index: 1, kind: input, shape index: {}]
  %s2 = inlined_call_operand.vmem [shape: f32[64,1], index: 2, kind: input, shape index: {}]
  %s3 = inlined_call_operand.vmem [shape: bf16[32,64], index: 3, kind: input, shape index: {}]
  %s4 = inlined_call_operand.vmem [shape: bf16[2,32,36], index: 4, kind: output, shape index: {}]
  %s5 = sld [smem:[#allocation0]]
  $region49: #{a_call__.6} parent=0
    _
  %s7 = ssub.s32 1, %s5
  %s8 = scalar_select 0, %s7, %s5
  loop: start=0, step=1, limit=4
  $region2: #{a_call__.6} parent=0 // loop_pre_header
    _
  $region3: #{a_call__.6} parent=0 // loop_header
    %s10 = sphi 0, %s14
    %p11 = scmp.ge.s32.totalorder %s10, 4
    %s17 = sphi 0, %s29
    %s18 = sphi 0, %s25
    %s19 = sphi 0, %s17
    %s20 = sphi 0, %s18
    %s21 = sphi 0, %s19
    %s22 = sphi 0, %s20
    %s34 = sphi 0, %s36
    %s37 = sphi 0, %s34
    %s38 = sphi 0, %s37
    %s54 = sphi 0, %s38
    %s58 = sphi 0, %s58
    %s60 = sphi 0, %s58
    %s61 = sphi 0, %s60
    %s75 = sphi 0, %s61
    %s79 = sphi 0, %s79
    %s81 = sphi 0, %s79
    %s82 = sphi 0, %s81
    %s96 = sphi 0, %s82
    %s100 = sphi 0, %s100
    %s102 = sphi 0, %s100
    %s103 = sphi 0, %s102
    %s117 = sphi 0, %s103
    %s125 = sphi 0, %s127
    %s128 = sphi 0, %s125
    %s129 = sphi 0, %s128
    %s145 = sphi 0, %s129
  $region4: #{a_call__.6} parent=0 // loop_header_branch
    %13 = sbr.rel (%p11) target = $region8
  $region5: #{a_call__.6} parent=0 // loop_body
    %s15 = ssub.s32 %s10, 1
    %s16 = ssub.s32 %s10, 2
    %s23 = sadd.s32 1, %s18
    %p24 = scmp.ge.s32.totalorder %s23, 1
    %s25 = scalar_select %p24, 0, %s23
    %s26 = sadd.s32 1, %s17
    %s27 = scalar_select %p24, %s26, %s17
    %p28 = scmp.ge.s32.totalorder %s27, 2
    %s29 = scalar_select %p28, 0, %s27
    %s30 = ssub.s32 %s17, %s29
    %s31 = ssub.s32 %s18, %s25
    %s32 = sor.u32 %s30, %s31
    %p33 = scmp.eq.s32.totalorder %s32, 0
    %s35 = sadd.s32 %s34, 1
    %s36 = scalar_select %p33, %s34, %s35
    %p39 = pneg %p33
    %p40 = scmp.eq.s32.totalorder %s10, 1
    %p41 = por %p39, %p40
    %p42 = scmp.ne.s32.totalorder %s34, %s37
    %p43 = scmp.eq.s32.totalorder %s10, 0
    %p44 = por %p42, %p43
    %p45 = scmp.ne.s32.totalorder %s34, %s37
    %p46 = scmp.eq.s32.totalorder %s15, 1
    %p47 = por %p45, %p46
    %p48 = scmp.ne.s32.totalorder %s37, %s38
    %p49 = scmp.eq.s32.totalorder %s15, 0
    %p50 = por %p48, %p49
    %p51 = scmp.ne.s32.totalorder %s37, %s38
    %p52 = scmp.eq.s32.totalorder %s16, 1
    %p53 = por %p51, %p52
    %p55 = scmp.ne.s32.totalorder %s38, %s54
    %p56 = scmp.eq.s32.totalorder %s16, 0
    %p57 = por %p55, %p56
    %s59 = sadd.s32 %s58, 1
    %p62 = scmp.eq.s32.totalorder %s10, 1
    %p63 = scmp.ne.s32.totalorder %s58, %s60
    %p64 = scmp.eq.s32.totalorder %s10, 0
    %p65 = por %p63, %p64
    %p66 = scmp.ne.s32.totalorder %s58, %s60
    %p67 = scmp.eq.s32.totalorder %s15, 1
    %p68 = por %p66, %p67
    %p69 = scmp.ne.s32.totalorder %s60, %s61
    %p70 = scmp.eq.s32.totalorder %s15, 0
    %p71 = por %p69, %p70
    %p72 = scmp.ne.s32.totalorder %s60, %s61
    %p73 = scmp.eq.s32.totalorder %s16, 1
    %p74 = por %p72, %p73
    %p76 = scmp.ne.s32.totalorder %s61, %s75
    %p77 = scmp.eq.s32.totalorder %s16, 0
    %p78 = por %p76, %p77
    %s80 = sadd.s32 %s79, 1
    %p83 = scmp.eq.s32.totalorder %s10, 1
    %p84 = scmp.ne.s32.totalorder %s79, %s81
    %p85 = scmp.eq.s32.totalorder %s10, 0
    %p86 = por %p84, %p85
    %p87 = scmp.ne.s32.totalorder %s79, %s81
    %p88 = scmp.eq.s32.totalorder %s15, 1
    %p89 = por %p87, %p88
    %p90 = scmp.ne.s32.totalorder %s81, %s82
    %p91 = scmp.eq.s32.totalorder %s15, 0
    %p92 = por %p90, %p91
    %p93 = scmp.ne.s32.totalorder %s81, %s82
    %p94 = scmp.eq.s32.totalorder %s16, 1
    %p95 = por %p93, %p94
    %p97 = scmp.ne.s32.totalorder %s82, %s96
    %p98 = scmp.eq.s32.totalorder %s16, 0
    %p99 = por %p97, %p98
    %s101 = sadd.s32 %s100, 1
    %p104 = scmp.eq.s32.totalorder %s10, 1
    %p105 = scmp.ne.s32.totalorder %s100, %s102
    %p106 = scmp.eq.s32.totalorder %s10, 0
    %p107 = por %p105, %p106
    %p108 = scmp.ne.s32.totalorder %s100, %s102
    %p109 = scmp.eq.s32.totalorder %s15, 1
    %p110 = por %p108, %p109
    %p111 = scmp.ne.s32.totalorder %s102, %s103
    %p112 = scmp.eq.s32.totalorder %s15, 0
    %p113 = por %p111, %p112
    %p114 = scmp.ne.s32.totalorder %s102, %s103
    %p115 = scmp.eq.s32.totalorder %s16, 1
    %p116 = por %p114, %p115
    %p118 = scmp.ne.s32.totalorder %s103, %s117
    %p119 = scmp.eq.s32.totalorder %s16, 0
    %p120 = por %p118, %p119
    %s121 = ssub.s32 %s17, %s29
    %s122 = ssub.s32 %s18, %s25
    %s123 = sor.u32 %s121, %s122
    %p124 = scmp.eq.s32.totalorder %s123, 0
    %s126 = sadd.s32 %s125, 1
    %s127 = scalar_select %p124, %s125, %s126
    %p130 = pneg %p124
    %p131 = scmp.eq.s32.totalorder %s10, 1
    %p132 = por %p130, %p131
    %p133 = scmp.ne.s32.totalorder %s125, %s128
    %p134 = scmp.eq.s32.totalorder %s10, 0
    %p135 = por %p133, %p134
    %p136 = scmp.ne.s32.totalorder %s125, %s128
    %p137 = scmp.eq.s32.totalorder %s15, 1
    %p138 = por %p136, %p137
    %p139 = scmp.ne.s32.totalorder %s128, %s129
    %p140 = scmp.eq.s32.totalorder %s15, 0
    %p141 = por %p139, %p140
    %p142 = scmp.ne.s32.totalorder %s128, %s129
    %p143 = scmp.eq.s32.totalorder %s16, 1
    %p144 = por %p142, %p143
    %p146 = scmp.ne.s32.totalorder %s129, %s145
    %p147 = scmp.eq.s32.totalorder %s16, 0
    %p148 = por %p146, %p147
    %p149 = scmp.le.s32.totalorder 1, %s10
    %p150 = scmp.lt.s32.totalorder %s10, 3
    %p151 = pnand %p149, %p150
    %p152 = pneg %p151
    // Predicated region
    $region9: #{a_call__.6} parent=5 // pred_check
      _
    $region10: #{a_call__.6} parent=5 // pred_check_branch
      %154 = sbr.rel (%p151) target = $region12
    $region11: #{a_call__.6} parent=5 // pred_region
      %s155 = ssub.s32 %s10, 1
      // Predicated region
      $region13: #{a_call__.6} parent=11 // pred_check
        %p156 = pneg %p71
      $region14: #{a_call__.6} parent=11 // pred_check_branch
        %158 = sbr.rel (%p156) target = $region16
      $region15: #{a_call__.6} parent=11 // pred_region
        _
      $region16: #{a_call__.6} parent=11 // pred_fallthru
        _
      // Predicated region
      $region17: #{a_call__.6} parent=11 // pred_check
        %p159 = pneg %p92
      $region18: #{a_call__.6} parent=11 // pred_check_branch
        %161 = sbr.rel (%p159) target = $region20
      $region19: #{a_call__.6} parent=11 // pred_region
        _
      $region20: #{a_call__.6} parent=11 // pred_fallthru
        _
      // Predicated region
      $region21: #{a_call__.6} parent=11 // pred_check
        %p162 = pneg %p113
      $region22: #{a_call__.6} parent=11 // pred_check_branch
        %164 = sbr.rel (%p162) target = $region24
      $region23: #{a_call__.6} parent=11 // pred_region
        _
      $region24: #{a_call__.6} parent=11 // pred_fallthru
        _
    $region12: #{a_call__.6} parent=5 // pred_fallthru
      _
    %p165 = scmp.lt.s32.totalorder %s10, 2
    // Predicated region
    $region25: #{a_call__.6} parent=5 // pred_check
      %p166 = pneg %p165
    $region26: #{a_call__.6} parent=5 // pred_check_branch
      %168 = sbr.rel (%p166) target = $region28
    $region27: #{a_call__.6} parent=5 // pred_region
      // Predicated region
      $region29: #{a_call__.6} parent=27 // pred_check
        %p169 = pneg %p44
      $region30: #{a_call__.6} parent=27 // pred_check_branch
        %171 = sbr.rel (%p169) target = $region32
      $region31: #{a_call__.6} parent=27 // pred_region
        %p172 = scmp.lt.s32.totalorder %s17, 1
        %s173 = scalar_select %p172, %s17, 1
        %p174 = scmp.lt.s32.totalorder %s18, 0
        %s175 = scalar_select %p174, %s18, 0
        %s176 = smul.addr %s173, 8
        %s177 = sadd.s32 %s175, %s176
        %s178 = smul.addr %s177, 8
        %s179 = scalar_lea.vmem %s0, %s178
      $region32: #{a_call__.6} parent=27 // pred_fallthru
        _
    $region28: #{a_call__.6} parent=5 // pred_fallthru
      _
    %p180 = scmp.le.s32.totalorder 1, %s10
    %p181 = scmp.lt.s32.totalorder %s10, 3
    %p182 = pnand %p180, %p181
    %p183 = pneg %p182
    // Predicated region
    $region33: #{a_call__.6} parent=5 // pred_check
      _
    $region34: #{a_call__.6} parent=5 // pred_check_branch
      %185 = sbr.rel (%p182) target = $region36
    $region35: #{a_call__.6} parent=5 // pred_region
      %s186 = ssub.s32 %s10, 1
      %p187 = scmp.lt.s32.totalorder %s19, 1
      %s188 = scalar_select %p187, %s19, 1
      %p189 = scmp.lt.s32.totalorder %s20, 0
      %s190 = scalar_select %p189, %s20, 0
      %s191 = smul.addr %s188, 8
      %s192 = sadd.s32 %s190, %s191
      %s193 = smul.addr %s192, 8
      %s194 = scalar_lea.vmem %s0, %s193
      %p195 = pneg %p50
      %p196 = pneg %p47
      %p197 = pneg %p71
      %p198 = pneg %p68
      %p199 = pneg %p92
      %p200 = pneg %p89
      %p201 = pneg %p113
      %p202 = pneg %p110
      %p203 = pneg %p141
      %p204 = pneg %p138
      %p205 = scmp.lt.s32.totalorder %s19, 1
      %s206 = scalar_select %p205, %s19, 1
      %p207 = scmp.lt.s32.totalorder %s20, 0
      %s208 = scalar_select %p207, %s20, 0
      %s209 = smul.addr %s206, 4
      %s210 = sadd.s32 %s208, %s209
      %s211 = smul.addr %s210, 4
      %s212 = scalar_lea.vmem %s4, %s211
      %p213 = scmp.lt.s32.totalorder %s19, 1
      %s214 = scalar_select %p213, %s19, 1
      %p215 = scmp.lt.s32.totalorder %s20, 0
      %s216 = scalar_select %p215, %s20, 0
      %s217 = smul.addr %s214, 8
      %s218 = sadd.s32 %s216, %s217
      %s219 = smul.addr %s218, 8
      %s220 = scalar_lea.vmem %s0, %s219
      %p221 = scmp.lt.s32.totalorder %s19, 1
      %s222 = scalar_select %p221, %s19, 1
      %p223 = scmp.lt.s32.totalorder %s20, 0
      %s224 = scalar_select %p223, %s20, 0
      %s225 = smul.addr %s222, 4
      %s226 = sadd.s32 %s224, %s225
      %s227 = smul.addr %s226, 4
      %s228 = scalar_lea.vmem %s4, %s227
      %v230 = vld [vmem:[%s220] sm:$0xff]
      %v231 = vld [vmem:[%s220 + $0x8] sm:$0xff]
      %v232 = vld [vmem:[%s220 + $0x10] sm:$0xff]
      %v233 = vld [vmem:[%s220 + $0x18] sm:$0xff]
      %v234 = vld [vmem:[%s220 + $0x20] sm:$0xff]
      %v235 = vld [vmem:[%s220 + $0x28] sm:$0xff]
      %v236 = vld [vmem:[%s220 + $0x30] sm:$0xff]
      %v237 = vld [vmem:[%s220 + $0x38] sm:$0xff]
      %v238 = vld [vmem:[%s1] sm:$0xff]
      %v239 = vld [vmem:[%s1 + $0x8] sm:$0xff]
      %v240 = vld [vmem:[%s1 + $0x10] sm:$0xff]
      %v241 = vld [vmem:[%s1 + $0x18] sm:$0xff]
      %v242 = vld [vmem:[%s1 + $0x20] sm:$0xff]
      %v243 = vld [vmem:[%s1 + $0x28] sm:$0xff]
      %v244 = vld [vmem:[%s1 + $0x30] sm:$0xff]
      %v245 = vld [vmem:[%s1 + $0x38] sm:$0xff]
      %247 = vset.pattern.permute.xlu0 0
      %248 = vperm.xlu0 %247, %v238
      %v249 = vpop.permute.xlu0 %248
      %252 = vset.pattern.permute.xlu0 0
      %253 = vperm.xlu0 %252, %v239
      %v254 = vpop.permute.xlu0 %253
      %257 = vset.pattern.permute.xlu0 0
      %258 = vperm.xlu0 %257, %v240
      %v259 = vpop.permute.xlu0 %258
      %262 = vset.pattern.permute.xlu0 0
      %263 = vperm.xlu0 %262, %v241
      %v264 = vpop.permute.xlu0 %263
      %267 = vset.pattern.permute.xlu0 0
      %268 = vperm.xlu0 %267, %v242
      %v269 = vpop.permute.xlu0 %268
      %272 = vset.pattern.permute.xlu0 0
      %273 = vperm.xlu0 %272, %v243
      %v274 = vpop.permute.xlu0 %273
      %277 = vset.pattern.permute.xlu0 0
      %278 = vperm.xlu0 %277, %v244
      %v279 = vpop.permute.xlu0 %278
      %282 = vset.pattern.permute.xlu0 0
      %283 = vperm.xlu0 %282, %v245
      %v284 = vpop.permute.xlu0 %283
      %v286 = vmul.f32 %v230, %v249
      %v287 = vmul.f32 %v231, %v254
      %v288 = vmul.f32 %v232, %v259
      %v289 = vmul.f32 %v233, %v264
      %v290 = vmul.f32 %v234, %v269
      %v291 = vmul.f32 %v235, %v274
      %v292 = vmul.f32 %v236, %v279
      %v293 = vmul.f32 %v237, %v284
      %v294 = vld [vmem:[%s2] sm:$0xff]
      %v295 = vld [vmem:[%s2 + $0x8] sm:$0xff]
      %v296 = vld [vmem:[%s2 + $0x10] sm:$0xff]
      %v297 = vld [vmem:[%s2 + $0x18] sm:$0xff]
      %v298 = vld [vmem:[%s2 + $0x20] sm:$0xff]
      %v299 = vld [vmem:[%s2 + $0x28] sm:$0xff]
      %v300 = vld [vmem:[%s2 + $0x30] sm:$0xff]
      %v301 = vld [vmem:[%s2 + $0x38] sm:$0xff]
      %303 = vset.pattern.permute.xlu0 0
      %304 = vperm.xlu0 %303, %v294
      %v305 = vpop.permute.xlu0 %304
      %308 = vset.pattern.permute.xlu0 0
      %309 = vperm.xlu0 %308, %v295
      %v310 = vpop.permute.xlu0 %309
      %313 = vset.pattern.permute.xlu0 0
      %314 = vperm.xlu0 %313, %v296
      %v315 = vpop.permute.xlu0 %314
      %318 = vset.pattern.permute.xlu0 0
      %319 = vperm.xlu0 %318, %v297
      %v320 = vpop.permute.xlu0 %319
      %323 = vset.pattern.permute.xlu0 0
      %324 = vperm.xlu0 %323, %v298
      %v325 = vpop.permute.xlu0 %324
      %328 = vset.pattern.permute.xlu0 0
      %329 = vperm.xlu0 %328, %v299
      %v330 = vpop.permute.xlu0 %329
      %333 = vset.pattern.permute.xlu0 0
      %334 = vperm.xlu0 %333, %v300
      %v335 = vpop.permute.xlu0 %334
      %338 = vset.pattern.permute.xlu0 0
      %339 = vperm.xlu0 %338, %v301
      %v340 = vpop.permute.xlu0 %339
      %v342 = vadd.f32 %v286, %v305
      %v343 = vadd.f32 %v287, %v310
      %v344 = vadd.f32 %v288, %v315
      %v345 = vadd.f32 %v289, %v320
      %v346 = vadd.f32 %v290, %v325
      %v347 = vadd.f32 %v291, %v330
      %v348 = vadd.f32 %v292, %v335
      %v349 = vadd.f32 %v293, %v340
      %v350 = vmax.f32 %v342, 0.0
      %v351 = vmax.f32 %v343, 0.0
      %v352 = vmax.f32 %v344, 0.0
      %v353 = vmax.f32 %v345, 0.0
      %v354 = vmax.f32 %v346, 0.0
      %v355 = vmax.f32 %v347, 0.0
      %v356 = vmax.f32 %v348, 0.0
      %v357 = vmax.f32 %v349, 0.0
      %v358 = vld [vmem:[%s3] sm:$0xf]
      %v359 = vld [vmem:[%s3 + $0x4] sm:$0xf]
      %v360 = vld [vmem:[%s3 + $0x8] sm:$0xf]
      %v361 = vld [vmem:[%s3 + $0xc] sm:$0xf]
      %v362 = vpack.c.bf16 %v351, %v350
      %v363 = vpack.c.bf16 %v353, %v352
      %v364 = vpack.c.bf16 %v355, %v354
      %v365 = vpack.c.bf16 %v357, %v356
      %v370 = vunpack.c.l.b16 %v358
      %v371 = vunpack.c.l.b16 %v359
      %v372 = vunpack.c.l.b16 %v360
      %v373 = vunpack.c.l.b16 %v361
      %v374 = vpack.c.b16 %v371, %v370
      %v375 = vpack.c.b16 %v373, %v372
      %vm376 = vcmask 523264
      %v378 = vsel %vm376, %v374, 0
      %v381 = vsel %vm376, %v375, 0
      %383 = vmatpush.bf16.msra.mxu0 0
      %384 = vmatpush.bf16.msra.mxu0 0
      %385 = vmatpush.bf16.msra.mxu0 0
      %386 = vmatpush.bf16.msra.mxu0 0
      %387 = vmatpush.bf16.msra.mxu0 %v365
      %388 = vmatpush.bf16.msra.mxu0 %v364
      %389 = vmatpush.bf16.msra.mxu0 %v363
      %390 = vmatpush.bf16.msra.mxu0 %v362
      %391 = vmatmul.bf16.gmra.mxu0 %v378
      %v392 = vpop.f32.mrf.mxu0
      %v393 = vadd.f32 0.0, %v392
      %v394 = vpop.f32.mrf.mxu0
      %v395 = vadd.f32 0.0, %v394
      %396 = vmatmul.bf16.gmra.mxu0 %v381
      %v397 = vpop.f32.mrf.mxu0
      %v398 = vadd.f32 0.0, %v397
      %v399 = vpop.f32.mrf.mxu0
      %v400 = vadd.f32 0.0, %v399
      %401 = vdwg.mxu0
      %v402 = vpack.c.bf16 %v393, %v393
      %v403 = vpack.c.bf16 %v395, %v395
      %v404 = vpack.c.bf16 %v398, %v398
      %v405 = vpack.c.bf16 %v400, %v400
      %vm406 = vcmask 289792
      %407 = vst.msk [vmem:[%s228] sm:$0xf] %vm406, %v402
      %408 = vst.msk [vmem:[%s228 + $0x4] sm:$0xf] %vm406, %v403
      %409 = vst.msk [vmem:[%s228 + $0x8] sm:$0xf] %vm406, %v404
      %410 = vst.msk [vmem:[%s228 + $0xc] sm:$0xf] %vm406, %v405
      %p411 = scmp.lt.s32.totalorder %s19, 1
      %s412 = scalar_select %p411, %s19, 1
      %p413 = scmp.lt.s32.totalorder %s20, 0
      %s414 = scalar_select %p413, %s20, 0
      %s415 = smul.addr %s412, 4
      %s416 = sadd.s32 %s414, %s415
      %s417 = smul.addr %s416, 4
      %s418 = scalar_lea.vmem %s4, %s417
      // Predicated region
      $region37: #{a_call__.6} parent=35 // pred_check
        %p419 = pneg %p138
      $region38: #{a_call__.6} parent=35 // pred_check_branch
        %421 = sbr.rel (%p419) target = $region40
      $region39: #{a_call__.6} parent=35 // pred_region
        _
      $region40: #{a_call__.6} parent=35 // pred_fallthru
        _
    $region36: #{a_call__.6} parent=5 // pred_fallthru
      _
    %p422 = scmp.le.s32.totalorder 2, %s10
    // Predicated region
    $region41: #{a_call__.6} parent=5 // pred_check
      %p423 = pneg %p422
    $region42: #{a_call__.6} parent=5 // pred_check_branch
      %425 = sbr.rel (%p423) target = $region44
    $region43: #{a_call__.6} parent=5 // pred_region
      %s426 = ssub.s32 %s10, 2
      // Predicated region
      $region45: #{a_call__.6} parent=43 // pred_check
        %p427 = pneg %p144
      $region46: #{a_call__.6} parent=43 // pred_check_branch
        %429 = sbr.rel (%p427) target = $region48
      $region47: #{a_call__.6} parent=43 // pred_region
        %p430 = scmp.lt.s32.totalorder %s21, 1
        %s431 = scalar_select %p430, %s21, 1
        %p432 = scmp.lt.s32.totalorder %s22, 0
        %s433 = scalar_select %p432, %s22, 0
        %s434 = smul.addr %s431, 4
        %s435 = sadd.s32 %s433, %s434
        %s436 = smul.addr %s435, 4
        %s437 = scalar_lea.vmem %s4, %s436
      $region48: #{a_call__.6} parent=43 // pred_fallthru
        _
    $region44: #{a_call__.6} parent=5 // pred_fallthru
      _
  $region6: #{a_call__.6} parent=0 // loop_footer
    %s14 = sadd.s32 1, %s10
  $region7: #{a_call__.6} parent=0 // loop_footer_branch
    %9 = sbr.rel target = $region3
  $region8: #{a_call__.6} parent=0 // loop_exit
    _

// kernel: a_call__.9
$region0: #{a_call__.9}
  #allocation0 [shape = 'u32[]', space=smem, size = 0x4, offset = 0x4, fixed_abs, tag = 'smem constant byte address 0x4 - core index']
  #allocation1 [shape = 'u32[72,128]{1,0:T(1,128)}', space=vmem, size = 0x9000, scoped, tag = 'internal scratch']
  #allocation2 [shape = 'bf16[160,256]{1,0:T(8,128)(2,1)}', space=vmem, size = 0x14000, scoped, tag = 'scratch operand']
  %s0 = inlined_call_operand.vmem [shape: bf16[2,64,256], index: 0, kind: input, shape index: {}]
  %s1 = inlined_call_operand.vmem [shape: bf16[2,32,36], index: 1, kind: input, shape index: {}]
  %s2 = inlined_call_operand.vmem [shape: bf16[2,32,9], index: 2, kind: input, shape index: {}]
  %s3 = inlined_call_operand.vmem [shape: bf16[2,32,4], index: 3, kind: input, shape index: {}]
  %s4 = inlined_call_operand.vmem [shape: f32[36,256], index: 4, kind: input, shape index: {}]
  %s5 = inlined_call_operand.vmem [shape: f32[9,256], index: 5, kind: input, shape index: {}]
  %s6 = inlined_call_operand.vmem [shape: f32[4,256], index: 6, kind: input, shape index: {}]
  %s7 = inlined_call_operand.vmem [shape: f32[64,1], index: 7, kind: input, shape index: {}]
  %s8 = inlined_call_operand.vmem [shape: f32[32,1], index: 8, kind: input, shape index: {}]
  %s9 = inlined_call_operand.vmem [shape: f32[32,1], index: 9, kind: input, shape index: {}]
  %s10 = inlined_call_operand.vmem [shape: f32[32,1], index: 10, kind: input, shape index: {}]
  %s11 = inlined_call_operand.vmem [shape: f32[64,1], index: 11, kind: input, shape index: {}]
  %s12 = inlined_call_operand.vmem [shape: f32[32,1], index: 12, kind: input, shape index: {}]
  %s13 = inlined_call_operand.vmem [shape: f32[32,1], index: 13, kind: input, shape index: {}]
  %s14 = inlined_call_operand.vmem [shape: f32[32,1], index: 14, kind: input, shape index: {}]
  %s15 = inlined_call_operand.vmem [shape: bf16[32,160], index: 15, kind: input, shape index: {}]
  %s16 = inlined_call_operand.vmem [shape: f32[2,32,256], index: 16, kind: output, shape index: {}]
  %s17 = sld [smem:[#allocation0]]
  $region97: #{a_call__.9} parent=0
    _
  %s19 = ssub.s32 1, %s17
  %s20 = scalar_select 0, %s19, %s17
  loop: start=0, step=1, limit=4
  $region2: #{a_call__.9} parent=0 // loop_pre_header
    _
  $region3: #{a_call__.9} parent=0 // loop_header
    %s22 = sphi 0, %s26
    %p23 = scmp.ge.s32.totalorder %s22, 4
    %s29 = sphi 0, %s41
    %s30 = sphi 0, %s37
    %s31 = sphi 0, %s29
    %s32 = sphi 0, %s30
    %s33 = sphi 0, %s31
    %s34 = sphi 0, %s32
    %s46 = sphi 0, %s48
    %s49 = sphi 0, %s46
    %s50 = sphi 0, %s49
    %s66 = sphi 0, %s50
    %s72 = sphi 0, %s74
    %s75 = sphi 0, %s72
    %s76 = sphi 0, %s75
    %s92 = sphi 0, %s76
    %s98 = sphi 0, %s100
    %s101 = sphi 0, %s98
    %s102 = sphi 0, %s101
    %s118 = sphi 0, %s102
    %s124 = sphi 0, %s126
    %s127 = sphi 0, %s124
    %s128 = sphi 0, %s127
    %s144 = sphi 0, %s128
    %s150 = sphi 0, %s152
    %s153 = sphi 0, %s150
    %s154 = sphi 0, %s153
    %s170 = sphi 0, %s154
    %s176 = sphi 0, %s178
    %s179 = sphi 0, %s176
    %s180 = sphi 0, %s179
    %s196 = sphi 0, %s180
    %s202 = sphi 0, %s204
    %s205 = sphi 0, %s202
    %s206 = sphi 0, %s205
    %s222 = sphi 0, %s206
    %s226 = sphi 0, %s226
    %s228 = sphi 0, %s226
    %s229 = sphi 0, %s228
    %s243 = sphi 0, %s229
    %s247 = sphi 0, %s247
    %s249 = sphi 0, %s247
    %s250 = sphi 0, %s249
    %s264 = sphi 0, %s250
    %s268 = sphi 0, %s268
    %s270 = sphi 0, %s268
    %s271 = sphi 0, %s270
    %s285 = sphi 0, %s271
    %s289 = sphi 0, %s289
    %s291 = sphi 0, %s289
    %s292 = sphi 0, %s291
    %s306 = sphi 0, %s292
    %s310 = sphi 0, %s310
    %s312 = sphi 0, %s310
    %s313 = sphi 0, %s312
    %s327 = sphi 0, %s313
    %s331 = sphi 0, %s331
    %s333 = sphi 0, %s331
    %s334 = sphi 0, %s333
    %s348 = sphi 0, %s334
    %s352 = sphi 0, %s352
    %s354 = sphi 0, %s352
    %s355 = sphi 0, %s354
    %s369 = sphi 0, %s355
    %s373 = sphi 0, %s373
    %s375 = sphi 0, %s373
    %s376 = sphi 0, %s375
    %s390 = sphi 0, %s376
    %s394 = sphi 0, %s394
    %s396 = sphi 0, %s394
    %s397 = sphi 0, %s396
    %s411 = sphi 0, %s397
    %s419 = sphi 0, %s421
    %s422 = sphi 0, %s419
    %s423 = sphi 0, %s422
    %s439 = sphi 0, %s423
  $region4: #{a_call__.9} parent=0 // loop_header_branch
    %25 = sbr.rel (%p23) target = $region8
  $region5: #{a_call__.9} parent=0 // loop_body
    %s27 = ssub.s32 %s22, 1
    %s28 = ssub.s32 %s22, 2
    %s35 = sadd.s32 1, %s30
    %p36 = scmp.ge.s32.totalorder %s35, 1
    %s37 = scalar_select %p36, 0, %s35
    %s38 = sadd.s32 1, %s29
    %s39 = scalar_select %p36, %s38, %s29
    %p40 = scmp.ge.s32.totalorder %s39, 2
    %s41 = scalar_select %p40, 0, %s39
    %s42 = ssub.s32 %s29, %s41
    %s43 = ssub.s32 %s30, %s37
    %s44 = sor.u32 %s42, %s43
    %p45 = scmp.eq.s32.totalorder %s44, 0
    %s47 = sadd.s32 %s46, 1
    %s48 = scalar_select %p45, %s46, %s47
    %p51 = pneg %p45
    %p52 = scmp.eq.s32.totalorder %s22, 1
    %p53 = por %p51, %p52
    %p54 = scmp.ne.s32.totalorder %s46, %s49
    %p55 = scmp.eq.s32.totalorder %s22, 0
    %p56 = por %p54, %p55
    %p57 = scmp.ne.s32.totalorder %s46, %s49
    %p58 = scmp.eq.s32.totalorder %s27, 1
    %p59 = por %p57, %p58
    %p60 = scmp.ne.s32.totalorder %s49, %s50
    %p61 = scmp.eq.s32.totalorder %s27, 0
    %p62 = por %p60, %p61
    %p63 = scmp.ne.s32.totalorder %s49, %s50
    %p64 = scmp.eq.s32.totalorder %s28, 1
    %p65 = por %p63, %p64
    %p67 = scmp.ne.s32.totalorder %s50, %s66
    %p68 = scmp.eq.s32.totalorder %s28, 0
    %p69 = por %p67, %p68
    %s70 = ssub.s32 %s29, %s41
    %p71 = scmp.eq.s32.totalorder %s70, 0
    %s73 = sadd.s32 %s72, 1
    %s74 = scalar_select %p71, %s72, %s73
    %p77 = pneg %p71
    %p78 = scmp.eq.s32.totalorder %s22, 1
    %p79 = por %p77, %p78
    %p80 = scmp.ne.s32.totalorder %s72, %s75
    %p81 = scmp.eq.s32.totalorder %s22, 0
    %p82 = por %p80, %p81
    %p83 = scmp.ne.s32.totalorder %s72, %s75
    %p84 = scmp.eq.s32.totalorder %s27, 1
    %p85 = por %p83, %p84
    %p86 = scmp.ne.s32.totalorder %s75, %s76
    %p87 = scmp.eq.s32.totalorder %s27, 0
    %p88 = por %p86, %p87
    %p89 = scmp.ne.s32.totalorder %s75, %s76
    %p90 = scmp.eq.s32.totalorder %s28, 1
    %p91 = por %p89, %p90
    %p93 = scmp.ne.s32.totalorder %s76, %s92
    %p94 = scmp.eq.s32.totalorder %s28, 0
    %p95 = por %p93, %p94
    %s96 = ssub.s32 %s29, %s41
    %p97 = scmp.eq.s32.totalorder %s96, 0
    %s99 = sadd.s32 %s98, 1
    %s100 = scalar_select %p97, %s98, %s99
    %p103 = pneg %p97
    %p104 = scmp.eq.s32.totalorder %s22, 1
    %p105 = por %p103, %p104
    %p106 = scmp.ne.s32.totalorder %s98, %s101
    %p107 = scmp.eq.s32.totalorder %s22, 0
    %p108 = por %p106, %p107
    %p109 = scmp.ne.s32.totalorder %s98, %s101
    %p110 = scmp.eq.s32.totalorder %s27, 1
    %p111 = por %p109, %p110
    %p112 = scmp.ne.s32.totalorder %s101, %s102
    %p113 = scmp.eq.s32.totalorder %s27, 0
    %p114 = por %p112, %p113
    %p115 = scmp.ne.s32.totalorder %s101, %s102
    %p116 = scmp.eq.s32.totalorder %s28, 1
    %p117 = por %p115, %p116
    %p119 = scmp.ne.s32.totalorder %s102, %s118
    %p120 = scmp.eq.s32.totalorder %s28, 0
    %p121 = por %p119, %p120
    %s122 = ssub.s32 %s29, %s41
    %p123 = scmp.eq.s32.totalorder %s122, 0
    %s125 = sadd.s32 %s124, 1
    %s126 = scalar_select %p123, %s124, %s125
    %p129 = pneg %p123
    %p130 = scmp.eq.s32.totalorder %s22, 1
    %p131 = por %p129, %p130
    %p132 = scmp.ne.s32.totalorder %s124, %s127
    %p133 = scmp.eq.s32.totalorder %s22, 0
    %p134 = por %p132, %p133
    %p135 = scmp.ne.s32.totalorder %s124, %s127
    %p136 = scmp.eq.s32.totalorder %s27, 1
    %p137 = por %p135, %p136
    %p138 = scmp.ne.s32.totalorder %s127, %s128
    %p139 = scmp.eq.s32.totalorder %s27, 0
    %p140 = por %p138, %p139
    %p141 = scmp.ne.s32.totalorder %s127, %s128
    %p142 = scmp.eq.s32.totalorder %s28, 1
    %p143 = por %p141, %p142
    %p145 = scmp.ne.s32.totalorder %s128, %s144
    %p146 = scmp.eq.s32.totalorder %s28, 0
    %p147 = por %p145, %p146
    %s148 = ssub.s32 %s30, %s37
    %p149 = scmp.eq.s32.totalorder %s148, 0
    %s151 = sadd.s32 %s150, 1
    %s152 = scalar_select %p149, %s150, %s151
    %p155 = pneg %p149
    %p156 = scmp.eq.s32.totalorder %s22, 1
    %p157 = por %p155, %p156
    %p158 = scmp.ne.s32.totalorder %s150, %s153
    %p159 = scmp.eq.s32.totalorder %s22, 0
    %p160 = por %p158, %p159
    %p161 = scmp.ne.s32.totalorder %s150, %s153
    %p162 = scmp.eq.s32.totalorder %s27, 1
    %p163 = por %p161, %p162
    %p164 = scmp.ne.s32.totalorder %s153, %s154
    %p165 = scmp.eq.s32.totalorder %s27, 0
    %p166 = por %p164, %p165
    %p167 = scmp.ne.s32.totalorder %s153, %s154
    %p168 = scmp.eq.s32.totalorder %s28, 1
    %p169 = por %p167, %p168
    %p171 = scmp.ne.s32.totalorder %s154, %s170
    %p172 = scmp.eq.s32.totalorder %s28, 0
    %p173 = por %p171, %p172
    %s174 = ssub.s32 %s30, %s37
    %p175 = scmp.eq.s32.totalorder %s174, 0
    %s177 = sadd.s32 %s176, 1
    %s178 = scalar_select %p175, %s176, %s177
    %p181 = pneg %p175
    %p182 = scmp.eq.s32.totalorder %s22, 1
    %p183 = por %p181, %p182
    %p184 = scmp.ne.s32.totalorder %s176, %s179
    %p185 = scmp.eq.s32.totalorder %s22, 0
    %p186 = por %p184, %p185
    %p187 = scmp.ne.s32.totalorder %s176, %s179
    %p188 = scmp.eq.s32.totalorder %s27, 1
    %p189 = por %p187, %p188
    %p190 = scmp.ne.s32.totalorder %s179, %s180
    %p191 = scmp.eq.s32.totalorder %s27, 0
    %p192 = por %p190, %p191
    %p193 = scmp.ne.s32.totalorder %s179, %s180
    %p194 = scmp.eq.s32.totalorder %s28, 1
    %p195 = por %p193, %p194
    %p197 = scmp.ne.s32.totalorder %s180, %s196
    %p198 = scmp.eq.s32.totalorder %s28, 0
    %p199 = por %p197, %p198
    %s200 = ssub.s32 %s30, %s37
    %p201 = scmp.eq.s32.totalorder %s200, 0
    %s203 = sadd.s32 %s202, 1
    %s204 = scalar_select %p201, %s202, %s203
    %p207 = pneg %p201
    %p208 = scmp.eq.s32.totalorder %s22, 1
    %p209 = por %p207, %p208
    %p210 = scmp.ne.s32.totalorder %s202, %s205
    %p211 = scmp.eq.s32.totalorder %s22, 0
    %p212 = por %p210, %p211
    %p213 = scmp.ne.s32.totalorder %s202, %s205
    %p214 = scmp.eq.s32.totalorder %s27, 1
    %p215 = por %p213, %p214
    %p216 = scmp.ne.s32.totalorder %s205, %s206
    %p217 = scmp.eq.s32.totalorder %s27, 0
    %p218 = por %p216, %p217
    %p219 = scmp.ne.s32.totalorder %s205, %s206
    %p220 = scmp.eq.s32.totalorder %s28, 1
    %p221 = por %p219, %p220
    %p223 = scmp.ne.s32.totalorder %s206, %s222
    %p224 = scmp.eq.s32.totalorder %s28, 0
    %p225 = por %p223, %p224
    %s227 = sadd.s32 %s226, 1
    %p230 = scmp.eq.s32.totalorder %s22, 1
    %p231 = scmp.ne.s32.totalorder %s226, %s228
    %p232 = scmp.eq.s32.totalorder %s22, 0
    %p233 = por %p231, %p232
    %p234 = scmp.ne.s32.totalorder %s226, %s228
    %p235 = scmp.eq.s32.totalorder %s27, 1
    %p236 = por %p234, %p235
    %p237 = scmp.ne.s32.totalorder %s228, %s229
    %p238 = scmp.eq.s32.totalorder %s27, 0
    %p239 = por %p237, %p238
    %p240 = scmp.ne.s32.totalorder %s228, %s229
    %p241 = scmp.eq.s32.totalorder %s28, 1
    %p242 = por %p240, %p241
    %p244 = scmp.ne.s32.totalorder %s229, %s243
    %p245 = scmp.eq.s32.totalorder %s28, 0
    %p246 = por %p244, %p245
    %s248 = sadd.s32 %s247, 1
    %p251 = scmp.eq.s32.totalorder %s22, 1
    %p252 = scmp.ne.s32.totalorder %s247, %s249
    %p253 = scmp.eq.s32.totalorder %s22, 0
    %p254 = por %p252, %p253
    %p255 = scmp.ne.s32.totalorder %s247, %s249
    %p256 = scmp.eq.s32.totalorder %s27, 1
    %p257 = por %p255, %p256
    %p258 = scmp.ne.s32.totalorder %s249, %s250
    %p259 = scmp.eq.s32.totalorder %s27, 0
    %p260 = por %p258, %p259
    %p261 = scmp.ne.s32.totalorder %s249, %s250
    %p262 = scmp.eq.s32.totalorder %s28, 1
    %p263 = por %p261, %p262
    %p265 = scmp.ne.s32.totalorder %s250, %s264
    %p266 = scmp.eq.s32.totalorder %s28, 0
    %p267 = por %p265, %p266
    %s269 = sadd.s32 %s268, 1
    %p272 = scmp.eq.s32.totalorder %s22, 1
    %p273 = scmp.ne.s32.totalorder %s268, %s270
    %p274 = scmp.eq.s32.totalorder %s22, 0
    %p275 = por %p273, %p274
    %p276 = scmp.ne.s32.totalorder %s268, %s270
    %p277 = scmp.eq.s32.totalorder %s27, 1
    %p278 = por %p276, %p277
    %p279 = scmp.ne.s32.totalorder %s270, %s271
    %p280 = scmp.eq.s32.totalorder %s27, 0
    %p281 = por %p279, %p280
    %p282 = scmp.ne.s32.totalorder %s270, %s271
    %p283 = scmp.eq.s32.totalorder %s28, 1
    %p284 = por %p282, %p283
    %p286 = scmp.ne.s32.totalorder %s271, %s285
    %p287 = scmp.eq.s32.totalorder %s28, 0
    %p288 = por %p286, %p287
    %s290 = sadd.s32 %s289, 1
    %p293 = scmp.eq.s32.totalorder %s22, 1
    %p294 = scmp.ne.s32.totalorder %s289, %s291
    %p295 = scmp.eq.s32.totalorder %s22, 0
    %p296 = por %p294, %p295
    %p297 = scmp.ne.s32.totalorder %s289, %s291
    %p298 = scmp.eq.s32.totalorder %s27, 1
    %p299 = por %p297, %p298
    %p300 = scmp.ne.s32.totalorder %s291, %s292
    %p301 = scmp.eq.s32.totalorder %s27, 0
    %p302 = por %p300, %p301
    %p303 = scmp.ne.s32.totalorder %s291, %s292
    %p304 = scmp.eq.s32.totalorder %s28, 1
    %p305 = por %p303, %p304
    %p307 = scmp.ne.s32.totalorder %s292, %s306
    %p308 = scmp.eq.s32.totalorder %s28, 0
    %p309 = por %p307, %p308
    %s311 = sadd.s32 %s310, 1
    %p314 = scmp.eq.s32.totalorder %s22, 1
    %p315 = scmp.ne.s32.totalorder %s310, %s312
    %p316 = scmp.eq.s32.totalorder %s22, 0
    %p317 = por %p315, %p316
    %p318 = scmp.ne.s32.totalorder %s310, %s312
    %p319 = scmp.eq.s32.totalorder %s27, 1
    %p320 = por %p318, %p319
    %p321 = scmp.ne.s32.totalorder %s312, %s313
    %p322 = scmp.eq.s32.totalorder %s27, 0
    %p323 = por %p321, %p322
    %p324 = scmp.ne.s32.totalorder %s312, %s313
    %p325 = scmp.eq.s32.totalorder %s28, 1
    %p326 = por %p324, %p325
    %p328 = scmp.ne.s32.totalorder %s313, %s327
    %p329 = scmp.eq.s32.totalorder %s28, 0
    %p330 = por %p328, %p329
    %s332 = sadd.s32 %s331, 1
    %p335 = scmp.eq.s32.totalorder %s22, 1
    %p336 = scmp.ne.s32.totalorder %s331, %s333
    %p337 = scmp.eq.s32.totalorder %s22, 0
    %p338 = por %p336, %p337
    %p339 = scmp.ne.s32.totalorder %s331, %s333
    %p340 = scmp.eq.s32.totalorder %s27, 1
    %p341 = por %p339, %p340
    %p342 = scmp.ne.s32.totalorder %s333, %s334
    %p343 = scmp.eq.s32.totalorder %s27, 0
    %p344 = por %p342, %p343
    %p345 = scmp.ne.s32.totalorder %s333, %s334
    %p346 = scmp.eq.s32.totalorder %s28, 1
    %p347 = por %p345, %p346
    %p349 = scmp.ne.s32.totalorder %s334, %s348
    %p350 = scmp.eq.s32.totalorder %s28, 0
    %p351 = por %p349, %p350
    %s353 = sadd.s32 %s352, 1
    %p356 = scmp.eq.s32.totalorder %s22, 1
    %p357 = scmp.ne.s32.totalorder %s352, %s354
    %p358 = scmp.eq.s32.totalorder %s22, 0
    %p359 = por %p357, %p358
    %p360 = scmp.ne.s32.totalorder %s352, %s354
    %p361 = scmp.eq.s32.totalorder %s27, 1
    %p362 = por %p360, %p361
    %p363 = scmp.ne.s32.totalorder %s354, %s355
    %p364 = scmp.eq.s32.totalorder %s27, 0
    %p365 = por %p363, %p364
    %p366 = scmp.ne.s32.totalorder %s354, %s355
    %p367 = scmp.eq.s32.totalorder %s28, 1
    %p368 = por %p366, %p367
    %p370 = scmp.ne.s32.totalorder %s355, %s369
    %p371 = scmp.eq.s32.totalorder %s28, 0
    %p372 = por %p370, %p371
    %s374 = sadd.s32 %s373, 1
    %p377 = scmp.eq.s32.totalorder %s22, 1
    %p378 = scmp.ne.s32.totalorder %s373, %s375
    %p379 = scmp.eq.s32.totalorder %s22, 0
    %p380 = por %p378, %p379
    %p381 = scmp.ne.s32.totalorder %s373, %s375
    %p382 = scmp.eq.s32.totalorder %s27, 1
    %p383 = por %p381, %p382
    %p384 = scmp.ne.s32.totalorder %s375, %s376
    %p385 = scmp.eq.s32.totalorder %s27, 0
    %p386 = por %p384, %p385
    %p387 = scmp.ne.s32.totalorder %s375, %s376
    %p388 = scmp.eq.s32.totalorder %s28, 1
    %p389 = por %p387, %p388
    %p391 = scmp.ne.s32.totalorder %s376, %s390
    %p392 = scmp.eq.s32.totalorder %s28, 0
    %p393 = por %p391, %p392
    %s395 = sadd.s32 %s394, 1
    %p398 = scmp.eq.s32.totalorder %s22, 1
    %p399 = scmp.ne.s32.totalorder %s394, %s396
    %p400 = scmp.eq.s32.totalorder %s22, 0
    %p401 = por %p399, %p400
    %p402 = scmp.ne.s32.totalorder %s394, %s396
    %p403 = scmp.eq.s32.totalorder %s27, 1
    %p404 = por %p402, %p403
    %p405 = scmp.ne.s32.totalorder %s396, %s397
    %p406 = scmp.eq.s32.totalorder %s27, 0
    %p407 = por %p405, %p406
    %p408 = scmp.ne.s32.totalorder %s396, %s397
    %p409 = scmp.eq.s32.totalorder %s28, 1
    %p410 = por %p408, %p409
    %p412 = scmp.ne.s32.totalorder %s397, %s411
    %p413 = scmp.eq.s32.totalorder %s28, 0
    %p414 = por %p412, %p413
    %s415 = ssub.s32 %s29, %s41
    %s416 = ssub.s32 %s30, %s37
    %s417 = sor.u32 %s415, %s416
    %p418 = scmp.eq.s32.totalorder %s417, 0
    %s420 = sadd.s32 %s419, 1
    %s421 = scalar_select %p418, %s419, %s420
    %p424 = pneg %p418
    %p425 = scmp.eq.s32.totalorder %s22, 1
    %p426 = por %p424, %p425
    %p427 = scmp.ne.s32.totalorder %s419, %s422
    %p428 = scmp.eq.s32.totalorder %s22, 0
    %p429 = por %p427, %p428
    %p430 = scmp.ne.s32.totalorder %s419, %s422
    %p431 = scmp.eq.s32.totalorder %s27, 1
    %p432 = por %p430, %p431
    %p433 = scmp.ne.s32.totalorder %s422, %s423
    %p434 = scmp.eq.s32.totalorder %s27, 0
    %p435 = por %p433, %p434
    %p436 = scmp.ne.s32.totalorder %s422, %s423
    %p437 = scmp.eq.s32.totalorder %s28, 1
    %p438 = por %p436, %p437
    %p440 = scmp.ne.s32.totalorder %s423, %s439
    %p441 = scmp.eq.s32.totalorder %s28, 0
    %p442 = por %p440, %p441
    %p443 = scmp.le.s32.totalorder 1, %s22
    %p444 = scmp.lt.s32.totalorder %s22, 3
    %p445 = pnand %p443, %p444
    %p446 = pneg %p445
    // Predicated region
    $region9: #{a_call__.9} parent=5 // pred_check
      _
    $region10: #{a_call__.9} parent=5 // pred_check_branch
      %448 = sbr.rel (%p445) target = $region12
    $region11: #{a_call__.9} parent=5 // pred_region
      %s449 = ssub.s32 %s22, 1
      // Predicated region
      $region13: #{a_call__.9} parent=11 // pred_check
        %p450 = pneg %p166
      $region14: #{a_call__.9} parent=11 // pred_check_branch
        %452 = sbr.rel (%p450) target = $region16
      $region15: #{a_call__.9} parent=11 // pred_region
        %s453 = smul.u32 2, %s32
        %p454 = scmp.lt.s32.totalorder %s453, 1
        %s455 = scalar_select %p454, %s453, 1
        %s456 = smul.addr %s455, 8
        %s457 = scalar_lea.vmem %s4, %s456
        %s458 = smul.u32 2, %s32
      $region16: #{a_call__.9} parent=11 // pred_fallthru
        _
      // Predicated region
      $region17: #{a_call__.9} parent=11 // pred_check
        %p459 = pneg %p192
      $region18: #{a_call__.9} parent=11 // pred_check_branch
        %461 = sbr.rel (%p459) target = $region20
      $region19: #{a_call__.9} parent=11 // pred_region
        %s462 = smul.u32 2, %s32
        %p463 = scmp.lt.s32.totalorder %s462, 1
        %s464 = scalar_select %p463, %s462, 1
        %s465 = smul.addr %s464, 8
        %s466 = scalar_lea.vmem %s5, %s465
        %s467 = smul.u32 2, %s32
      $region20: #{a_call__.9} parent=11 // pred_fallthru
        _
      // Predicated region
      $region21: #{a_call__.9} parent=11 // pred_check
        %p468 = pneg %p218
      $region22: #{a_call__.9} parent=11 // pred_check_branch
        %470 = sbr.rel (%p468) target = $region24
      $region23: #{a_call__.9} parent=11 // pred_region
        %s471 = smul.u32 2, %s32
        %p472 = scmp.lt.s32.totalorder %s471, 1
        %s473 = scalar_select %p472, %s471, 1
        %s474 = smul.addr %s473, 4
        %s475 = scalar_lea.vmem %s6, %s474
        %s476 = smul.u32 2, %s32
      $region24: #{a_call__.9} parent=11 // pred_fallthru
        _
      // Predicated region
      $region25: #{a_call__.9} parent=11 // pred_check
        %p477 = pneg %p239
      $region26: #{a_call__.9} parent=11 // pred_check_branch
        %479 = sbr.rel (%p477) target = $region28
      $region27: #{a_call__.9} parent=11 // pred_region
        _
      $region28: #{a_call__.9} parent=11 // pred_fallthru
        _
      // Predicated region
      $region29: #{a_call__.9} parent=11 // pred_check
        %p480 = pneg %p260
      $region30: #{a_call__.9} parent=11 // pred_check_branch
        %482 = sbr.rel (%p480) target = $region32
      $region31: #{a_call__.9} parent=11 // pred_region
        _
      $region32: #{a_call__.9} parent=11 // pred_fallthru
        _
      // Predicated region
      $region33: #{a_call__.9} parent=11 // pred_check
        %p483 = pneg %p281
      $region34: #{a_call__.9} parent=11 // pred_check_branch
        %485 = sbr.rel (%p483) target = $region36
      $region35: #{a_call__.9} parent=11 // pred_region
        _
      $region36: #{a_call__.9} parent=11 // pred_fallthru
        _
      // Predicated region
      $region37: #{a_call__.9} parent=11 // pred_check
        %p486 = pneg %p302
      $region38: #{a_call__.9} parent=11 // pred_check_branch
        %488 = sbr.rel (%p486) target = $region40
      $region39: #{a_call__.9} parent=11 // pred_region
        _
      $region40: #{a_call__.9} parent=11 // pred_fallthru
        _
      // Predicated region
      $region41: #{a_call__.9} parent=11 // pred_check
        %p489 = pneg %p323
      $region42: #{a_call__.9} parent=11 // pred_check_branch
        %491 = sbr.rel (%p489) target = $region44
      $region43: #{a_call__.9} parent=11 // pred_region
        _
      $region44: #{a_call__.9} parent=11 // pred_fallthru
        _
      // Predicated region
      $region45: #{a_call__.9} parent=11 // pred_check
        %p492 = pneg %p344
      $region46: #{a_call__.9} parent=11 // pred_check_branch
        %494 = sbr.rel (%p492) target = $region48
      $region47: #{a_call__.9} parent=11 // pred_region
        _
      $region48: #{a_call__.9} parent=11 // pred_fallthru
        _
      // Predicated region
      $region49: #{a_call__.9} parent=11 // pred_check
        %p495 = pneg %p365
      $region50: #{a_call__.9} parent=11 // pred_check_branch
        %497 = sbr.rel (%p495) target = $region52
      $region51: #{a_call__.9} parent=11 // pred_region
        _
      $region52: #{a_call__.9} parent=11 // pred_fallthru
        _
      // Predicated region
      $region53: #{a_call__.9} parent=11 // pred_check
        %p498 = pneg %p386
      $region54: #{a_call__.9} parent=11 // pred_check_branch
        %500 = sbr.rel (%p498) target = $region56
      $region55: #{a_call__.9} parent=11 // pred_region
        _
      $region56: #{a_call__.9} parent=11 // pred_fallthru
        _
      // Predicated region
      $region57: #{a_call__.9} parent=11 // pred_check
        %p501 = pneg %p407
      $region58: #{a_call__.9} parent=11 // pred_check_branch
        %503 = sbr.rel (%p501) target = $region60
      $region59: #{a_call__.9} parent=11 // pred_region
        _
      $region60: #{a_call__.9} parent=11 // pred_fallthru
        _
    $region12: #{a_call__.9} parent=5 // pred_fallthru
      _
    %p504 = scmp.lt.s32.totalorder %s22, 2
    // Predicated region
    $region61: #{a_call__.9} parent=5 // pred_check
      %p505 = pneg %p504
    $region62: #{a_call__.9} parent=5 // pred_check_branch
      %507 = sbr.rel (%p505) target = $region64
    $region63: #{a_call__.9} parent=5 // pred_region
      // Predicated region
      $region65: #{a_call__.9} parent=63 // pred_check
        %p508 = pneg %p56
      $region66: #{a_call__.9} parent=63 // pred_check_branch
        %510 = sbr.rel (%p508) target = $region68
      $region67: #{a_call__.9} parent=63 // pred_region
        %s511 = smul.u32 2, %s30
        %p512 = scmp.lt.s32.totalorder %s29, 1
        %s513 = scalar_select %p512, %s29, 1
        %p514 = scmp.lt.s32.totalorder %s511, 1
        %s515 = scalar_select %p514, %s511, 1
        %s516 = smul.addr %s513, 16
        %s517 = sadd.s32 %s515, %s516
        %s518 = smul.addr %s517, 4
        %s519 = scalar_lea.vmem %s0, %s518
        %s520 = smul.u32 2, %s30
      $region68: #{a_call__.9} parent=63 // pred_fallthru
        _
      // Predicated region
      $region69: #{a_call__.9} parent=63 // pred_check
        %p521 = pneg %p82
      $region70: #{a_call__.9} parent=63 // pred_check_branch
        %523 = sbr.rel (%p521) target = $region72
      $region71: #{a_call__.9} parent=63 // pred_region
        %p524 = scmp.lt.s32.totalorder %s29, 1
        %s525 = scalar_select %p524, %s29, 1
        %s526 = smul.addr %s525, 4
        %s527 = smul.addr %s526, 4
        %s528 = scalar_lea.vmem %s1, %s527
      $region72: #{a_call__.9} parent=63 // pred_fallthru
        _
      // Predicated region
      $region73: #{a_call__.9} parent=63 // pred_check
        %p529 = pneg %p108
      $region74: #{a_call__.9} parent=63 // pred_check_branch
        %531 = sbr.rel (%p529) target = $region76
      $region75: #{a_call__.9} parent=63 // pred_region
        %p532 = scmp.lt.s32.totalorder %s29, 1
        %s533 = scalar_select %p532, %s29, 1
        %s534 = smul.addr %s533, 4
        %s535 = smul.addr %s534, 4
        %s536 = scalar_lea.vmem %s2, %s535
      $region76: #{a_call__.9} parent=63 // pred_fallthru
        _
      // Predicated region
      $region77: #{a_call__.9} parent=63 // pred_check
        %p537 = pneg %p134
      $region78: #{a_call__.9} parent=63 // pred_check_branch
        %539 = sbr.rel (%p537) target = $region80
      $region79: #{a_call__.9} parent=63 // pred_region
        %p540 = scmp.lt.s32.totalorder %s29, 1
        %s541 = scalar_select %p540, %s29, 1
        %s542 = smul.addr %s541, 4
        %s543 = smul.addr %s542, 4
        %s544 = scalar_lea.vmem %s3, %s543
      $region80: #{a_call__.9} parent=63 // pred_fallthru
        _
    $region64: #{a_call__.9} parent=5 // pred_fallthru
      _
    %p545 = scmp.le.s32.totalorder 1, %s22
    %p546 = scmp.lt.s32.totalorder %s22, 3
    %p547 = pnand %p545, %p546
    %p548 = pneg %p547
    // Predicated region
    $region81: #{a_call__.9} parent=5 // pred_check
      _
    $region82: #{a_call__.9} parent=5 // pred_check_branch
      %550 = sbr.rel (%p547) target = $region84
    $region83: #{a_call__.9} parent=5 // pred_region
      %s551 = ssub.s32 %s22, 1
      %s552 = smul.u32 2, %s32
      %p553 = scmp.lt.s32.totalorder %s31, 1
      %s554 = scalar_select %p553, %s31, 1
      %p555 = scmp.lt.s32.totalorder %s552, 1
      %s556 = scalar_select %p555, %s552, 1
      %s557 = smul.addr %s554, 16
      %s558 = sadd.s32 %s556, %s557
      %s559 = smul.addr %s558, 4
      %s560 = scalar_lea.vmem %s0, %s559
      %p561 = pneg %p62
      %p562 = pneg %p59
      %p563 = scmp.lt.s32.totalorder %s31, 1
      %s564 = scalar_select %p563, %s31, 1
      %s565 = smul.addr %s564, 4
      %s566 = smul.addr %s565, 4
      %s567 = scalar_lea.vmem %s1, %s566
      %p568 = pneg %p88
      %p569 = pneg %p85
      %p570 = scmp.lt.s32.totalorder %s31, 1
      %s571 = scalar_select %p570, %s31, 1
      %s572 = smul.addr %s571, 4
      %s573 = smul.addr %s572, 4
      %s574 = scalar_lea.vmem %s2, %s573
      %p575 = pneg %p114
      %p576 = pneg %p111
      %p577 = scmp.lt.s32.totalorder %s31, 1
      %s578 = scalar_select %p577, %s31, 1
      %s579 = smul.addr %s578, 4
      %s580 = smul.addr %s579, 4
      %s581 = scalar_lea.vmem %s3, %s580
      %p582 = pneg %p140
      %p583 = pneg %p137
      %s584 = smul.u32 2, %s32
      %p585 = scmp.lt.s32.totalorder %s584, 1
      %s586 = scalar_select %p585, %s584, 1
      %s587 = smul.addr %s586, 8
      %s588 = scalar_lea.vmem %s4, %s587
      %p589 = pneg %p166
      %p590 = pneg %p163
      %s591 = smul.u32 2, %s32
      %p592 = scmp.lt.s32.totalorder %s591, 1
      %s593 = scalar_select %p592, %s591, 1
      %s594 = smul.addr %s593, 8
      %s595 = scalar_lea.vmem %s5, %s594
      %p596 = pneg %p192
      %p597 = pneg %p189
      %s598 = smul.u32 2, %s32
      %p599 = scmp.lt.s32.totalorder %s598, 1
      %s600 = scalar_select %p599, %s598, 1
      %s601 = smul.addr %s600, 4
      %s602 = scalar_lea.vmem %s6, %s601
      %p603 = pneg %p218
      %p604 = pneg %p215
      %p605 = pneg %p239
      %p606 = pneg %p236
      %p607 = pneg %p260
      %p608 = pneg %p257
      %p609 = pneg %p281
      %p610 = pneg %p278
      %p611 = pneg %p302
      %p612 = pneg %p299
      %p613 = pneg %p323
      %p614 = pneg %p320
      %p615 = pneg %p344
      %p616 = pneg %p341
      %p617 = pneg %p365
      %p618 = pneg %p362
      %p619 = pneg %p386
      %p620 = pneg %p383
      %p621 = pneg %p407
      %p622 = pneg %p404
      %p623 = pneg %p435
      %p624 = pneg %p432
      %s625 = smul.u32 2, %s32
      %p626 = scmp.lt.s32.totalorder %s31, 1
      %s627 = scalar_select %p626, %s31, 1
      %p628 = scmp.lt.s32.totalorder %s625, 1
      %s629 = scalar_select %p628, %s625, 1
      %s630 = smul.addr %s627, 8
      %s631 = sadd.s32 %s629, %s630
      %s632 = smul.addr %s631, 8
      %s633 = scalar_lea.vmem %s16, %s632
      %s634 = smul.u32 2, %s32
      %p635 = scmp.lt.s32.totalorder %s31, 1
      %s636 = scalar_select %p635, %s31, 1
      %p637 = scmp.lt.s32.totalorder %s634, 1
      %s638 = scalar_select %p637, %s634, 1
      %s639 = smul.addr %s636, 16
      %s640 = sadd.s32 %s638, %s639
      %s641 = smul.addr %s640, 4
      %s642 = scalar_lea.vmem %s0, %s641
      %s643 = smul.u32 2, %s32
      %p644 = scmp.lt.s32.totalorder %s31, 1
      %s645 = scalar_select %p644, %s31, 1
      %s646 = smul.addr %s645, 4
      %s647 = smul.addr %s646, 4
      %s648 = scalar_lea.vmem %s1, %s647
      %p649 = scmp.lt.s32.totalorder %s31, 1
      %s650 = scalar_select %p649, %s31, 1
      %s651 = smul.addr %s650, 4
      %s652 = smul.addr %s651, 4
      %s653 = scalar_lea.vmem %s2, %s652
      %p654 = scmp.lt.s32.totalorder %s31, 1
      %s655 = scalar_select %p654, %s31, 1
      %s656 = smul.addr %s655, 4
      %s657 = smul.addr %s656, 4
      %s658 = scalar_lea.vmem %s3, %s657
      %s659 = smul.u32 2, %s32
      %p660 = scmp.lt.s32.totalorder %s659, 1
      %s661 = scalar_select %p660, %s659, 1
      %s662 = smul.addr %s661, 8
      %s663 = scalar_lea.vmem %s4, %s662
      %s664 = smul.u32 2, %s32
      %s665 = smul.u32 2, %s32
      %p666 = scmp.lt.s32.totalorder %s665, 1
      %s667 = scalar_select %p666, %s665, 1
      %s668 = smul.addr %s667, 8
      %s669 = scalar_lea.vmem %s5, %s668
      %s670 = smul.u32 2, %s32
      %s671 = smul.u32 2, %s32
      %p672 = scmp.lt.s32.totalorder %s671, 1
      %s673 = scalar_select %p672, %s671, 1
      %s674 = smul.addr %s673, 4
      %s675 = scalar_lea.vmem %s6, %s674
      %s676 = smul.u32 2, %s32
      %s677 = smul.u32 2, %s32
      %p678 = scmp.lt.s32.totalorder %s31, 1
      %s679 = scalar_select %p678, %s31, 1
      %p680 = scmp.lt.s32.totalorder %s677, 1
      %s681 = scalar_select %p680, %s677, 1
      %s682 = smul.addr %s679, 8
      %s683 = sadd.s32 %s681, %s682
      %s684 = smul.addr %s683, 8
      %s685 = scalar_lea.vmem %s16, %s684
      %s686 = smul.u32 2, %s32
      %v688 = vld [vmem:[%s642] sm:$0xff]
      %v689 = vld [vmem:[%s642 + $0x8] sm:$0xff]
      %v690 = vld [vmem:[%s642 + $0x10] sm:$0xff]
      %v691 = vld [vmem:[%s642 + $0x18] sm:$0xff]
      %v692 = vld [vmem:[%s642 + $0x20] sm:$0xff]
      %v693 = vld [vmem:[%s642 + $0x28] sm:$0xff]
      %v694 = vld [vmem:[%s642 + $0x30] sm:$0xff]
      %v695 = vld [vmem:[%s642 + $0x38] sm:$0xff]
      %v696 = vunpack.c.l.bf16 %v688
      %v697 = vunpack.c.h.bf16 %v688
      %v698 = vunpack.c.l.bf16 %v689
      %v699 = vunpack.c.h.bf16 %v689
      %v700 = vunpack.c.l.bf16 %v690
      %v701 = vunpack.c.h.bf16 %v690
      %v702 = vunpack.c.l.bf16 %v691
      %v703 = vunpack.c.h.bf16 %v691
      %v704 = vunpack.c.l.bf16 %v692
      %v705 = vunpack.c.h.bf16 %v692
      %v706 = vunpack.c.l.bf16 %v693
      %v707 = vunpack.c.h.bf16 %v693
      %v708 = vunpack.c.l.bf16 %v694
      %v709 = vunpack.c.h.bf16 %v694
      %v710 = vunpack.c.l.bf16 %v695
      %v711 = vunpack.c.h.bf16 %v695
      %v712 = vld [vmem:[%s7] sm:$0xff]
      %v713 = vld [vmem:[%s7 + $0x8] sm:$0xff]
      %v714 = vld [vmem:[%s7 + $0x10] sm:$0xff]
      %v715 = vld [vmem:[%s7 + $0x18] sm:$0xff]
      %v716 = vld [vmem:[%s7 + $0x20] sm:$0xff]
      %v717 = vld [vmem:[%s7 + $0x28] sm:$0xff]
      %v718 = vld [vmem:[%s7 + $0x30] sm:$0xff]
      %v719 = vld [vmem:[%s7 + $0x38] sm:$0xff]
      %721 = vset.pattern.permute.xlu0 0
      %722 = vperm.xlu0 %721, %v712
      %v723 = vpop.permute.xlu0 %722
      %726 = vset.pattern.permute.xlu0 0
      %727 = vperm.xlu0 %726, %v713
      %v728 = vpop.permute.xlu0 %727
      %731 = vset.pattern.permute.xlu0 0
      %732 = vperm.xlu0 %731, %v714
      %v733 = vpop.permute.xlu0 %732
      %736 = vset.pattern.permute.xlu0 0
      %737 = vperm.xlu0 %736, %v715
      %v738 = vpop.permute.xlu0 %737
      %741 = vset.pattern.permute.xlu0 0
      %742 = vperm.xlu0 %741, %v716
      %v743 = vpop.permute.xlu0 %742
      %746 = vset.pattern.permute.xlu0 0
      %747 = vperm.xlu0 %746, %v717
      %v748 = vpop.permute.xlu0 %747
      %751 = vset.pattern.permute.xlu0 0
      %752 = vperm.xlu0 %751, %v718
      %v753 = vpop.permute.xlu0 %752
      %756 = vset.pattern.permute.xlu0 0
      %757 = vperm.xlu0 %756, %v719
      %v758 = vpop.permute.xlu0 %757
      %v760 = vmul.f32 %v696, %v723
      %v761 = vmul.f32 %v697, %v723
      %v762 = vmul.f32 %v698, %v728
      %v763 = vmul.f32 %v699, %v728
      %v764 = vmul.f32 %v700, %v733
      %v765 = vmul.f32 %v701, %v733
      %v766 = vmul.f32 %v702, %v738
      %v767 = vmul.f32 %v703, %v738
      %v768 = vmul.f32 %v704, %v743
      %v769 = vmul.f32 %v705, %v743
      %v770 = vmul.f32 %v706, %v748
      %v771 = vmul.f32 %v707, %v748
      %v772 = vmul.f32 %v708, %v753
      %v773 = vmul.f32 %v709, %v753
      %v774 = vmul.f32 %v710, %v758
      %v775 = vmul.f32 %v711, %v758
      %v776 = vld [vmem:[%s11] sm:$0xff]
      %v777 = vld [vmem:[%s11 + $0x8] sm:$0xff]
      %v778 = vld [vmem:[%s11 + $0x10] sm:$0xff]
      %v779 = vld [vmem:[%s11 + $0x18] sm:$0xff]
      %v780 = vld [vmem:[%s11 + $0x20] sm:$0xff]
      %v781 = vld [vmem:[%s11 + $0x28] sm:$0xff]
      %v782 = vld [vmem:[%s11 + $0x30] sm:$0xff]
      %v783 = vld [vmem:[%s11 + $0x38] sm:$0xff]
      %785 = vset.pattern.permute.xlu0 0
      %786 = vperm.xlu0 %785, %v776
      %v787 = vpop.permute.xlu0 %786
      %790 = vset.pattern.permute.xlu0 0
      %791 = vperm.xlu0 %790, %v777
      %v792 = vpop.permute.xlu0 %791
      %795 = vset.pattern.permute.xlu0 0
      %796 = vperm.xlu0 %795, %v778
      %v797 = vpop.permute.xlu0 %796
      %800 = vset.pattern.permute.xlu0 0
      %801 = vperm.xlu0 %800, %v779
      %v802 = vpop.permute.xlu0 %801
      %805 = vset.pattern.permute.xlu0 0
      %806 = vperm.xlu0 %805, %v780
      %v807 = vpop.permute.xlu0 %806
      %810 = vset.pattern.permute.xlu0 0
      %811 = vperm.xlu0 %810, %v781
      %v812 = vpop.permute.xlu0 %811
      %815 = vset.pattern.permute.xlu0 0
      %816 = vperm.xlu0 %815, %v782
      %v817 = vpop.permute.xlu0 %816
      %820 = vset.pattern.permute.xlu0 0
      %821 = vperm.xlu0 %820, %v783
      %v822 = vpop.permute.xlu0 %821
      %v824 = vadd.f32 %v760, %v787
      %v825 = vadd.f32 %v761, %v787
      %v826 = vadd.f32 %v762, %v792
      %v827 = vadd.f32 %v763, %v792
      %v828 = vadd.f32 %v764, %v797
      %v829 = vadd.f32 %v765, %v797
      %v830 = vadd.f32 %v766, %v802
      %v831 = vadd.f32 %v767, %v802
      %v832 = vadd.f32 %v768, %v807
      %v833 = vadd.f32 %v769, %v807
      %v834 = vadd.f32 %v770, %v812
      %v835 = vadd.f32 %v771, %v812
      %v836 = vadd.f32 %v772, %v817
      %v837 = vadd.f32 %v773, %v817
      %v838 = vadd.f32 %v774, %v822
      %v839 = vadd.f32 %v775, %v822
      %v840 = vmax.f32 %v824, 0.0
      %v841 = vmax.f32 %v825, 0.0
      %v842 = vmax.f32 %v826, 0.0
      %v843 = vmax.f32 %v827, 0.0
      %v844 = vmax.f32 %v828, 0.0
      %v845 = vmax.f32 %v829, 0.0
      %v846 = vmax.f32 %v830, 0.0
      %v847 = vmax.f32 %v831, 0.0
      %v848 = vmax.f32 %v832, 0.0
      %v849 = vmax.f32 %v833, 0.0
      %v850 = vmax.f32 %v834, 0.0
      %v851 = vmax.f32 %v835, 0.0
      %v852 = vmax.f32 %v836, 0.0
      %v853 = vmax.f32 %v837, 0.0
      %v854 = vmax.f32 %v838, 0.0
      %v855 = vmax.f32 %v839, 0.0
      %v856 = vpack.c.bf16 %v841, %v840
      %v857 = vpack.c.bf16 %v843, %v842
      %v858 = vpack.c.bf16 %v845, %v844
      %v859 = vpack.c.bf16 %v847, %v846
      %v860 = vpack.c.bf16 %v849, %v848
      %v861 = vpack.c.bf16 %v851, %v850
      %v862 = vpack.c.bf16 %v853, %v852
      %v863 = vpack.c.bf16 %v855, %v854
      %864 = vst [vmem:[#allocation2] sm:$0xff] %v856
      %865 = vst [vmem:[#allocation2 + $0x8] sm:$0xff] %v857
      %866 = vst [vmem:[#allocation2 + $0x10] sm:$0xff] %v858
      %867 = vst [vmem:[#allocation2 + $0x18] sm:$0xff] %v859
      %868 = vst [vmem:[#allocation2 + $0x20] sm:$0xff] %v860
      %869 = vst [vmem:[#allocation2 + $0x28] sm:$0xff] %v861
      %870 = vst [vmem:[#allocation2 + $0x30] sm:$0xff] %v862
      %871 = vst [vmem:[#allocation2 + $0x38] sm:$0xff] %v863
      %v872 = vld [vmem:[%s648] sm:$0xf]
      %v873 = vld [vmem:[%s648 + $0x4] sm:$0xf]
      %v874 = vld [vmem:[%s648 + $0x8] sm:$0xf]
      %v875 = vld [vmem:[%s648 + $0xc] sm:$0xf]
      %v876 = vunpack.c.l.bf16 %v872
      %v877 = vunpack.c.l.bf16 %v873
      %v878 = vunpack.c.l.bf16 %v874
      %v879 = vunpack.c.l.bf16 %v875
      %v880 = vld [vmem:[%s663] sm:$0xff]
      %v881 = vld [vmem:[%s663 + $0x8] sm:$0xff]
      %v882 = vld [vmem:[%s663 + $0x10] sm:$0xff]
      %v883 = vld [vmem:[%s663 + $0x18] sm:$0xff]
      %v884 = vld [vmem:[%s663 + $0x20] sm:$0xff]
      %v885 = vld [vmem:[%s663 + $0x28] sm:$0xff]
      %v886 = vld [vmem:[%s663 + $0x30] sm:$0xff]
      %v887 = vld [vmem:[%s663 + $0x38] sm:$0xff]
      %v888 = vld [vmem:[%s663 + $0x40] sm:$0xf]
      %v889 = vld [vmem:[%s663 + $0x48] sm:$0xf]
      %vm890 = vcmask 293888
      %v892 = vsel %vm890, %v876, 0
      %v895 = vsel %vm890, %v877, 0
      %v898 = vsel %vm890, %v878, 0
      %v901 = vsel %vm890, %v879, 0
      %vm903 = vcmask 1043456
      %v905 = vsel %vm903, %v888, 0
      %v908 = vsel %vm903, %v889, 0
      %910 = vmatpush.msra.mxu0 0.0
      %911 = vmatpush.msra.mxu0 0.0
      %912 = vmatpush.msra.mxu0 0.0
      %913 = vmatpush.msra.mxu0 0.0
      %914 = vmatpush.msra.mxu0 0.0
      %915 = vmatpush.msra.mxu0 0.0
      %916 = vmatpush.msra.mxu0 0.0
      %917 = vmatpush.msra.mxu0 0.0
      %918 = vmatpush.msra.mxu0 0.0
      %919 = vmatpush.msra.mxu0 0.0
      %920 = vmatpush.msra.mxu0 0.0
      %921 = vmatpush.msra.mxu0 %v905
      %922 = vmatpush.msra.mxu0 %v886
      %923 = vmatpush.msra.mxu0 %v884
      %924 = vmatpush.msra.mxu0 %v882
      %925 = vmatpush.msra.mxu0 %v880
      %926 = vmatmul.f32.gmra.mxu0 %v892
      %v927 = vpop.f32.mrf.mxu0
      %v928 = vadd.f32 0.0, %v927
      %929 = vmatmul.f32.gmra.mxu0 %v895
      %v930 = vpop.f32.mrf.mxu0
      %v931 = vadd.f32 0.0, %v930
      %932 = vmatmul.f32.gmra.mxu0 %v898
      %v933 = vpop.f32.mrf.mxu0
      %v934 = vadd.f32 0.0, %v933
      %935 = vmatmul.f32.gmra.mxu0 %v901
      %v936 = vpop.f32.mrf.mxu0
      %v937 = vadd.f32 0.0, %v936
      %938 = vdwg.mxu0
      %939 = vmatpush.msra.mxu0 0.0
      %940 = vmatpush.msra.mxu0 0.0
      %941 = vmatpush.msra.mxu0 0.0
      %942 = vmatpush.msra.mxu0 0.0
      %943 = vmatpush.msra.mxu0 0.0
      %944 = vmatpush.msra.mxu0 0.0
      %945 = vmatpush.msra.mxu0 0.0
      %946 = vmatpush.msra.mxu0 0.0
      %947 = vmatpush.msra.mxu0 0.0
      %948 = vmatpush.msra.mxu0 0.0
      %949 = vmatpush.msra.mxu0 0.0
      %950 = vmatpush.msra.mxu0 %v908
      %951 = vmatpush.msra.mxu0 %v887
      %952 = vmatpush.msra.mxu0 %v885
      %953 = vmatpush.msra.mxu0 %v883
      %954 = vmatpush.msra.mxu0 %v881
      %955 = vmatmul.f32.gmra.mxu0 %v892
      %v956 = vpop.f32.mrf.mxu0
      %v957 = vadd.f32 0.0, %v956
      %958 = vmatmul.f32.gmra.mxu0 %v895
      %v959 = vpop.f32.mrf.mxu0
      %v960 = vadd.f32 0.0, %v959
      %961 = vmatmul.f32.gmra.mxu0 %v898
      %v962 = vpop.f32.mrf.mxu0
      %v963 = vadd.f32 0.0, %v962
      %964 = vmatmul.f32.gmra.mxu0 %v901
      %v965 = vpop.f32.mrf.mxu0
      %v966 = vadd.f32 0.0, %v965
      %967 = vdwg.mxu0
      %v968 = vld [vmem:[%s8] sm:$0xff]
      %v969 = vld [vmem:[%s8 + $0x8] sm:$0xff]
      %v970 = vld [vmem:[%s8 + $0x10] sm:$0xff]
      %v971 = vld [vmem:[%s8 + $0x18] sm:$0xff]
      %973 = vset.pattern.permute.xlu0 0
      %974 = vperm.xlu0 %973, %v968
      %v975 = vpop.permute.xlu0 %974
      %978 = vset.pattern.permute.xlu0 0
      %979 = vperm.xlu0 %978, %v969
      %v980 = vpop.permute.xlu0 %979
      %983 = vset.pattern.permute.xlu0 0
      %984 = vperm.xlu0 %983, %v970
      %v985 = vpop.permute.xlu0 %984
      %988 = vset.pattern.permute.xlu0 0
      %989 = vperm.xlu0 %988, %v971
      %v990 = vpop.permute.xlu0 %989
      %v992 = vmul.f32 %v928, %v975
      %v993 = vmul.f32 %v957, %v975
      %v994 = vmul.f32 %v931, %v980
      %v995 = vmul.f32 %v960, %v980
      %v996 = vmul.f32 %v934, %v985
      %v997 = vmul.f32 %v963, %v985
      %v998 = vmul.f32 %v937, %v990
      %v999 = vmul.f32 %v966, %v990
      %v1000 = vld [vmem:[%s12] sm:$0xff]
      %v1001 = vld [vmem:[%s12 + $0x8] sm:$0xff]
      %v1002 = vld [vmem:[%s12 + $0x10] sm:$0xff]
      %v1003 = vld [vmem:[%s12 + $0x18] sm:$0xff]
      %1005 = vset.pattern.permute.xlu0 0
      %1006 = vperm.xlu0 %1005, %v1000
      %v1007 = vpop.permute.xlu0 %1006
      %1010 = vset.pattern.permute.xlu0 0
      %1011 = vperm.xlu0 %1010, %v1001
      %v1012 = vpop.permute.xlu0 %1011
      %1015 = vset.pattern.permute.xlu0 0
      %1016 = vperm.xlu0 %1015, %v1002
      %v1017 = vpop.permute.xlu0 %1016
      %1020 = vset.pattern.permute.xlu0 0
      %1021 = vperm.xlu0 %1020, %v1003
      %v1022 = vpop.permute.xlu0 %1021
      %v1024 = vadd.f32 %v992, %v1007
      %v1025 = vadd.f32 %v993, %v1007
      %v1026 = vadd.f32 %v994, %v1012
      %v1027 = vadd.f32 %v995, %v1012
      %v1028 = vadd.f32 %v996, %v1017
      %v1029 = vadd.f32 %v997, %v1017
      %v1030 = vadd.f32 %v998, %v1022
      %v1031 = vadd.f32 %v999, %v1022
      %v1032 = vmax.f32 %v1024, 0.0
      %v1033 = vmax.f32 %v1025, 0.0
      %v1034 = vmax.f32 %v1026, 0.0
      %v1035 = vmax.f32 %v1027, 0.0
      %v1036 = vmax.f32 %v1028, 0.0
      %v1037 = vmax.f32 %v1029, 0.0
      %v1038 = vmax.f32 %v1030, 0.0
      %v1039 = vmax.f32 %v1031, 0.0
      %v1040 = vpack.c.bf16 %v1033, %v1032
      %v1041 = vpack.c.bf16 %v1035, %v1034
      %v1042 = vpack.c.bf16 %v1037, %v1036
      %v1043 = vpack.c.bf16 %v1039, %v1038
      %1044 = vst [vmem:[#allocation2 + $0x40] sm:$0xff] %v1040
      %1045 = vst [vmem:[#allocation2 + $0x48] sm:$0xff] %v1041
      %1046 = vst [vmem:[#allocation2 + $0x50] sm:$0xff] %v1042
      %1047 = vst [vmem:[#allocation2 + $0x58] sm:$0xff] %v1043
      %v1048 = vld [vmem:[%s653] sm:$0xf]
      %v1049 = vld [vmem:[%s653 + $0x4] sm:$0xf]
      %v1050 = vld [vmem:[%s653 + $0x8] sm:$0xf]
      %v1051 = vld [vmem:[%s653 + $0xc] sm:$0xf]
      %v1052 = vunpack.c.l.bf16 %v1048
      %v1053 = vunpack.c.l.bf16 %v1049
      %v1054 = vunpack.c.l.bf16 %v1050
      %v1055 = vunpack.c.l.bf16 %v1051
      %v1056 = vld [vmem:[%s669] sm:$0xff]
      %v1057 = vld [vmem:[%s669 + $0x8] sm:$0xff]
      %v1058 = vld [vmem:[%s669 + $0x10] sm:$0x1]
      %v1059 = vld [vmem:[%s669 + $0x18] sm:$0x1]
      %vm1060 = vcmask 72704
      %v1062 = vsel %vm1060, %v1052, 0
      %v1065 = vsel %vm1060, %v1053, 0
      %v1068 = vsel %vm1060, %v1054, 0
      %v1071 = vsel %vm1060, %v1055, 0
      %vm1073 = vcmask 1040384
      %v1075 = vsel %vm1073, %v1058, 0
      %v1078 = vsel %vm1073, %v1059, 0
      %1080 = vmatpush.msra.mxu0 0.0
      %1081 = vmatpush.msra.mxu0 0.0
      %1082 = vmatpush.msra.mxu0 0.0
      %1083 = vmatpush.msra.mxu0 0.0
      %1084 = vmatpush.msra.mxu0 0.0
      %1085 = vmatpush.msra.mxu0 0.0
      %1086 = vmatpush.msra.mxu0 0.0
      %1087 = vmatpush.msra.mxu0 0.0
      %1088 = vmatpush.msra.mxu0 0.0
      %1089 = vmatpush.msra.mxu0 0.0
      %1090 = vmatpush.msra.mxu0 0.0
      %1091 = vmatpush.msra.mxu0 0.0
      %1092 = vmatpush.msra.mxu0 0.0
      %1093 = vmatpush.msra.mxu0 0.0
      %1094 = vmatpush.msra.mxu0 %v1075
      %1095 = vmatpush.msra.mxu0 %v1056
      %1096 = vmatmul.f32.gmra.mxu0 %v1062
      %v1097 = vpop.f32.mrf.mxu0
      %v1098 = vadd.f32 0.0, %v1097
      %1099 = vmatmul.f32.gmra.mxu0 %v1065
      %v1100 = vpop.f32.mrf.mxu0
      %v1101 = vadd.f32 0.0, %v1100
      %1102 = vmatmul.f32.gmra.mxu0 %v1068
      %v1103 = vpop.f32.mrf.mxu0
      %v1104 = vadd.f32 0.0, %v1103
      %1105 = vmatmul.f32.gmra.mxu0 %v1071
      %v1106 = vpop.f32.mrf.mxu0
      %v1107 = vadd.f32 0.0, %v1106
      %1108 = vdwg.mxu0
      %1109 = vmatpush.msra.mxu0 0.0
      %1110 = vmatpush.msra.mxu0 0.0
      %1111 = vmatpush.msra.mxu0 0.0
      %1112 = vmatpush.msra.mxu0 0.0
      %1113 = vmatpush.msra.mxu0 0.0
      %1114 = vmatpush.msra.mxu0 0.0
      %1115 = vmatpush.msra.mxu0 0.0
      %1116 = vmatpush.msra.mxu0 0.0
      %1117 = vmatpush.msra.mxu0 0.0
      %1118 = vmatpush.msra.mxu0 0.0
      %1119 = vmatpush.msra.mxu0 0.0
      %1120 = vmatpush.msra.mxu0 0.0
      %1121 = vmatpush.msra.mxu0 0.0
      %1122 = vmatpush.msra.mxu0 0.0
      %1123 = vmatpush.msra.mxu0 %v1078
      %1124 = vmatpush.msra.mxu0 %v1057
      %1125 = vmatmul.f32.gmra.mxu0 %v1062
      %v1126 = vpop.f32.mrf.mxu0
      %v1127 = vadd.f32 0.0, %v1126
      %1128 = vmatmul.f32.gmra.mxu0 %v1065
      %v1129 = vpop.f32.mrf.mxu0
      %v1130 = vadd.f32 0.0, %v1129
      %1131 = vmatmul.f32.gmra.mxu0 %v1068
      %v1132 = vpop.f32.mrf.mxu0
      %v1133 = vadd.f32 0.0, %v1132
      %1134 = vmatmul.f32.gmra.mxu0 %v1071
      %v1135 = vpop.f32.mrf.mxu0
      %v1136 = vadd.f32 0.0, %v1135
      %1137 = vdwg.mxu0
      %v1138 = vld [vmem:[%s9] sm:$0xff]
      %v1139 = vld [vmem:[%s9 + $0x8] sm:$0xff]
      %v1140 = vld [vmem:[%s9 + $0x10] sm:$0xff]
      %v1141 = vld [vmem:[%s9 + $0x18] sm:$0xff]
      %1143 = vset.pattern.permute.xlu0 0
      %1144 = vperm.xlu0 %1143, %v1138
      %v1145 = vpop.permute.xlu0 %1144
      %1148 = vset.pattern.permute.xlu0 0
      %1149 = vperm.xlu0 %1148, %v1139
      %v1150 = vpop.permute.xlu0 %1149
      %1153 = vset.pattern.permute.xlu0 0
      %1154 = vperm.xlu0 %1153, %v1140
      %v1155 = vpop.permute.xlu0 %1154
      %1158 = vset.pattern.permute.xlu0 0
      %1159 = vperm.xlu0 %1158, %v1141
      %v1160 = vpop.permute.xlu0 %1159
      %v1162 = vmul.f32 %v1098, %v1145
      %v1163 = vmul.f32 %v1127, %v1145
      %v1164 = vmul.f32 %v1101, %v1150
      %v1165 = vmul.f32 %v1130, %v1150
      %v1166 = vmul.f32 %v1104, %v1155
      %v1167 = vmul.f32 %v1133, %v1155
      %v1168 = vmul.f32 %v1107, %v1160
      %v1169 = vmul.f32 %v1136, %v1160
      %v1170 = vld [vmem:[%s13] sm:$0xff]
      %v1171 = vld [vmem:[%s13 + $0x8] sm:$0xff]
      %v1172 = vld [vmem:[%s13 + $0x10] sm:$0xff]
      %v1173 = vld [vmem:[%s13 + $0x18] sm:$0xff]
      %1175 = vset.pattern.permute.xlu0 0
      %1176 = vperm.xlu0 %1175, %v1170
      %v1177 = vpop.permute.xlu0 %1176
      %1180 = vset.pattern.permute.xlu0 0
      %1181 = vperm.xlu0 %1180, %v1171
      %v1182 = vpop.permute.xlu0 %1181
      %1185 = vset.pattern.permute.xlu0 0
      %1186 = vperm.xlu0 %1185, %v1172
      %v1187 = vpop.permute.xlu0 %1186
      %1190 = vset.pattern.permute.xlu0 0
      %1191 = vperm.xlu0 %1190, %v1173
      %v1192 = vpop.permute.xlu0 %1191
      %v1194 = vadd.f32 %v1162, %v1177
      %v1195 = vadd.f32 %v1163, %v1177
      %v1196 = vadd.f32 %v1164, %v1182
      %v1197 = vadd.f32 %v1165, %v1182
      %v1198 = vadd.f32 %v1166, %v1187
      %v1199 = vadd.f32 %v1167, %v1187
      %v1200 = vadd.f32 %v1168, %v1192
      %v1201 = vadd.f32 %v1169, %v1192
      %v1202 = vmax.f32 %v1194, 0.0
      %v1203 = vmax.f32 %v1195, 0.0
      %v1204 = vmax.f32 %v1196, 0.0
      %v1205 = vmax.f32 %v1197, 0.0
      %v1206 = vmax.f32 %v1198, 0.0
      %v1207 = vmax.f32 %v1199, 0.0
      %v1208 = vmax.f32 %v1200, 0.0
      %v1209 = vmax.f32 %v1201, 0.0
      %v1210 = vpack.c.bf16 %v1203, %v1202
      %v1211 = vpack.c.bf16 %v1205, %v1204
      %v1212 = vpack.c.bf16 %v1207, %v1206
      %v1213 = vpack.c.bf16 %v1209, %v1208
      %1214 = vst [vmem:[#allocation2 + $0x60] sm:$0xff] %v1210
      %1215 = vst [vmem:[#allocation2 + $0x68] sm:$0xff] %v1211
      %1216 = vst [vmem:[#allocation2 + $0x70] sm:$0xff] %v1212
      %1217 = vst [vmem:[#allocation2 + $0x78] sm:$0xff] %v1213
      %v1218 = vld [vmem:[%s658] sm:$0xf]
      %v1219 = vld [vmem:[%s658 + $0x4] sm:$0xf]
      %v1220 = vld [vmem:[%s658 + $0x8] sm:$0xf]
      %v1221 = vld [vmem:[%s658 + $0xc] sm:$0xf]
      %v1222 = vunpack.c.l.bf16 %v1218
      %v1223 = vunpack.c.l.bf16 %v1219
      %v1224 = vunpack.c.l.bf16 %v1220
      %v1225 = vunpack.c.l.bf16 %v1221
      %v1226 = vld [vmem:[%s675] sm:$0xff]
      %1228 = vst [vmem:[#allocation1] ss:$2 sm:$0xff] %v1226
      %v1229 = vld.sshfl [vmem:[#allocation1] sm:$0xff pattern:$0x75316420]
      %v1230 = vld.sshfl [vmem:[#allocation1 + $0x8] sm:$0xff pattern:$0x75316420]
      %vm1231 = vcmask 31744
      %v1233 = vsel %vm1231, %v1222, 0
      %v1236 = vsel %vm1231, %v1223, 0
      %v1239 = vsel %vm1231, %v1224, 0
      %v1242 = vsel %vm1231, %v1225, 0
      %v1244 = vsel %vm903, %v1229, 0
      %v1246 = vsel %vm903, %v1230, 0
      %1248 = vmatpush.msra.mxu0 0.0
      %1249 = vmatpush.msra.mxu0 0.0
      %1250 = vmatpush.msra.mxu0 0.0
      %1251 = vmatpush.msra.mxu0 0.0
      %1252 = vmatpush.msra.mxu0 0.0
      %1253 = vmatpush.msra.mxu0 0.0
      %1254 = vmatpush.msra.mxu0 0.0
      %1255 = vmatpush.msra.mxu0 0.0
      %1256 = vmatpush.msra.mxu0 0.0
      %1257 = vmatpush.msra.mxu0 0.0
      %1258 = vmatpush.msra.mxu0 0.0
      %1259 = vmatpush.msra.mxu0 0.0
      %1260 = vmatpush.msra.mxu0 0.0
      %1261 = vmatpush.msra.mxu0 0.0
      %1262 = vmatpush.msra.mxu0 0.0
      %1263 = vmatpush.msra.mxu0 %v1244
      %1264 = vmatmul.f32.gmra.mxu0 %v1233
      %v1265 = vpop.f32.mrf.mxu0
      %v1266 = vadd.f32 0.0, %v1265
      %1267 = vmatmul.f32.gmra.mxu0 %v1236
      %v1268 = vpop.f32.mrf.mxu0
      %v1269 = vadd.f32 0.0, %v1268
      %1270 = vmatmul.f32.gmra.mxu0 %v1239
      %v1271 = vpop.f32.mrf.mxu0
      %v1272 = vadd.f32 0.0, %v1271
      %1273 = vmatmul.f32.gmra.mxu0 %v1242
      %v1274 = vpop.f32.mrf.mxu0
      %v1275 = vadd.f32 0.0, %v1274
      %1276 = vdwg.mxu0
      %1277 = vmatpush.msra.mxu0 0.0
      %1278 = vmatpush.msra.mxu0 0.0
      %1279 = vmatpush.msra.mxu0 0.0
      %1280 = vmatpush.msra.mxu0 0.0
      %1281 = vmatpush.msra.mxu0 0.0
      %1282 = vmatpush.msra.mxu0 0.0
      %1283 = vmatpush.msra.mxu0 0.0
      %1284 = vmatpush.msra.mxu0 0.0
      %1285 = vmatpush.msra.mxu0 0.0
      %1286 = vmatpush.msra.mxu0 0.0
      %1287 = vmatpush.msra.mxu0 0.0
      %1288 = vmatpush.msra.mxu0 0.0
      %1289 = vmatpush.msra.mxu0 0.0
      %1290 = vmatpush.msra.mxu0 0.0
      %1291 = vmatpush.msra.mxu0 0.0
      %1292 = vmatpush.msra.mxu0 %v1246
      %1293 = vmatmul.f32.gmra.mxu0 %v1233
      %v1294 = vpop.f32.mrf.mxu0
      %v1295 = vadd.f32 0.0, %v1294
      %1296 = vmatmul.f32.gmra.mxu0 %v1236
      %v1297 = vpop.f32.mrf.mxu0
      %v1298 = vadd.f32 0.0, %v1297
      %1299 = vmatmul.f32.gmra.mxu0 %v1239
      %v1300 = vpop.f32.mrf.mxu0
      %v1301 = vadd.f32 0.0, %v1300
      %1302 = vmatmul.f32.gmra.mxu0 %v1242
      %v1303 = vpop.f32.mrf.mxu0
      %v1304 = vadd.f32 0.0, %v1303
      %1305 = vdwg.mxu0
      %v1306 = vld [vmem:[%s10] sm:$0xff]
      %v1307 = vld [vmem:[%s10 + $0x8] sm:$0xff]
      %v1308 = vld [vmem:[%s10 + $0x10] sm:$0xff]
      %v1309 = vld [vmem:[%s10 + $0x18] sm:$0xff]
      %1311 = vset.pattern.permute.xlu0 0
      %1312 = vperm.xlu0 %1311, %v1306
      %v1313 = vpop.permute.xlu0 %1312
      %1316 = vset.pattern.permute.xlu0 0
      %1317 = vperm.xlu0 %1316, %v1307
      %v1318 = vpop.permute.xlu0 %1317
      %1321 = vset.pattern.permute.xlu0 0
      %1322 = vperm.xlu0 %1321, %v1308
      %v1323 = vpop.permute.xlu0 %1322
      %1326 = vset.pattern.permute.xlu0 0
      %1327 = vperm.xlu0 %1326, %v1309
      %v1328 = vpop.permute.xlu0 %1327
      %v1330 = vmul.f32 %v1266, %v1313
      %v1331 = vmul.f32 %v1295, %v1313
      %v1332 = vmul.f32 %v1269, %v1318
      %v1333 = vmul.f32 %v1298, %v1318
      %v1334 = vmul.f32 %v1272, %v1323
      %v1335 = vmul.f32 %v1301, %v1323
      %v1336 = vmul.f32 %v1275, %v1328
      %v1337 = vmul.f32 %v1304, %v1328
      %v1338 = vld [vmem:[%s14] sm:$0xff]
      %v1339 = vld [vmem:[%s14 + $0x8] sm:$0xff]
      %v1340 = vld [vmem:[%s14 + $0x10] sm:$0xff]
      %v1341 = vld [vmem:[%s14 + $0x18] sm:$0xff]
      %1343 = vset.pattern.permute.xlu0 0
      %1344 = vperm.xlu0 %1343, %v1338
      %v1345 = vpop.permute.xlu0 %1344
      %1348 = vset.pattern.permute.xlu0 0
      %1349 = vperm.xlu0 %1348, %v1339
      %v1350 = vpop.permute.xlu0 %1349
      %1353 = vset.pattern.permute.xlu0 0
      %1354 = vperm.xlu0 %1353, %v1340
      %v1355 = vpop.permute.xlu0 %1354
      %1358 = vset.pattern.permute.xlu0 0
      %1359 = vperm.xlu0 %1358, %v1341
      %v1360 = vpop.permute.xlu0 %1359
      %v1362 = vadd.f32 %v1330, %v1345
      %v1363 = vadd.f32 %v1331, %v1345
      %v1364 = vadd.f32 %v1332, %v1350
      %v1365 = vadd.f32 %v1333, %v1350
      %v1366 = vadd.f32 %v1334, %v1355
      %v1367 = vadd.f32 %v1335, %v1355
      %v1368 = vadd.f32 %v1336, %v1360
      %v1369 = vadd.f32 %v1337, %v1360
      %v1370 = vmax.f32 %v1362, 0.0
      %v1371 = vmax.f32 %v1363, 0.0
      %v1372 = vmax.f32 %v1364, 0.0
      %v1373 = vmax.f32 %v1365, 0.0
      %v1374 = vmax.f32 %v1366, 0.0
      %v1375 = vmax.f32 %v1367, 0.0
      %v1376 = vmax.f32 %v1368, 0.0
      %v1377 = vmax.f32 %v1369, 0.0
      %v1378 = vpack.c.bf16 %v1371, %v1370
      %v1379 = vpack.c.bf16 %v1373, %v1372
      %v1380 = vpack.c.bf16 %v1375, %v1374
      %v1381 = vpack.c.bf16 %v1377, %v1376
      %1382 = vst [vmem:[#allocation2 + $0x80] sm:$0xff] %v1378
      %1383 = vst [vmem:[#allocation2 + $0x88] sm:$0xff] %v1379
      %1384 = vst [vmem:[#allocation2 + $0x90] sm:$0xff] %v1380
      %1385 = vst [vmem:[#allocation2 + $0x98] sm:$0xff] %v1381
      %v1386 = vld [vmem:[%s15] sm:$0xff]
      %v1387 = vld [vmem:[%s15 + $0x8] sm:$0xff]
      %v1388 = vld [vmem:[%s15 + $0x10] sm:$0xff]
      %v1389 = vld [vmem:[%s15 + $0x18] sm:$0xff]
      %v1390 = vld [vmem:[#allocation2] sm:$0xff]
      %v1391 = vld [vmem:[#allocation2 + $0x8] sm:$0xff]
      %v1392 = vld [vmem:[#allocation2 + $0x10] sm:$0xff]
      %v1393 = vld [vmem:[#allocation2 + $0x18] sm:$0xff]
      %v1394 = vld [vmem:[#allocation2 + $0x20] sm:$0xff]
      %v1395 = vld [vmem:[#allocation2 + $0x28] sm:$0xff]
      %v1396 = vld [vmem:[#allocation2 + $0x30] sm:$0xff]
      %v1397 = vld [vmem:[#allocation2 + $0x38] sm:$0xff]
      %v1398 = vld [vmem:[#allocation2 + $0x40] sm:$0xff]
      %v1399 = vld [vmem:[#allocation2 + $0x48] sm:$0xff]
      %v1400 = vld [vmem:[#allocation2 + $0x50] sm:$0xff]
      %v1401 = vld [vmem:[#allocation2 + $0x58] sm:$0xff]
      %v1402 = vld [vmem:[#allocation2 + $0x60] sm:$0xff]
      %v1403 = vld [vmem:[#allocation2 + $0x68] sm:$0xff]
      %v1404 = vld [vmem:[#allocation2 + $0x70] sm:$0xff]
      %v1405 = vld [vmem:[#allocation2 + $0x78] sm:$0xff]
      %v1406 = vld [vmem:[#allocation2 + $0x80] sm:$0xff]
      %v1407 = vld [vmem:[#allocation2 + $0x88] sm:$0xff]
      %v1408 = vld [vmem:[#allocation2 + $0x90] sm:$0xff]
      %v1409 = vld [vmem:[#allocation2 + $0x98] sm:$0xff]
      %v1414 = vunpack.c.l.b16 %v1386
      %v1415 = vunpack.c.h.b16 %v1386
      %v1416 = vunpack.c.l.b16 %v1387
      %v1417 = vunpack.c.h.b16 %v1387
      %v1418 = vunpack.c.l.b16 %v1388
      %v1419 = vunpack.c.h.b16 %v1388
      %v1420 = vunpack.c.l.b16 %v1389
      %v1421 = vunpack.c.h.b16 %v1389
      %v1422 = vpack.c.b16 %v1416, %v1414
      %v1423 = vpack.c.b16 %v1417, %v1415
      %v1424 = vpack.c.b16 %v1420, %v1418
      %v1425 = vpack.c.b16 %v1421, %v1419
      %v1448 = vunpack.c.l.b16 %v1390
      %v1449 = vunpack.c.h.b16 %v1390
      %v1450 = vunpack.c.l.b16 %v1391
      %v1451 = vunpack.c.h.b16 %v1391
      %v1452 = vunpack.c.l.b16 %v1392
      %v1453 = vunpack.c.h.b16 %v1392
      %v1454 = vunpack.c.l.b16 %v1393
      %v1455 = vunpack.c.h.b16 %v1393
      %v1456 = vunpack.c.l.b16 %v1394
      %v1457 = vunpack.c.h.b16 %v1394
      %v1458 = vunpack.c.l.b16 %v1395
      %v1459 = vunpack.c.h.b16 %v1395
      %v1460 = vunpack.c.l.b16 %v1396
      %v1461 = vunpack.c.h.b16 %v1396
      %v1462 = vunpack.c.l.b16 %v1397
      %v1463 = vunpack.c.h.b16 %v1397
      %v1464 = vunpack.c.l.b16 %v1398
      %v1465 = vunpack.c.h.b16 %v1398
      %v1466 = vunpack.c.l.b16 %v1399
      %v1467 = vunpack.c.h.b16 %v1399
      %v1468 = vunpack.c.l.b16 %v1400
      %v1469 = vunpack.c.h.b16 %v1400
      %v1470 = vunpack.c.l.b16 %v1401
      %v1471 = vunpack.c.h.b16 %v1401
      %v1472 = vunpack.c.l.b16 %v1402
      %v1473 = vunpack.c.h.b16 %v1402
      %v1474 = vunpack.c.l.b16 %v1403
      %v1475 = vunpack.c.h.b16 %v1403
      %v1476 = vunpack.c.l.b16 %v1404
      %v1477 = vunpack.c.h.b16 %v1404
      %v1478 = vunpack.c.l.b16 %v1405
      %v1479 = vunpack.c.h.b16 %v1405
      %v1480 = vunpack.c.l.b16 %v1406
      %v1481 = vunpack.c.h.b16 %v1406
      %v1482 = vunpack.c.l.b16 %v1407
      %v1483 = vunpack.c.h.b16 %v1407
      %v1484 = vunpack.c.l.b16 %v1408
      %v1485 = vunpack.c.h.b16 %v1408
      %v1486 = vunpack.c.l.b16 %v1409
      %v1487 = vunpack.c.h.b16 %v1409
      %v1488 = vpack.c.b16 %v1450, %v1448
      %v1489 = vpack.c.b16 %v1451, %v1449
      %v1490 = vpack.c.b16 %v1454, %v1452
      %v1491 = vpack.c.b16 %v1455, %v1453
      %v1492 = vpack.c.b16 %v1458, %v1456
      %v1493 = vpack.c.b16 %v1459, %v1457
      %v1494 = vpack.c.b16 %v1462, %v1460
      %v1495 = vpack.c.b16 %v1463, %v1461
      %v1496 = vpack.c.b16 %v1466, %v1464
      %v1497 = vpack.c.b16 %v1467, %v1465
      %v1498 = vpack.c.b16 %v1470, %v1468
      %v1499 = vpack.c.b16 %v1471, %v1469
      %v1500 = vpack.c.b16 %v1474, %v1472
      %v1501 = vpack.c.b16 %v1475, %v1473
      %v1502 = vpack.c.b16 %v1478, %v1476
      %v1503 = vpack.c.b16 %v1479, %v1477
      %v1504 = vpack.c.b16 %v1482, %v1480
      %v1505 = vpack.c.b16 %v1483, %v1481
      %v1506 = vpack.c.b16 %v1486, %v1484
      %v1507 = vpack.c.b16 %v1487, %v1485
      %vm1528 = vcmask 261120
      %v1530 = vsel %vm1528, %v1423, 0
      %v1533 = vsel %vm1528, %v1425, 0
      %1535 = vmatpush.bf16.msra.mxu0 %v1502
      %1536 = vmatpush.bf16.msra.mxu0 %v1500
      %1537 = vmatpush.bf16.msra.mxu0 %v1498
      %1538 = vmatpush.bf16.msra.mxu0 %v1496
      %1539 = vmatpush.bf16.msra.mxu0 %v1494
      %1540 = vmatpush.bf16.msra.mxu0 %v1492
      %1541 = vmatpush.bf16.msra.mxu0 %v1490
      %1542 = vmatpush.bf16.msra.mxu0 %v1488
      %1543 = vmatmul.bf16.gmra.mxu0 %v1422
      %v1544 = vpop.f32.mrf.mxu0
      %v1545 = vadd.f32 0.0, %v1544
      %v1546 = vpop.f32.mrf.mxu0
      %v1547 = vadd.f32 0.0, %v1546
      %1548 = vmatmul.bf16.gmra.mxu0 %v1424
      %v1549 = vpop.f32.mrf.mxu0
      %v1550 = vadd.f32 0.0, %v1549
      %v1551 = vpop.f32.mrf.mxu0
      %v1552 = vadd.f32 0.0, %v1551
      %1553 = vdwg.mxu0
      %1554 = vmatpush.bf16.msra.mxu0 0
      %1555 = vmatpush.bf16.msra.mxu0 0
      %1556 = vmatpush.bf16.msra.mxu0 0
      %1557 = vmatpush.bf16.msra.mxu0 0
      %1558 = vmatpush.bf16.msra.mxu0 0
      %1559 = vmatpush.bf16.msra.mxu0 0
      %1560 = vmatpush.bf16.msra.mxu0 %v1506
      %1561 = vmatpush.bf16.msra.mxu0 %v1504
      %1562 = vmatmul.bf16.gmra.mxu0 %v1530
      %v1563 = vpop.f32.mrf.mxu0
      %v1564 = vadd.f32 %v1545, %v1563
      %v1565 = vpop.f32.mrf.mxu0
      %v1566 = vadd.f32 %v1547, %v1565
      %1567 = vmatmul.bf16.gmra.mxu0 %v1533
      %v1568 = vpop.f32.mrf.mxu0
      %v1569 = vadd.f32 %v1550, %v1568
      %v1570 = vpop.f32.mrf.mxu0
      %v1571 = vadd.f32 %v1552, %v1570
      %1572 = vdwg.mxu0
      %1573 = vmatpush.bf16.msra.mxu0 %v1503
      %1574 = vmatpush.bf16.msra.mxu0 %v1501
      %1575 = vmatpush.bf16.msra.mxu0 %v1499
      %1576 = vmatpush.bf16.msra.mxu0 %v1497
      %1577 = vmatpush.bf16.msra.mxu0 %v1495
      %1578 = vmatpush.bf16.msra.mxu0 %v1493
      %1579 = vmatpush.bf16.msra.mxu0 %v1491
      %1580 = vmatpush.bf16.msra.mxu0 %v1489
      %1581 = vmatmul.bf16.gmra.mxu0 %v1422
      %v1582 = vpop.f32.mrf.mxu0
      %v1583 = vadd.f32 0.0, %v1582
      %v1584 = vpop.f32.mrf.mxu0
      %v1585 = vadd.f32 0.0, %v1584
      %1586 = vmatmul.bf16.gmra.mxu0 %v1424
      %v1587 = vpop.f32.mrf.mxu0
      %v1588 = vadd.f32 0.0, %v1587
      %v1589 = vpop.f32.mrf.mxu0
      %v1590 = vadd.f32 0.0, %v1589
      %1591 = vdwg.mxu0
      %1592 = vmatpush.bf16.msra.mxu0 0
      %1593 = vmatpush.bf16.msra.mxu0 0
      %1594 = vmatpush.bf16.msra.mxu0 0
      %1595 = vmatpush.bf16.msra.mxu0 0
      %1596 = vmatpush.bf16.msra.mxu0 0
      %1597 = vmatpush.bf16.msra.mxu0 0
      %1598 = vmatpush.bf16.msra.mxu0 %v1507
      %1599 = vmatpush.bf16.msra.mxu0 %v1505
      %1600 = vmatmul.bf16.gmra.mxu0 %v1530
      %v1601 = vpop.f32.mrf.mxu0
      %v1602 = vadd.f32 %v1583, %v1601
      %v1603 = vpop.f32.mrf.mxu0
      %v1604 = vadd.f32 %v1585, %v1603
      %1605 = vmatmul.bf16.gmra.mxu0 %v1533
      %v1606 = vpop.f32.mrf.mxu0
      %v1607 = vadd.f32 %v1588, %v1606
      %v1608 = vpop.f32.mrf.mxu0
      %v1609 = vadd.f32 %v1590, %v1608
      %1610 = vdwg.mxu0
      %1611 = vst [vmem:[%s685] sm:$0xff] %v1564
      %1612 = vst [vmem:[%s685 + $0x8] sm:$0xff] %v1602
      %1613 = vst [vmem:[%s685 + $0x10] sm:$0xff] %v1566
      %1614 = vst [vmem:[%s685 + $0x18] sm:$0xff] %v1604
      %1615 = vst [vmem:[%s685 + $0x20] sm:$0xff] %v1569
      %1616 = vst [vmem:[%s685 + $0x28] sm:$0xff] %v1607
      %1617 = vst [vmem:[%s685 + $0x30] sm:$0xff] %v1571
      %1618 = vst [vmem:[%s685 + $0x38] sm:$0xff] %v1609
      %s1619 = smul.u32 2, %s32
      %p1620 = scmp.lt.s32.totalorder %s31, 1
      %s1621 = scalar_select %p1620, %s31, 1
      %p1622 = scmp.lt.s32.totalorder %s1619, 1
      %s1623 = scalar_select %p1622, %s1619, 1
      %s1624 = smul.addr %s1621, 8
      %s1625 = sadd.s32 %s1623, %s1624
      %s1626 = smul.addr %s1625, 8
      %s1627 = scalar_lea.vmem %s16, %s1626
      // Predicated region
      $region85: #{a_call__.9} parent=83 // pred_check
        %p1628 = pneg %p432
      $region86: #{a_call__.9} parent=83 // pred_check_branch
        %1630 = sbr.rel (%p1628) target = $region88
      $region87: #{a_call__.9} parent=83 // pred_region
        %s1631 = smul.u32 2, %s32
      $region88: #{a_call__.9} parent=83 // pred_fallthru
        _
    $region84: #{a_call__.9} parent=5 // pred_fallthru
      _
    %p1632 = scmp.le.s32.totalorder 2, %s22
    // Predicated region
    $region89: #{a_call__.9} parent=5 // pred_check
      %p1633 = pneg %p1632
    $region90: #{a_call__.9} parent=5 // pred_check_branch
      %1635 = sbr.rel (%p1633) target = $region92
    $region91: #{a_call__.9} parent=5 // pred_region
      %s1636 = ssub.s32 %s22, 2
      // Predicated region
      $region93: #{a_call__.9} parent=91 // pred_check
        %p1637 = pneg %p438
      $region94: #{a_call__.9} parent=91 // pred_check_branch
        %1639 = sbr.rel (%p1637) target = $region96
      $region95: #{a_call__.9} parent=91 // pred_region
        %s1640 = smul.u32 2, %s34
        %p1641 = scmp.lt.s32.totalorder %s33, 1
        %s1642 = scalar_select %p1641, %s33, 1
        %p1643 = scmp.lt.s32.totalorder %s1640, 1
        %s1644 = scalar_select %p1643, %s1640, 1
        %s1645 = smul.addr %s1642, 8
        %s1646 = sadd.s32 %s1644, %s1645
        %s1647 = smul.addr %s1646, 8
        %s1648 = scalar_lea.vmem %s16, %s1647
      $region96: #{a_call__.9} parent=91 // pred_fallthru
        _
    $region92: #{a_call__.9} parent=5 // pred_fallthru
      _
  $region6: #{a_call__.9} parent=0 // loop_footer
    %s26 = sadd.s32 1, %s22
  $region7: #{a_call__.9} parent=0 // loop_footer_branch
    %21 = sbr.rel target = $region3
  $region8: #{a_call__.9} parent=0 // loop_exit
    _

</llo_original>
